<compile_context>
chip_gen: v5e
topology: v5e:2x2
jax: 0.10.0
libtpu: 0.0.40
codegen_flags: <defaults>
</compile_context>

<pallas_src>
import functools

import jax
import jax.numpy as jnp
from jax.experimental import pallas as pl
from jax.experimental.pallas import tpu as pltpu


_TINY_M = 64          # below this many rows, skip Pallas (launch overhead dominates)
_VMEM_LIMIT = 64 * 1024 * 1024


def _round_up(x, m):
    return (x + m - 1) // m * m


def _pick_tile(dim, max_tile):
    """Pick (tile, padded_dim): whole dim if small, else a dividing tile, else pad."""
    if dim <= max_tile:
        return dim, dim
    t = max_tile
    while t >= 128:
        if dim % t == 0:
            return t, dim
        t //= 2
    return max_tile, _round_up(dim, max_tile)


def _apply_pre_act(a, pre_act):
    if pre_act == "lrelu":
        return jnp.where(a > 0, a, 0.2 * a)
    if pre_act == "relu":
        return jnp.maximum(a, 0)
    return a


# -----------------------------------------------------------------------------
# Pallas kernels
# -----------------------------------------------------------------------------
def _mm_kernel(a_ref, w_ref, o_ref, acc_ref, *, pre_act, n_k):
    @pl.when(pl.program_id(2) == 0)
    def _():
        acc_ref[...] = jnp.zeros_like(acc_ref)

    a = _apply_pre_act(a_ref[...], pre_act)
    acc_ref[...] += jnp.dot(a, w_ref[...], preferred_element_type=jnp.float32)

    @pl.when(pl.program_id(2) == n_k - 1)
    def _():
        o_ref[...] = acc_ref[...].astype(o_ref.dtype)


def _mm_stats_kernel(a_ref, w_ref, o_ref, s_ref, acc_ref, *, pre_act, n_k):
    i = pl.program_id(1)
    k = pl.program_id(2)

    @pl.when(k == 0)
    def _():
        acc_ref[...] = jnp.zeros_like(acc_ref)

    # stats block (index (0, j)) stays resident across all i, k for a given j
    @pl.when((i == 0) & (k == 0))
    def _():
        s_ref[...] = jnp.zeros_like(s_ref)

    a = _apply_pre_act(a_ref[...], pre_act)
    acc_ref[...] += jnp.dot(a, w_ref[...], preferred_element_type=jnp.float32)

    @pl.when(k == n_k - 1)
    def _():
        out = acc_ref[...]
        o_ref[...] = out.astype(o_ref.dtype)
        s_ref[...] += jnp.concatenate(
            [jnp.sum(out, axis=0, keepdims=True),
             jnp.sum(out * out, axis=0, keepdims=True)], axis=0)


def _bn_apply_kernel(x_ref, scale_ref, shift_ref, o_ref):
    x = x_ref[...].astype(jnp.float32)
    o_ref[...] = (x * scale_ref[...] + shift_ref[...]).astype(o_ref.dtype)


# -----------------------------------------------------------------------------
# Pallas wrappers
# -----------------------------------------------------------------------------
def pallas_matmul(a, w, pre_act=None, out_dtype=jnp.bfloat16, emit_stats=False):
    """act(a) @ w with fused pre-activation and (optionally) fused BN statistics.

    a: (M, K), w: (K, N).  MXU in bf16, accumulation / stats in f32.  Returns
    out (M, N) in out_dtype, plus stats (2, N) f32 = [sum, sum(x^2)] per column
    when emit_stats.
    """
    M, K = a.shape
    Kw, N = w.shape
    assert K == Kw

    # Tiny bottom-of-UNet layers: fall back to plain jnp.dot.
    if M < _TINY_M:
        a_bf = _apply_pre_act(a.astype(jnp.bfloat16), pre_act)
        out = jnp.dot(a_bf, w.astype(jnp.bfloat16),
                      preferred_element_type=jnp.float32)
        stats = jnp.stack([jnp.sum(out, axis=0), jnp.sum(out * out, axis=0)])
        out = out.astype(out_dtype)
        return (out, stats) if emit_stats else out

    tm, Mp = _pick_tile(M, 512)
    tn, Np = _pick_tile(N, 512)
    tk, Kp = _pick_tile(K, 2048)
    n_i, n_j, n_k = Mp // tm, Np // tn, Kp // tk

    a_p = a.astype(jnp.bfloat16)            # no-op when a is already bf16
    if (Mp, Kp) != (M, K):
        a_p = jnp.pad(a_p, ((0, Mp - M), (0, Kp - K)))
    w_p = w.astype(jnp.bfloat16)
    if (Kp, Np) != (K, N):
        w_p = jnp.pad(w_p, ((0, Kp - K), (0, Np - N)))

    # Grid order (j, i, k): j outermost so the stats output block (0, j) is
    # resident while both reduction axes (i over rows, k over K) iterate.
    grid = (n_j, n_i, n_k)
    a_spec = pl.BlockSpec((tm, tk), lambda j, i, k: (i, k))
    w_spec = pl.BlockSpec((tk, tn), lambda j, i, k: (k, j))
    o_spec = pl.BlockSpec((tm, tn), lambda j, i, k: (i, j))
    scratch = [pltpu.VMEM((tm, tn), jnp.float32)]

    if emit_stats:
        out, stats = pl.pallas_call(
            functools.partial(_mm_stats_kernel, pre_act=pre_act, n_k=n_k),
            out_shape=(jax.ShapeDtypeStruct((Mp, Np), out_dtype),
                       jax.ShapeDtypeStruct((2, Np), jnp.float32)),
            grid=grid,
            in_specs=[a_spec, w_spec],
            out_specs=(o_spec, pl.BlockSpec((2, tn), lambda j, i, k: (0, j))),
            scratch_shapes=scratch,
            compiler_params=pltpu.CompilerParams(
                dimension_semantics=("parallel", "arbitrary", "arbitrary"),
                vmem_limit_bytes=_VMEM_LIMIT),
        )(a_p, w_p)
        if (Mp, Np) != (M, N):
            out = out[:M, :N]
            stats = stats[:, :N]
        return out, stats

    out = pl.pallas_call(
        functools.partial(_mm_kernel, pre_act=pre_act, n_k=n_k),
        out_shape=jax.ShapeDtypeStruct((Mp, Np), out_dtype),
        grid=grid,
        in_specs=[a_spec, w_spec],
        out_specs=o_spec,
        scratch_shapes=scratch,
        compiler_params=pltpu.CompilerParams(
            dimension_semantics=("parallel", "parallel", "arbitrary"),
            vmem_limit_bytes=_VMEM_LIMIT),
    )(a_p, w_p)
    if (Mp, Np) != (M, N):
        out = out[:M, :N]
    return out


def pallas_bn_apply(x_mc, scale, shift, out_dtype=jnp.bfloat16):
    """Tiled per-column x * scale + shift, bf16 in -> bf16 out."""
    M, C = x_mc.shape
    if M < _TINY_M:
        return (x_mc.astype(jnp.float32) * scale + shift).astype(out_dtype)
    tm, Mp = _pick_tile(M, 1024)
    xp = x_mc if Mp == M else jnp.pad(x_mc, ((0, Mp - M), (0, 0)))
    y = pl.pallas_call(
        _bn_apply_kernel,
        out_shape=jax.ShapeDtypeStruct((Mp, C), out_dtype),
        grid=(Mp // tm,),
        in_specs=[
            pl.BlockSpec((tm, C), lambda i: (i, 0)),
            pl.BlockSpec((1, C), lambda i: (0, 0)),
            pl.BlockSpec((1, C), lambda i: (0, 0)),
        ],
        out_specs=pl.BlockSpec((tm, C), lambda i: (i, 0)),
        compiler_params=pltpu.CompilerParams(
            dimension_semantics=("parallel",),
            vmem_limit_bytes=_VMEM_LIMIT),
    )(xp, scale.reshape(1, C).astype(jnp.float32),
      shift.reshape(1, C).astype(jnp.float32))
    return y if Mp == M else y[:M]


# -----------------------------------------------------------------------------
# Glue: im2col, conv / conv-transpose wrappers, batchnorm (all NHWC, bf16 chain)
# -----------------------------------------------------------------------------
def _im2col_nhwc(x, k, stride, pad):
    """x: (N,H,W,C) -> patches (N*Ho*Wo, k*k*C) in (kh, kw, C) column order."""
    N, H, W, C = x.shape
    xp = jnp.pad(x, ((0, 0), (pad, pad), (pad, pad), (0, 0)))
    Ho = (H + 2 * pad - k) // stride + 1
    Wo = (W + 2 * pad - k) // stride + 1
    cols = []
    for kh in range(k):
        for kw in range(k):
            cols.append(
                xp[:, kh:kh + stride * Ho:stride, kw:kw + stride * Wo:stride, :])
    patches = jnp.stack(cols, axis=3).reshape(N * Ho * Wo, k * k * C)
    return patches, Ho, Wo


def conv2d_k4s2p1(x, w, pre_act=None, emit_stats=False):
    """PyTorch Conv2d(Cin,Cout,4,stride=2,padding=1,bias=False). x NHWC bf16, w (Cout,Cin,4,4)."""
    N = x.shape[0]
    Cout, Cin = w.shape[0], w.shape[1]
    patches, Ho, Wo = _im2col_nhwc(x, k=4, stride=2, pad=1)
    w2 = jnp.transpose(w, (2, 3, 1, 0)).reshape(16 * Cin, Cout)  # (kh,kw,Cin) -> Cout
    if emit_stats:
        y, stats = pallas_matmul(patches, w2, pre_act=pre_act, emit_stats=True)
        return y.reshape(N, Ho, Wo, Cout), stats
    y = pallas_matmul(patches, w2, pre_act=pre_act)
    return y.reshape(N, Ho, Wo, Cout), None


def _convt_weight_gather(w):
    """(Cin, Cout, 4, 4) -> (9*Cin, 4*Cout) for the phase-split 3x3 lowering.

    Output phase (r, c) at (2m+r, 2l+c) of ConvTranspose2d(k=4,s=2,p=1) sums over
    input rows m+dy (dy in {-1,0,1}) with tap ky = r - 2*dy + 1 when 0 <= ky <= 3
    (same for columns).  Invalid taps stay zero.
    """
    Cin, Cout = w.shape[0], w.shape[1]
    K = jnp.zeros((3, 3, Cin, 2, 2, Cout), w.dtype)
    for dy in (-1, 0, 1):
        for r in (0, 1):
            ky = r - 2 * dy + 1
            if not 0 <= ky <= 3:
                continue
            for dx in (-1, 0, 1):
                for c in (0, 1):
                    kx = c - 2 * dx + 1
                    if not 0 <= kx <= 3:
                        continue
                    K = K.at[dy + 1, dx + 1, :, r, c, :].set(w[:, :, ky, kx])
    return K.reshape(9 * Cin, 4 * Cout)


def convtranspose2d_k4s2p1(x, w, b=None, pre_act="relu", emit_stats=False):
    """PyTorch ConvTranspose2d(Cin,Cout,4,stride=2,padding=1). x NHWC bf16, w (Cin,Cout,4,4).

    Phase-split lowering: one (N*H*W, 9*Cin) @ (9*Cin, 4*Cout) matmul yields all
    four output phases; a single transpose interleaves them to (N, 2H, 2W, Cout).
    """
    N, H, W, Cin = x.shape
    Cout = w.shape[1]
    patches, _, _ = _im2col_nhwc(x, k=3, stride=1, pad=1)   # (N*H*W, 9*Cin)
    w2 = _convt_weight_gather(w)                            # (9*Cin, 4*Cout)
    if emit_stats:
        y, stats4 = pallas_matmul(patches, w2, pre_act=pre_act, emit_stats=True)
        stats = stats4.reshape(2, 4, Cout).sum(axis=1)      # fold the 4 phases
    else:
        y = pallas_matmul(patches, w2, pre_act=pre_act)
        stats = None
    y = y.reshape(N, H, W, 2, 2, Cout)
    y = jnp.transpose(y, (0, 1, 3, 2, 4, 5)).reshape(N, 2 * H, 2 * W, Cout)
    if b is not None:
        y = y + b.reshape(1, 1, 1, Cout)
    return y, stats


def batchnorm_from_stats(x_nhwc, stats, gamma, beta, eps=1e-5):
    """BatchNorm2d (training-mode batch stats, biased variance) given fused stats."""
    N, H, W, C = x_nhwc.shape
    M = N * H * W
    mean = stats[0] / M
    var = jnp.maximum(stats[1] / M - mean * mean, 0.0)
    scale = gamma * jax.lax.rsqrt(var + eps)
    shift = beta - mean * scale
    y = pallas_bn_apply(x_nhwc.reshape(M, C), scale, shift)
    return y.reshape(N, H, W, C)


# -----------------------------------------------------------------------------
# UNet parameter construction (deterministic) and recursive forward
# -----------------------------------------------------------------------------
def build_unet_params(key, input_nc, output_nc, ngf, num_downs):
    keys = iter(jax.random.split(key, 64))

    def conv_w(cin, cout):
        return 0.02 * jax.random.normal(next(keys), (cout, cin, 4, 4), jnp.float32)

    def convt_w(cin, cout):
        return 0.02 * jax.random.normal(next(keys), (cin, cout, 4, 4), jnp.float32)

    def block(outer_nc, inner_nc, in_nc=None, sub=None, outermost=False, innermost=False):
        if in_nc is None:
            in_nc = outer_nc
        p = {"outermost": outermost, "innermost": innermost, "sub": sub}
        p["down_w"] = conv_w(in_nc, inner_nc)           # bias=False (BatchNorm norm_layer)
        p["down_bn"] = (
            None if (outermost or innermost)
            else (jnp.ones((inner_nc,), jnp.float32), jnp.zeros((inner_nc,), jnp.float32)))
        up_in = inner_nc if innermost else inner_nc * 2
        p["up_w"] = convt_w(up_in, outer_nc)
        p["up_b"] = (0.02 * jax.random.normal(next(keys), (outer_nc,), jnp.float32)
                     if outermost else None)             # bias only on outermost upconv
        p["up_bn"] = (
            None if outermost
            else (jnp.ones((outer_nc,), jnp.float32), jnp.zeros((outer_nc,), jnp.float32)))
        return p

    blk = block(ngf * 8, ngf * 8, innermost=True)
    for _ in range(num_downs - 5):
        blk = block(ngf * 8, ngf * 8, sub=blk)
    blk = block(ngf * 4, ngf * 8, sub=blk)
    blk = block(ngf * 2, ngf * 4, sub=blk)
    blk = block(ngf, ngf * 2, sub=blk)
    blk = block(output_nc, ngf, in_nc=input_nc, sub=blk, outermost=True)
    return blk


def block_forward(p, x):
    # --- down: (LeakyReLU fused into conv) -> Conv -> (BN with fused stats) ---
    pre = None if p["outermost"] else "lrelu"
    need_bn = p["down_bn"] is not None
    h, st = conv2d_k4s2p1(x, p["down_w"], pre_act=pre, emit_stats=need_bn)
    if need_bn:
        h = batchnorm_from_stats(h, st, *p["down_bn"])
    # --- submodule ---
    if p["sub"] is not None:
        h = block_forward(p["sub"], h)
    # --- up: ReLU (fused) -> ConvTranspose -> (BN with fused stats) ---
    need_bn = p["up_bn"] is not None
    h, st = convtranspose2d_k4s2p1(h, p["up_w"], b=p["up_b"], pre_act="relu",
                                   emit_stats=need_bn)
    if need_bn:
        h = batchnorm_from_stats(h, st, *p["up_bn"])
    if p["outermost"]:
        return h
    return jnp.concatenate([x, h.astype(x.dtype)], axis=-1)   # skip connection (lanes)


def unet_forward(params, x_nchw):
    x = jnp.transpose(x_nchw, (0, 2, 3, 1)).astype(jnp.bfloat16)  # NCHW -> NHWC bf16 once
    y = block_forward(params, x)
    return jnp.transpose(y, (0, 3, 1, 2)).astype(jnp.float32)     # back to NCHW f32 at exit


# -----------------------------------------------------------------------------
if __name__ == "__main__":
    INPUT_NC, OUTPUT_NC, NGF, NUM_DOWNS = 3, 3, 8, 5   # small synthetic config
    key = jax.random.PRNGKey(0)
    pkey, xkey = jax.random.split(key)
    params = build_unet_params(pkey, INPUT_NC, OUTPUT_NC, NGF, NUM_DOWNS)

    # spatial 32 so that num_downs=5 bottoms out at 1x1 (like 256 with 8 downs)
    x = jax.random.normal(xkey, (2, INPUT_NC, 32, 32), jnp.float32)

    fwd = jax.jit(lambda inp: unet_forward(params, inp))
    y = fwd(x)
    jax.block_until_ready(y)
    assert y.shape == (2, OUTPUT_NC, 32, 32), y.shape
    assert y.dtype == jnp.float32
    assert bool(jnp.all(jnp.isfinite(y)))
    print("KERNEL_OK")
</pallas_src>

<mosaic_0001>
module attributes {stable_mosaic.version = 11 : i64} {
  func.func @_mm_kernel(%arg0: i32, %arg1: i32, %arg2: i32, %arg3: memref<512x48xbf16, #tpu.memory_space<vmem>>, %arg4: memref<48x8xbf16, #tpu.memory_space<vmem>>, %arg5: memref<512x8xbf16, #tpu.memory_space<vmem>>, %arg6: memref<512x8xf32, #tpu.memory_space<vmem>>) attributes {dimension_semantics = [#tpu.dimension_semantics<parallel>, #tpu.dimension_semantics<parallel>, #tpu.dimension_semantics<arbitrary>], iteration_bounds = array<i64: 1, 1, 1>, scalar_prefetch = 0 : i64, scratch_operands = 1 : i64, tpu.core_type = #tpu.core_type<tc>, window_params = [{transform_indices = @transform_0, window_bounds = array<i64: 512, 48>}, {transform_indices = @transform_1, window_bounds = array<i64: 48, 8>}, {transform_indices = @transform_2, window_bounds = array<i64: 512, 8>}]} {
    %c0_i32 = arith.constant 0 : i32
    %0 = arith.cmpi eq, %arg2, %c0_i32 : i32
    %1 = arith.extui %0 : i1 to i32
    %c0_i32_0 = arith.constant 0 : i32
    %2 = arith.cmpi ne, %1, %c0_i32_0 : i32
    scf.if %2 {
      %cst_10 = arith.constant 0.000000e+00 : f32
      %12 = vector.broadcast %cst_10 : f32 to vector<512x8xf32>
      %c0_11 = arith.constant 0 : index
      %c0_12 = arith.constant 0 : index
      %13 = vector.load %arg6[%c0_11, %c0_12] : memref<512x8xf32, #tpu.memory_space<vmem>>, vector<512x8xf32>
      tpu.vector_store %arg6[%c0_11, %c0_12], %12 {strides = array<i32>} : memref<512x8xf32, #tpu.memory_space<vmem>>, vector<512x8xf32>,
    } else {
    }
    %c0 = arith.constant 0 : index
    %c0_1 = arith.constant 0 : index
    %3 = vector.load %arg3[%c0, %c0_1] : memref<512x48xbf16, #tpu.memory_space<vmem>>, vector<512x48xbf16>
    %c0_2 = arith.constant 0 : index
    %c0_3 = arith.constant 0 : index
    %4 = vector.load %arg6[%c0_2, %c0_3] : memref<512x8xf32, #tpu.memory_space<vmem>>, vector<512x8xf32>
    %c0_4 = arith.constant 0 : index
    %c0_5 = arith.constant 0 : index
    %5 = vector.load %arg4[%c0_4, %c0_5] : memref<48x8xbf16, #tpu.memory_space<vmem>>, vector<48x8xbf16>
    %cst = arith.constant dense<0.000000e+00> : vector<512x8xf32>
    %6 = tpu.matmul %3, %5, %cst {dimension_numbers = #tpu.dot_dimension_numbers<[1], [0], [0], [1], [0, 0, 1, 1], [], []>} : vector<512x48xbf16>, vector<48x8xbf16>, vector<512x8xf32> -> vector<512x8xf32>
    %7 = arith.addf %4, %6 : vector<512x8xf32>
    %c0_6 = arith.constant 0 : index
    %c0_7 = arith.constant 0 : index
    %8 = vector.load %arg6[%c0_6, %c0_7] : memref<512x8xf32, #tpu.memory_space<vmem>>, vector<512x8xf32>
    tpu.vector_store %arg6[%c0_6, %c0_7], %7 {strides = array<i32>} : memref<512x8xf32, #tpu.memory_space<vmem>>, vector<512x8xf32>,
    %c0_i32_8 = arith.constant 0 : i32
    %9 = arith.cmpi eq, %arg2, %c0_i32_8 : i32
    %10 = arith.extui %9 : i1 to i32
    %c0_i32_9 = arith.constant 0 : i32
    %11 = arith.cmpi ne, %10, %c0_i32_9 : i32
    scf.if %11 {
      %c0_10 = arith.constant 0 : index
      %c0_11 = arith.constant 0 : index
      %12 = vector.load %arg6[%c0_10, %c0_11] : memref<512x8xf32, #tpu.memory_space<vmem>>, vector<512x8xf32>
      %13 = arith.truncf %12 : vector<512x8xf32> to vector<512x8xbf16>
      %c0_12 = arith.constant 0 : index
      %c0_13 = arith.constant 0 : index
      %14 = vector.load %arg5[%c0_12, %c0_13] : memref<512x8xbf16, #tpu.memory_space<vmem>>, vector<512x8xbf16>
      tpu.vector_store %arg5[%c0_12, %c0_13], %13 {strides = array<i32>} : memref<512x8xbf16, #tpu.memory_space<vmem>>, vector<512x8xbf16>,
    } else {
    }
    return
  }
  func.func @transform_0(%arg0: i32, %arg1: i32, %arg2: i32) -> (i32, i32) {
    %c0_i32 = arith.constant 0 : i32
    return %arg1, %arg2 : i32, i32
  }
  func.func @transform_1(%arg0: i32, %arg1: i32, %arg2: i32) -> (i32, i32) {
    %c0_i32 = arith.constant 0 : i32
    return %arg2, %arg0 : i32, i32
  }
  func.func @transform_2(%arg0: i32, %arg1: i32, %arg2: i32) -> (i32, i32) {
    %c0_i32 = arith.constant 0 : i32
    return %arg1, %arg0 : i32, i32
  }
}

module attributes {stable_mosaic.version = 11 : i64} {
  func.func @_mm_stats_kernel(%arg0: i32, %arg1: i32, %arg2: i32, %arg3: memref<128x128xbf16, #tpu.memory_space<vmem>>, %arg4: memref<128x16xbf16, #tpu.memory_space<vmem>>, %arg5: memref<128x16xbf16, #tpu.memory_space<vmem>>, %arg6: memref<2x16xf32, #tpu.memory_space<vmem>>, %arg7: memref<128x16xf32, #tpu.memory_space<vmem>>) attributes {dimension_semantics = [#tpu.dimension_semantics<parallel>, #tpu.dimension_semantics<arbitrary>, #tpu.dimension_semantics<arbitrary>], iteration_bounds = array<i64: 1, 1, 1>, scalar_prefetch = 0 : i64, scratch_operands = 1 : i64, tpu.core_type = #tpu.core_type<tc>, window_params = [{transform_indices = @transform_0, window_bounds = array<i64: 128, 128>}, {transform_indices = @transform_1, window_bounds = array<i64: 128, 16>}, {transform_indices = @transform_2, window_bounds = array<i64: 128, 16>}, {transform_indices = @transform_3, window_bounds = array<i64: 2, 16>}]} {
    %c0_i32 = arith.constant 0 : i32
    %0 = arith.cmpi eq, %arg2, %c0_i32 : i32
    %1 = arith.extui %0 : i1 to i32
    %c0_i32_0 = arith.constant 0 : i32
    %2 = arith.cmpi ne, %1, %c0_i32_0 : i32
    scf.if %2 {
      %cst_15 = arith.constant 0.000000e+00 : f32
      %22 = vector.broadcast %cst_15 : f32 to vector<128x16xf32>
      %c0_16 = arith.constant 0 : index
      %c0_17 = arith.constant 0 : index
      %23 = vector.load %arg7[%c0_16, %c0_17] : memref<128x16xf32, #tpu.memory_space<vmem>>, vector<128x16xf32>
      tpu.vector_store %arg7[%c0_16, %c0_17], %22 {strides = array<i32>} : memref<128x16xf32, #tpu.memory_space<vmem>>, vector<128x16xf32>,
    } else {
    }
    %c0_i32_1 = arith.constant 0 : i32
    %3 = arith.cmpi eq, %arg1, %c0_i32_1 : i32
    %c0_i32_2 = arith.constant 0 : i32
    %4 = arith.cmpi eq, %arg2, %c0_i32_2 : i32
    %5 = arith.andi %3, %4 : i1
    %6 = arith.extui %5 : i1 to i32
    %c0_i32_3 = arith.constant 0 : i32
    %7 = arith.cmpi ne, %6, %c0_i32_3 : i32
    scf.if %7 {
      %cst_15 = arith.constant 0.000000e+00 : f32
      %22 = vector.broadcast %cst_15 : f32 to vector<2x16xf32>
      %c0_16 = arith.constant 0 : index
      %c0_17 = arith.constant 0 : index
      %23 = vector.load %arg6[%c0_16, %c0_17] : memref<2x16xf32, #tpu.memory_space<vmem>>, vector<2x16xf32>
      tpu.vector_store %arg6[%c0_16, %c0_17], %22 {strides = array<i32>} : memref<2x16xf32, #tpu.memory_space<vmem>>, vector<2x16xf32>,
    } else {
    }
    %c0 = arith.constant 0 : index
    %c0_4 = arith.constant 0 : index
    %8 = vector.load %arg3[%c0, %c0_4] : memref<128x128xbf16, #tpu.memory_space<vmem>>, vector<128x128xbf16>
    %cst = arith.constant 0.000000e+00 : bf16
    %9 = vector.broadcast %cst : bf16 to vector<128x128xbf16>
    %10 = arith.cmpf ogt, %8, %9 : vector<128x128xbf16>
    %cst_5 = arith.constant 2.001950e-01 : bf16
    %11 = vector.broadcast %cst_5 : bf16 to vector<128x128xbf16>
    %12 = arith.mulf %11, %8 : vector<128x128xbf16>
    %13 = arith.select %10, %8, %12 : vector<128x128xi1>, vector<128x128xbf16>
    %c0_6 = arith.constant 0 : index
    %c0_7 = arith.constant 0 : index
    %14 = vector.load %arg7[%c0_6, %c0_7] : memref<128x16xf32, #tpu.memory_space<vmem>>, vector<128x16xf32>
    %c0_8 = arith.constant 0 : index
    %c0_9 = arith.constant 0 : index
    %15 = vector.load %arg4[%c0_8, %c0_9] : memref<128x16xbf16, #tpu.memory_space<vmem>>, vector<128x16xbf16>
    %cst_10 = arith.constant dense<0.000000e+00> : vector<128x16xf32>
    %16 = tpu.matmul %13, %15, %cst_10 {dimension_numbers = #tpu.dot_dimension_numbers<[1], [0], [0], [1], [0, 0, 1, 1], [], []>} : vector<128x128xbf16>, vector<128x16xbf16>, vector<128x16xf32> -> vector<128x16xf32>
    %17 = arith.addf %14, %16 : vector<128x16xf32>
    %c0_11 = arith.constant 0 : index
    %c0_12 = arith.constant 0 : index
    %18 = vector.load %arg7[%c0_11, %c0_12] : memref<128x16xf32, #tpu.memory_space<vmem>>, vector<128x16xf32>
    tpu.vector_store %arg7[%c0_11, %c0_12], %17 {strides = array<i32>} : memref<128x16xf32, #tpu.memory_space<vmem>>, vector<128x16xf32>,
    %c0_i32_13 = arith.constant 0 : i32
    %19 = arith.cmpi eq, %arg2, %c0_i32_13 : i32
    %20 = arith.extui %19 : i1 to i32
    %c0_i32_14 = arith.constant 0 : i32
    %21 = arith.cmpi ne, %20, %c0_i32_14 : i32
    scf.if %21 {
      %c0_15 = arith.constant 0 : index
      %c0_16 = arith.constant 0 : index
      %22 = vector.load %arg7[%c0_15, %c0_16] : memref<128x16xf32, #tpu.memory_space<vmem>>, vector<128x16xf32>
      %23 = arith.truncf %22 : vector<128x16xf32> to vector<128x16xbf16>
      %c0_17 = arith.constant 0 : index
      %c0_18 = arith.constant 0 : index
      %24 = vector.load %arg5[%c0_17, %c0_18] : memref<128x16xbf16, #tpu.memory_space<vmem>>, vector<128x16xbf16>
      tpu.vector_store %arg5[%c0_17, %c0_18], %23 {strides = array<i32>} : memref<128x16xbf16, #tpu.memory_space<vmem>>, vector<128x16xbf16>,
      %c0_19 = arith.constant 0 : index
      %c0_20 = arith.constant 0 : index
      %25 = vector.load %arg6[%c0_19, %c0_20] : memref<2x16xf32, #tpu.memory_space<vmem>>, vector<2x16xf32>
      %cst_21 = arith.constant dense<0.000000e+00> : vector<16xf32>
      %26 = vector.multi_reduction <add>, %22, %cst_21 [0] : vector<128x16xf32> to vector<16xf32>
      %27 = vector.shape_cast %26 : vector<16xf32> to vector<1x16xf32>
      %28 = arith.mulf %22, %22 : vector<128x16xf32>
      %cst_22 = arith.constant dense<0.000000e+00> : vector<16xf32>
      %29 = vector.multi_reduction <add>, %28, %cst_22 [0] : vector<128x16xf32> to vector<16xf32>
      %30 = vector.shape_cast %29 : vector<16xf32> to vector<1x16xf32>
      %31 = tpu.concatenate %27, %30 in 0 : vector<1x16xf32>, vector<1x16xf32> -> vector<2x16xf32>
      %32 = arith.addf %25, %31 : vector<2x16xf32>
      %c0_23 = arith.constant 0 : index
      %c0_24 = arith.constant 0 : index
      %33 = vector.load %arg6[%c0_23, %c0_24] : memref<2x16xf32, #tpu.memory_space<vmem>>, vector<2x16xf32>
      tpu.vector_store %arg6[%c0_23, %c0_24], %32 {strides = array<i32>} : memref<2x16xf32, #tpu.memory_space<vmem>>, vector<2x16xf32>,
    } else {
    }
    return
  }
  func.func @transform_0(%arg0: i32, %arg1: i32, %arg2: i32) -> (i32, i32) {
    %c0_i32 = arith.constant 0 : i32
    return %arg1, %arg2 : i32, i32
  }
  func.func @transform_1(%arg0: i32, %arg1: i32, %arg2: i32) -> (i32, i32) {
    %c0_i32 = arith.constant 0 : i32
    return %arg2, %arg0 : i32, i32
  }
  func.func @transform_2(%arg0: i32, %arg1: i32, %arg2: i32) -> (i32, i32) {
    %c0_i32 = arith.constant 0 : i32
    return %arg1, %arg0 : i32, i32
  }
  func.func @transform_3(%arg0: i32, %arg1: i32, %arg2: i32) -> (i32, i32) {
    %c0_i32 = arith.constant 0 : i32
    %c0_i32_0 = arith.constant 0 : i32
    return %c0_i32, %arg0 : i32, i32
  }
}

module attributes {stable_mosaic.version = 11 : i64} {
  func.func @_bn_apply_kernel(%arg0: i32, %arg1: memref<128x16xbf16, #tpu.memory_space<vmem>>, %arg2: memref<1x16xf32, #tpu.memory_space<vmem>>, %arg3: memref<1x16xf32, #tpu.memory_space<vmem>>, %arg4: memref<128x16xbf16, #tpu.memory_space<vmem>>) attributes {dimension_semantics = [#tpu.dimension_semantics<parallel>], iteration_bounds = array<i64: 1>, scalar_prefetch = 0 : i64, scratch_operands = 0 : i64, tpu.core_type = #tpu.core_type<tc>, window_params = [{transform_indices = @transform_0, window_bounds = array<i64: 128, 16>}, {pipeline_mode = #tpu.pipeline_mode<synchronous>, transform_indices = @transform_1, window_bounds = array<i64: 1, 16>}, {pipeline_mode = #tpu.pipeline_mode<synchronous>, transform_indices = @transform_2, window_bounds = array<i64: 1, 16>}, {transform_indices = @transform_3, window_bounds = array<i64: 128, 16>}]} {
    %c0 = arith.constant 0 : index
    %c0_0 = arith.constant 0 : index
    %0 = vector.load %arg1[%c0, %c0_0] : memref<128x16xbf16, #tpu.memory_space<vmem>>, vector<128x16xbf16>
    %1 = arith.extf %0 : vector<128x16xbf16> to vector<128x16xf32>
    %c0_1 = arith.constant 0 : index
    %c0_2 = arith.constant 0 : index
    %2 = vector.load %arg2[%c0_1, %c0_2] : memref<1x16xf32, #tpu.memory_space<vmem>>, vector<1x16xf32>
    %3 = vector.broadcast %2 : vector<1x16xf32> to vector<128x16xf32>
    %4 = arith.mulf %1, %3 : vector<128x16xf32>
    %c0_3 = arith.constant 0 : index
    %c0_4 = arith.constant 0 : index
    %5 = vector.load %arg3[%c0_3, %c0_4] : memref<1x16xf32, #tpu.memory_space<vmem>>, vector<1x16xf32>
    %6 = vector.broadcast %5 : vector<1x16xf32> to vector<128x16xf32>
    %7 = arith.addf %4, %6 : vector<128x16xf32>
    %8 = arith.truncf %7 : vector<128x16xf32> to vector<128x16xbf16>
    %c0_5 = arith.constant 0 : index
    %c0_6 = arith.constant 0 : index
    %9 = vector.load %arg4[%c0_5, %c0_6] : memref<128x16xbf16, #tpu.memory_space<vmem>>, vector<128x16xbf16>
    tpu.vector_store %arg4[%c0_5, %c0_6], %8 {strides = array<i32>} : memref<128x16xbf16, #tpu.memory_space<vmem>>, vector<128x16xbf16>,
    return
  }
  func.func @transform_0(%arg0: i32) -> (i32, i32) {
    %c0_i32 = arith.constant 0 : i32
    %c0_i32_0 = arith.constant 0 : i32
    return %arg0, %c0_i32 : i32, i32
  }
  func.func @transform_1(%arg0: i32) -> (i32, i32) {
    %c0_i32 = arith.constant 0 : i32
    %c0_i32_0 = arith.constant 0 : i32
    %c0_i32_1 = arith.constant 0 : i32
    return %c0_i32, %c0_i32_0 : i32, i32
  }
  func.func @transform_2(%arg0: i32) -> (i32, i32) {
    %c0_i32 = arith.constant 0 : i32
    %c0_i32_0 = arith.constant 0 : i32
    %c0_i32_1 = arith.constant 0 : i32
    return %c0_i32, %c0_i32_0 : i32, i32
  }
  func.func @transform_3(%arg0: i32) -> (i32, i32) {
    %c0_i32 = arith.constant 0 : i32
    %c0_i32_0 = arith.constant 0 : i32
    return %arg0, %c0_i32 : i32, i32
  }
}

module attributes {stable_mosaic.version = 11 : i64} {
  func.func @_mm_stats_kernel(%arg0: i32, %arg1: i32, %arg2: i32, %arg3: memref<128x288xbf16, #tpu.memory_space<vmem>>, %arg4: memref<288x32xbf16, #tpu.memory_space<vmem>>, %arg5: memref<128x32xbf16, #tpu.memory_space<vmem>>, %arg6: memref<2x32xf32, #tpu.memory_space<vmem>>, %arg7: memref<128x32xf32, #tpu.memory_space<vmem>>) attributes {dimension_semantics = [#tpu.dimension_semantics<parallel>, #tpu.dimension_semantics<arbitrary>, #tpu.dimension_semantics<arbitrary>], iteration_bounds = array<i64: 1, 1, 1>, scalar_prefetch = 0 : i64, scratch_operands = 1 : i64, tpu.core_type = #tpu.core_type<tc>, window_params = [{transform_indices = @transform_0, window_bounds = array<i64: 128, 288>}, {transform_indices = @transform_1, window_bounds = array<i64: 288, 32>}, {transform_indices = @transform_2, window_bounds = array<i64: 128, 32>}, {transform_indices = @transform_3, window_bounds = array<i64: 2, 32>}]} {
    %c0_i32 = arith.constant 0 : i32
    %0 = arith.cmpi eq, %arg2, %c0_i32 : i32
    %1 = arith.extui %0 : i1 to i32
    %c0_i32_0 = arith.constant 0 : i32
    %2 = arith.cmpi ne, %1, %c0_i32_0 : i32
    scf.if %2 {
      %cst_14 = arith.constant 0.000000e+00 : f32
      %19 = vector.broadcast %cst_14 : f32 to vector<128x32xf32>
      %c0_15 = arith.constant 0 : index
      %c0_16 = arith.constant 0 : index
      %20 = vector.load %arg7[%c0_15, %c0_16] : memref<128x32xf32, #tpu.memory_space<vmem>>, vector<128x32xf32>
      tpu.vector_store %arg7[%c0_15, %c0_16], %19 {strides = array<i32>} : memref<128x32xf32, #tpu.memory_space<vmem>>, vector<128x32xf32>,
    } else {
    }
    %c0_i32_1 = arith.constant 0 : i32
    %3 = arith.cmpi eq, %arg1, %c0_i32_1 : i32
    %c0_i32_2 = arith.constant 0 : i32
    %4 = arith.cmpi eq, %arg2, %c0_i32_2 : i32
    %5 = arith.andi %3, %4 : i1
    %6 = arith.extui %5 : i1 to i32
    %c0_i32_3 = arith.constant 0 : i32
    %7 = arith.cmpi ne, %6, %c0_i32_3 : i32
    scf.if %7 {
      %cst_14 = arith.constant 0.000000e+00 : f32
      %19 = vector.broadcast %cst_14 : f32 to vector<2x32xf32>
      %c0_15 = arith.constant 0 : index
      %c0_16 = arith.constant 0 : index
      %20 = vector.load %arg6[%c0_15, %c0_16] : memref<2x32xf32, #tpu.memory_space<vmem>>, vector<2x32xf32>
      tpu.vector_store %arg6[%c0_15, %c0_16], %19 {strides = array<i32>} : memref<2x32xf32, #tpu.memory_space<vmem>>, vector<2x32xf32>,
    } else {
    }
    %c0 = arith.constant 0 : index
    %c0_4 = arith.constant 0 : index
    %8 = vector.load %arg3[%c0, %c0_4] : memref<128x288xbf16, #tpu.memory_space<vmem>>, vector<128x288xbf16>
    %cst = arith.constant 0.000000e+00 : bf16
    %9 = vector.broadcast %cst : bf16 to vector<128x288xbf16>
    %10 = arith.maximumf %8, %9 : vector<128x288xbf16>
    %c0_5 = arith.constant 0 : index
    %c0_6 = arith.constant 0 : index
    %11 = vector.load %arg7[%c0_5, %c0_6] : memref<128x32xf32, #tpu.memory_space<vmem>>, vector<128x32xf32>
    %c0_7 = arith.constant 0 : index
    %c0_8 = arith.constant 0 : index
    %12 = vector.load %arg4[%c0_7, %c0_8] : memref<288x32xbf16, #tpu.memory_space<vmem>>, vector<288x32xbf16>
    %cst_9 = arith.constant dense<0.000000e+00> : vector<128x32xf32>
    %13 = tpu.matmul %10, %12, %cst_9 {dimension_numbers = #tpu.dot_dimension_numbers<[1], [0], [0], [1], [0, 0, 1, 1], [], []>} : vector<128x288xbf16>, vector<288x32xbf16>, vector<128x32xf32> -> vector<128x32xf32>
    %14 = arith.addf %11, %13 : vector<128x32xf32>
    %c0_10 = arith.constant 0 : index
    %c0_11 = arith.constant 0 : index
    %15 = vector.load %arg7[%c0_10, %c0_11] : memref<128x32xf32, #tpu.memory_space<vmem>>, vector<128x32xf32>
    tpu.vector_store %arg7[%c0_10, %c0_11], %14 {strides = array<i32>} : memref<128x32xf32, #tpu.memory_space<vmem>>, vector<128x32xf32>,
    %c0_i32_12 = arith.constant 0 : i32
    %16 = arith.cmpi eq, %arg2, %c0_i32_12 : i32
    %17 = arith.extui %16 : i1 to i32
    %c0_i32_13 = arith.constant 0 : i32
    %18 = arith.cmpi ne, %17, %c0_i32_13 : i32
    scf.if %18 {
      %c0_14 = arith.constant 0 : index
      %c0_15 = arith.constant 0 : index
      %19 = vector.load %arg7[%c0_14, %c0_15] : memref<128x32xf32, #tpu.memory_space<vmem>>, vector<128x32xf32>
      %20 = arith.truncf %19 : vector<128x32xf32> to vector<128x32xbf16>
      %c0_16 = arith.constant 0 : index
      %c0_17 = arith.constant 0 : index
      %21 = vector.load %arg5[%c0_16, %c0_17] : memref<128x32xbf16, #tpu.memory_space<vmem>>, vector<128x32xbf16>
      tpu.vector_store %arg5[%c0_16, %c0_17], %20 {strides = array<i32>} : memref<128x32xbf16, #tpu.memory_space<vmem>>, vector<128x32xbf16>,
      %c0_18 = arith.constant 0 : index
      %c0_19 = arith.constant 0 : index
      %22 = vector.load %arg6[%c0_18, %c0_19] : memref<2x32xf32, #tpu.memory_space<vmem>>, vector<2x32xf32>
      %cst_20 = arith.constant dense<0.000000e+00> : vector<32xf32>
      %23 = vector.multi_reduction <add>, %19, %cst_20 [0] : vector<128x32xf32> to vector<32xf32>
      %24 = vector.shape_cast %23 : vector<32xf32> to vector<1x32xf32>
      %25 = arith.mulf %19, %19 : vector<128x32xf32>
      %cst_21 = arith.constant dense<0.000000e+00> : vector<32xf32>
      %26 = vector.multi_reduction <add>, %25, %cst_21 [0] : vector<128x32xf32> to vector<32xf32>
      %27 = vector.shape_cast %26 : vector<32xf32> to vector<1x32xf32>
      %28 = tpu.concatenate %24, %27 in 0 : vector<1x32xf32>, vector<1x32xf32> -> vector<2x32xf32>
      %29 = arith.addf %22, %28 : vector<2x32xf32>
      %c0_22 = arith.constant 0 : index
      %c0_23 = arith.constant 0 : index
      %30 = vector.load %arg6[%c0_22, %c0_23] : memref<2x32xf32, #tpu.memory_space<vmem>>, vector<2x32xf32>
      tpu.vector_store %arg6[%c0_22, %c0_23], %29 {strides = array<i32>} : memref<2x32xf32, #tpu.memory_space<vmem>>, vector<2x32xf32>,
    } else {
    }
    return
  }
  func.func @transform_0(%arg0: i32, %arg1: i32, %arg2: i32) -> (i32, i32) {
    %c0_i32 = arith.constant 0 : i32
    return %arg1, %arg2 : i32, i32
  }
  func.func @transform_1(%arg0: i32, %arg1: i32, %arg2: i32) -> (i32, i32) {
    %c0_i32 = arith.constant 0 : i32
    return %arg2, %arg0 : i32, i32
  }
  func.func @transform_2(%arg0: i32, %arg1: i32, %arg2: i32) -> (i32, i32) {
    %c0_i32 = arith.constant 0 : i32
    return %arg1, %arg0 : i32, i32
  }
  func.func @transform_3(%arg0: i32, %arg1: i32, %arg2: i32) -> (i32, i32) {
    %c0_i32 = arith.constant 0 : i32
    %c0_i32_0 = arith.constant 0 : i32
    return %c0_i32, %arg0 : i32, i32
  }
}

module attributes {stable_mosaic.version = 11 : i64} {
  func.func @_bn_apply_kernel(%arg0: i32, %arg1: memref<512x8xbf16, #tpu.memory_space<vmem>>, %arg2: memref<1x8xf32, #tpu.memory_space<vmem>>, %arg3: memref<1x8xf32, #tpu.memory_space<vmem>>, %arg4: memref<512x8xbf16, #tpu.memory_space<vmem>>) attributes {dimension_semantics = [#tpu.dimension_semantics<parallel>], iteration_bounds = array<i64: 1>, scalar_prefetch = 0 : i64, scratch_operands = 0 : i64, tpu.core_type = #tpu.core_type<tc>, window_params = [{transform_indices = @transform_0, window_bounds = array<i64: 512, 8>}, {pipeline_mode = #tpu.pipeline_mode<synchronous>, transform_indices = @transform_1, window_bounds = array<i64: 1, 8>}, {pipeline_mode = #tpu.pipeline_mode<synchronous>, transform_indices = @transform_2, window_bounds = array<i64: 1, 8>}, {transform_indices = @transform_3, window_bounds = array<i64: 512, 8>}]} {
    %c0 = arith.constant 0 : index
    %c0_0 = arith.constant 0 : index
    %0 = vector.load %arg1[%c0, %c0_0] : memref<512x8xbf16, #tpu.memory_space<vmem>>, vector<512x8xbf16>
    %1 = arith.extf %0 : vector<512x8xbf16> to vector<512x8xf32>
    %c0_1 = arith.constant 0 : index
    %c0_2 = arith.constant 0 : index
    %2 = vector.load %arg2[%c0_1, %c0_2] : memref<1x8xf32, #tpu.memory_space<vmem>>, vector<1x8xf32>
    %3 = vector.broadcast %2 : vector<1x8xf32> to vector<512x8xf32>
    %4 = arith.mulf %1, %3 : vector<512x8xf32>
    %c0_3 = arith.constant 0 : index
    %c0_4 = arith.constant 0 : index
    %5 = vector.load %arg3[%c0_3, %c0_4] : memref<1x8xf32, #tpu.memory_space<vmem>>, vector<1x8xf32>
    %6 = vector.broadcast %5 : vector<1x8xf32> to vector<512x8xf32>
    %7 = arith.addf %4, %6 : vector<512x8xf32>
    %8 = arith.truncf %7 : vector<512x8xf32> to vector<512x8xbf16>
    %c0_5 = arith.constant 0 : index
    %c0_6 = arith.constant 0 : index
    %9 = vector.load %arg4[%c0_5, %c0_6] : memref<512x8xbf16, #tpu.memory_space<vmem>>, vector<512x8xbf16>
    tpu.vector_store %arg4[%c0_5, %c0_6], %8 {strides = array<i32>} : memref<512x8xbf16, #tpu.memory_space<vmem>>, vector<512x8xbf16>,
    return
  }
  func.func @transform_0(%arg0: i32) -> (i32, i32) {
    %c0_i32 = arith.constant 0 : i32
    %c0_i32_0 = arith.constant 0 : i32
    return %arg0, %c0_i32 : i32, i32
  }
  func.func @transform_1(%arg0: i32) -> (i32, i32) {
    %c0_i32 = arith.constant 0 : i32
    %c0_i32_0 = arith.constant 0 : i32
    %c0_i32_1 = arith.constant 0 : i32
    return %c0_i32, %c0_i32_0 : i32, i32
  }
  func.func @transform_2(%arg0: i32) -> (i32, i32) {
    %c0_i32 = arith.constant 0 : i32
    %c0_i32_0 = arith.constant 0 : i32
    %c0_i32_1 = arith.constant 0 : i32
    return %c0_i32, %c0_i32_0 : i32, i32
  }
  func.func @transform_3(%arg0: i32) -> (i32, i32) {
    %c0_i32 = arith.constant 0 : i32
    %c0_i32_0 = arith.constant 0 : i32
    return %arg0, %c0_i32 : i32, i32
  }
}

module attributes {stable_mosaic.version = 11 : i64} {
  func.func @_mm_kernel(%arg0: i32, %arg1: i32, %arg2: i32, %arg3: memref<512x144xbf16, #tpu.memory_space<vmem>>, %arg4: memref<144x12xbf16, #tpu.memory_space<vmem>>, %arg5: memref<512x12xbf16, #tpu.memory_space<vmem>>, %arg6: memref<512x12xf32, #tpu.memory_space<vmem>>) attributes {dimension_semantics = [#tpu.dimension_semantics<parallel>, #tpu.dimension_semantics<parallel>, #tpu.dimension_semantics<arbitrary>], iteration_bounds = array<i64: 1, 1, 1>, scalar_prefetch = 0 : i64, scratch_operands = 1 : i64, tpu.core_type = #tpu.core_type<tc>, window_params = [{transform_indices = @transform_0, window_bounds = array<i64: 512, 144>}, {transform_indices = @transform_1, window_bounds = array<i64: 144, 12>}, {transform_indices = @transform_2, window_bounds = array<i64: 512, 12>}]} {
    %c0_i32 = arith.constant 0 : i32
    %0 = arith.cmpi eq, %arg2, %c0_i32 : i32
    %1 = arith.extui %0 : i1 to i32
    %c0_i32_0 = arith.constant 0 : i32
    %2 = arith.cmpi ne, %1, %c0_i32_0 : i32
    scf.if %2 {
      %cst_11 = arith.constant 0.000000e+00 : f32
      %14 = vector.broadcast %cst_11 : f32 to vector<512x12xf32>
      %c0_12 = arith.constant 0 : index
      %c0_13 = arith.constant 0 : index
      %15 = vector.load %arg6[%c0_12, %c0_13] : memref<512x12xf32, #tpu.memory_space<vmem>>, vector<512x12xf32>
      tpu.vector_store %arg6[%c0_12, %c0_13], %14 {strides = array<i32>} : memref<512x12xf32, #tpu.memory_space<vmem>>, vector<512x12xf32>,
    } else {
    }
    %c0 = arith.constant 0 : index
    %c0_1 = arith.constant 0 : index
    %3 = vector.load %arg3[%c0, %c0_1] : memref<512x144xbf16, #tpu.memory_space<vmem>>, vector<512x144xbf16>
    %cst = arith.constant 0.000000e+00 : bf16
    %4 = vector.broadcast %cst : bf16 to vector<512x144xbf16>
    %5 = arith.maximumf %3, %4 : vector<512x144xbf16>
    %c0_2 = arith.constant 0 : index
    %c0_3 = arith.constant 0 : index
    %6 = vector.load %arg6[%c0_2, %c0_3] : memref<512x12xf32, #tpu.memory_space<vmem>>, vector<512x12xf32>
    %c0_4 = arith.constant 0 : index
    %c0_5 = arith.constant 0 : index
    %7 = vector.load %arg4[%c0_4, %c0_5] : memref<144x12xbf16, #tpu.memory_space<vmem>>, vector<144x12xbf16>
    %cst_6 = arith.constant dense<0.000000e+00> : vector<512x12xf32>
    %8 = tpu.matmul %5, %7, %cst_6 {dimension_numbers = #tpu.dot_dimension_numbers<[1], [0], [0], [1], [0, 0, 1, 1], [], []>} : vector<512x144xbf16>, vector<144x12xbf16>, vector<512x12xf32> -> vector<512x12xf32>
    %9 = arith.addf %6, %8 : vector<512x12xf32>
    %c0_7 = arith.constant 0 : index
    %c0_8 = arith.constant 0 : index
    %10 = vector.load %arg6[%c0_7, %c0_8] : memref<512x12xf32, #tpu.memory_space<vmem>>, vector<512x12xf32>
    tpu.vector_store %arg6[%c0_7, %c0_8], %9 {strides = array<i32>} : memref<512x12xf32, #tpu.memory_space<vmem>>, vector<512x12xf32>,
    %c0_i32_9 = arith.constant 0 : i32
    %11 = arith.cmpi eq, %arg2, %c0_i32_9 : i32
    %12 = arith.extui %11 : i1 to i32
    %c0_i32_10 = arith.constant 0 : i32
    %13 = arith.cmpi ne, %12, %c0_i32_10 : i32
    scf.if %13 {
      %c0_11 = arith.constant 0 : index
      %c0_12 = arith.constant 0 : index
      %14 = vector.load %arg6[%c0_11, %c0_12] : memref<512x12xf32, #tpu.memory_space<vmem>>, vector<512x12xf32>
      %15 = arith.truncf %14 : vector<512x12xf32> to vector<512x12xbf16>
      %c0_13 = arith.constant 0 : index
      %c0_14 = arith.constant 0 : index
      %16 = vector.load %arg5[%c0_13, %c0_14] : memref<512x12xbf16, #tpu.memory_space<vmem>>, vector<512x12xbf16>
      tpu.vector_store %arg5[%c0_13, %c0_14], %15 {strides = array<i32>} : memref<512x12xbf16, #tpu.memory_space<vmem>>, vector<512x12xbf16>,
    } else {
    }
    return
  }
  func.func @transform_0(%arg0: i32, %arg1: i32, %arg2: i32) -> (i32, i32) {
    %c0_i32 = arith.constant 0 : i32
    return %arg1, %arg2 : i32, i32
  }
  func.func @transform_1(%arg0: i32, %arg1: i32, %arg2: i32) -> (i32, i32) {
    %c0_i32 = arith.constant 0 : i32
    return %arg2, %arg0 : i32, i32
  }
  func.func @transform_2(%arg0: i32, %arg1: i32, %arg2: i32) -> (i32, i32) {
    %c0_i32 = arith.constant 0 : i32
    return %arg1, %arg0 : i32, i32
  }
}

</mosaic_0001>

<llo_original>
// kernel: _lambda_.7
$region0: #{_lambda_.7}
  #allocation0 [shape = 'u32[]', space=smem, size = 0x4, offset = 0x4, fixed_abs, tag = 'smem constant byte address 0x4 - core index']
  #allocation1 [shape = 'u32[72,128]{1,0:T(1,128)}', space=vmem, size = 0x9000, scoped, tag = 'internal scratch']
  #allocation2 [shape = 'f32[512,8]{1,0:T(8,128)}', space=vmem, size = 0x40000, scoped, tag = 'scratch operand']
  %s0 = inlined_call_operand.vmem [shape: bf16[512,48], index: 0, kind: input, shape index: {}]
  %s1 = inlined_call_operand.vmem [shape: bf16[48,8], index: 1, kind: input, shape index: {}]
  %s2 = inlined_call_operand.vmem [shape: bf16[512,8], index: 2, kind: output, shape index: {}]
  %s3 = sld [smem:[#allocation0]]
  $region26: #{_lambda_.7} parent=0
    _
  %s5 = ssub.s32 1, %s3
  %s6 = scalar_select 0, %s5, %s3
  // Predicated region
  $region2: #{_lambda_.7} parent=0 // pred_check
    _
  $region3: #{_lambda_.7} parent=0 // pred_check_branch
    %8 = sbr.rel (0) target = $region5
  $region4: #{_lambda_.7} parent=0 // pred_region
    _
  $region5: #{_lambda_.7} parent=0 // pred_fallthru
    _
  // Predicated region
  $region6: #{_lambda_.7} parent=0 // pred_check
    _
  $region7: #{_lambda_.7} parent=0 // pred_check_branch
    %10 = sbr.rel (0) target = $region9
  $region8: #{_lambda_.7} parent=0 // pred_region
    _
  $region9: #{_lambda_.7} parent=0 // pred_fallthru
    _
  %p12 = scmp.eq.s32.totalorder 0, 0
  // Predicated region
  $region10: #{_lambda_.7} parent=0 // pred_check
    %p13 = pneg %p12
  $region11: #{_lambda_.7} parent=0 // pred_check_branch
    %15 = sbr.rel (%p13) target = $region13
  $region12: #{_lambda_.7} parent=0 // pred_region
    %vm16 = vcmask 64512
    %17 = vst.msk [vmem:[#allocation2] sm:$0xff] %vm16, 0.0
    %18 = vst.msk [vmem:[#allocation2 + $0x8] sm:$0xff] %vm16, 0.0
    %19 = vst.msk [vmem:[#allocation2 + $0x10] sm:$0xff] %vm16, 0.0
    %20 = vst.msk [vmem:[#allocation2 + $0x18] sm:$0xff] %vm16, 0.0
    %21 = vst.msk [vmem:[#allocation2 + $0x20] sm:$0xff] %vm16, 0.0
    %22 = vst.msk [vmem:[#allocation2 + $0x28] sm:$0xff] %vm16, 0.0
    %23 = vst.msk [vmem:[#allocation2 + $0x30] sm:$0xff] %vm16, 0.0
    %24 = vst.msk [vmem:[#allocation2 + $0x38] sm:$0xff] %vm16, 0.0
    %25 = vst.msk [vmem:[#allocation2 + $0x40] sm:$0xff] %vm16, 0.0
    %26 = vst.msk [vmem:[#allocation2 + $0x48] sm:$0xff] %vm16, 0.0
    %27 = vst.msk [vmem:[#allocation2 + $0x50] sm:$0xff] %vm16, 0.0
    %28 = vst.msk [vmem:[#allocation2 + $0x58] sm:$0xff] %vm16, 0.0
    %29 = vst.msk [vmem:[#allocation2 + $0x60] sm:$0xff] %vm16, 0.0
    %30 = vst.msk [vmem:[#allocation2 + $0x68] sm:$0xff] %vm16, 0.0
    %31 = vst.msk [vmem:[#allocation2 + $0x70] sm:$0xff] %vm16, 0.0
    %32 = vst.msk [vmem:[#allocation2 + $0x78] sm:$0xff] %vm16, 0.0
    %33 = vst.msk [vmem:[#allocation2 + $0x80] sm:$0xff] %vm16, 0.0
    %34 = vst.msk [vmem:[#allocation2 + $0x88] sm:$0xff] %vm16, 0.0
    %35 = vst.msk [vmem:[#allocation2 + $0x90] sm:$0xff] %vm16, 0.0
    %36 = vst.msk [vmem:[#allocation2 + $0x98] sm:$0xff] %vm16, 0.0
    %37 = vst.msk [vmem:[#allocation2 + $0xa0] sm:$0xff] %vm16, 0.0
    %38 = vst.msk [vmem:[#allocation2 + $0xa8] sm:$0xff] %vm16, 0.0
    %39 = vst.msk [vmem:[#allocation2 + $0xb0] sm:$0xff] %vm16, 0.0
    %40 = vst.msk [vmem:[#allocation2 + $0xb8] sm:$0xff] %vm16, 0.0
    %41 = vst.msk [vmem:[#allocation2 + $0xc0] sm:$0xff] %vm16, 0.0
    %42 = vst.msk [vmem:[#allocation2 + $0xc8] sm:$0xff] %vm16, 0.0
    %43 = vst.msk [vmem:[#allocation2 + $0xd0] sm:$0xff] %vm16, 0.0
    %44 = vst.msk [vmem:[#allocation2 + $0xd8] sm:$0xff] %vm16, 0.0
    %45 = vst.msk [vmem:[#allocation2 + $0xe0] sm:$0xff] %vm16, 0.0
    %46 = vst.msk [vmem:[#allocation2 + $0xe8] sm:$0xff] %vm16, 0.0
    %47 = vst.msk [vmem:[#allocation2 + $0xf0] sm:$0xff] %vm16, 0.0
    %48 = vst.msk [vmem:[#allocation2 + $0xf8] sm:$0xff] %vm16, 0.0
    %49 = vst.msk [vmem:[#allocation2 + $0x100] sm:$0xff] %vm16, 0.0
    %50 = vst.msk [vmem:[#allocation2 + $0x108] sm:$0xff] %vm16, 0.0
    %51 = vst.msk [vmem:[#allocation2 + $0x110] sm:$0xff] %vm16, 0.0
    %52 = vst.msk [vmem:[#allocation2 + $0x118] sm:$0xff] %vm16, 0.0
    %53 = vst.msk [vmem:[#allocation2 + $0x120] sm:$0xff] %vm16, 0.0
    %54 = vst.msk [vmem:[#allocation2 + $0x128] sm:$0xff] %vm16, 0.0
    %55 = vst.msk [vmem:[#allocation2 + $0x130] sm:$0xff] %vm16, 0.0
    %56 = vst.msk [vmem:[#allocation2 + $0x138] sm:$0xff] %vm16, 0.0
    %57 = vst.msk [vmem:[#allocation2 + $0x140] sm:$0xff] %vm16, 0.0
    %58 = vst.msk [vmem:[#allocation2 + $0x148] sm:$0xff] %vm16, 0.0
    %59 = vst.msk [vmem:[#allocation2 + $0x150] sm:$0xff] %vm16, 0.0
    %60 = vst.msk [vmem:[#allocation2 + $0x158] sm:$0xff] %vm16, 0.0
    %61 = vst.msk [vmem:[#allocation2 + $0x160] sm:$0xff] %vm16, 0.0
    %62 = vst.msk [vmem:[#allocation2 + $0x168] sm:$0xff] %vm16, 0.0
    %63 = vst.msk [vmem:[#allocation2 + $0x170] sm:$0xff] %vm16, 0.0
    %64 = vst.msk [vmem:[#allocation2 + $0x178] sm:$0xff] %vm16, 0.0
    %65 = vst.msk [vmem:[#allocation2 + $0x180] sm:$0xff] %vm16, 0.0
    %66 = vst.msk [vmem:[#allocation2 + $0x188] sm:$0xff] %vm16, 0.0
    %67 = vst.msk [vmem:[#allocation2 + $0x190] sm:$0xff] %vm16, 0.0
    %68 = vst.msk [vmem:[#allocation2 + $0x198] sm:$0xff] %vm16, 0.0
    %69 = vst.msk [vmem:[#allocation2 + $0x1a0] sm:$0xff] %vm16, 0.0
    %70 = vst.msk [vmem:[#allocation2 + $0x1a8] sm:$0xff] %vm16, 0.0
    %71 = vst.msk [vmem:[#allocation2 + $0x1b0] sm:$0xff] %vm16, 0.0
    %72 = vst.msk [vmem:[#allocation2 + $0x1b8] sm:$0xff] %vm16, 0.0
    %73 = vst.msk [vmem:[#allocation2 + $0x1c0] sm:$0xff] %vm16, 0.0
    %74 = vst.msk [vmem:[#allocation2 + $0x1c8] sm:$0xff] %vm16, 0.0
    %75 = vst.msk [vmem:[#allocation2 + $0x1d0] sm:$0xff] %vm16, 0.0
    %76 = vst.msk [vmem:[#allocation2 + $0x1d8] sm:$0xff] %vm16, 0.0
    %77 = vst.msk [vmem:[#allocation2 + $0x1e0] sm:$0xff] %vm16, 0.0
    %78 = vst.msk [vmem:[#allocation2 + $0x1e8] sm:$0xff] %vm16, 0.0
    %79 = vst.msk [vmem:[#allocation2 + $0x1f0] sm:$0xff] %vm16, 0.0
    %80 = vst.msk [vmem:[#allocation2 + $0x1f8] sm:$0xff] %vm16, 0.0
  $region13: #{_lambda_.7} parent=0 // pred_fallthru
    _
  %v81 = vld [vmem:[%s0] sm:$0xf]
  %v82 = vld [vmem:[%s0 + $0x4] sm:$0xf]
  %v83 = vld [vmem:[%s0 + $0x8] sm:$0xf]
  %v84 = vld [vmem:[%s0 + $0xc] sm:$0xf]
  %v85 = vld [vmem:[%s0 + $0x10] sm:$0xf]
  %v86 = vld [vmem:[%s0 + $0x14] sm:$0xf]
  %v87 = vld [vmem:[%s0 + $0x18] sm:$0xf]
  %v88 = vld [vmem:[%s0 + $0x1c] sm:$0xf]
  %v89 = vld [vmem:[%s0 + $0x20] sm:$0xf]
  %v90 = vld [vmem:[%s0 + $0x24] sm:$0xf]
  %v91 = vld [vmem:[%s0 + $0x28] sm:$0xf]
  %v92 = vld [vmem:[%s0 + $0x2c] sm:$0xf]
  %v93 = vld [vmem:[%s0 + $0x30] sm:$0xf]
  %v94 = vld [vmem:[%s0 + $0x34] sm:$0xf]
  %v95 = vld [vmem:[%s0 + $0x38] sm:$0xf]
  %v96 = vld [vmem:[%s0 + $0x3c] sm:$0xf]
  %v97 = vld [vmem:[%s0 + $0x40] sm:$0xf]
  %v98 = vld [vmem:[%s0 + $0x44] sm:$0xf]
  %v99 = vld [vmem:[%s0 + $0x48] sm:$0xf]
  %v100 = vld [vmem:[%s0 + $0x4c] sm:$0xf]
  %v101 = vld [vmem:[%s0 + $0x50] sm:$0xf]
  %v102 = vld [vmem:[%s0 + $0x54] sm:$0xf]
  %v103 = vld [vmem:[%s0 + $0x58] sm:$0xf]
  %v104 = vld [vmem:[%s0 + $0x5c] sm:$0xf]
  %v105 = vld [vmem:[%s0 + $0x60] sm:$0xf]
  %v106 = vld [vmem:[%s0 + $0x64] sm:$0xf]
  %v107 = vld [vmem:[%s0 + $0x68] sm:$0xf]
  %v108 = vld [vmem:[%s0 + $0x6c] sm:$0xf]
  %v109 = vld [vmem:[%s0 + $0x70] sm:$0xf]
  %v110 = vld [vmem:[%s0 + $0x74] sm:$0xf]
  %v111 = vld [vmem:[%s0 + $0x78] sm:$0xf]
  %v112 = vld [vmem:[%s0 + $0x7c] sm:$0xf]
  %v113 = vld [vmem:[%s0 + $0x80] sm:$0xf]
  %v114 = vld [vmem:[%s0 + $0x84] sm:$0xf]
  %v115 = vld [vmem:[%s0 + $0x88] sm:$0xf]
  %v116 = vld [vmem:[%s0 + $0x8c] sm:$0xf]
  %v117 = vld [vmem:[%s0 + $0x90] sm:$0xf]
  %v118 = vld [vmem:[%s0 + $0x94] sm:$0xf]
  %v119 = vld [vmem:[%s0 + $0x98] sm:$0xf]
  %v120 = vld [vmem:[%s0 + $0x9c] sm:$0xf]
  %v121 = vld [vmem:[%s0 + $0xa0] sm:$0xf]
  %v122 = vld [vmem:[%s0 + $0xa4] sm:$0xf]
  %v123 = vld [vmem:[%s0 + $0xa8] sm:$0xf]
  %v124 = vld [vmem:[%s0 + $0xac] sm:$0xf]
  %v125 = vld [vmem:[%s0 + $0xb0] sm:$0xf]
  %v126 = vld [vmem:[%s0 + $0xb4] sm:$0xf]
  %v127 = vld [vmem:[%s0 + $0xb8] sm:$0xf]
  %v128 = vld [vmem:[%s0 + $0xbc] sm:$0xf]
  %v129 = vld [vmem:[%s0 + $0xc0] sm:$0xf]
  %v130 = vld [vmem:[%s0 + $0xc4] sm:$0xf]
  %v131 = vld [vmem:[%s0 + $0xc8] sm:$0xf]
  %v132 = vld [vmem:[%s0 + $0xcc] sm:$0xf]
  %v133 = vld [vmem:[%s0 + $0xd0] sm:$0xf]
  %v134 = vld [vmem:[%s0 + $0xd4] sm:$0xf]
  %v135 = vld [vmem:[%s0 + $0xd8] sm:$0xf]
  %v136 = vld [vmem:[%s0 + $0xdc] sm:$0xf]
  %v137 = vld [vmem:[%s0 + $0xe0] sm:$0xf]
  %v138 = vld [vmem:[%s0 + $0xe4] sm:$0xf]
  %v139 = vld [vmem:[%s0 + $0xe8] sm:$0xf]
  %v140 = vld [vmem:[%s0 + $0xec] sm:$0xf]
  %v141 = vld [vmem:[%s0 + $0xf0] sm:$0xf]
  %v142 = vld [vmem:[%s0 + $0xf4] sm:$0xf]
  %v143 = vld [vmem:[%s0 + $0xf8] sm:$0xf]
  %v144 = vld [vmem:[%s0 + $0xfc] sm:$0xf]
  %v145 = vld [vmem:[#allocation2] sm:$0xff]
  %v146 = vld [vmem:[#allocation2 + $0x8] sm:$0xff]
  %v147 = vld [vmem:[#allocation2 + $0x10] sm:$0xff]
  %v148 = vld [vmem:[#allocation2 + $0x18] sm:$0xff]
  %v149 = vld [vmem:[#allocation2 + $0x20] sm:$0xff]
  %v150 = vld [vmem:[#allocation2 + $0x28] sm:$0xff]
  %v151 = vld [vmem:[#allocation2 + $0x30] sm:$0xff]
  %v152 = vld [vmem:[#allocation2 + $0x38] sm:$0xff]
  %v153 = vld [vmem:[#allocation2 + $0x40] sm:$0xff]
  %v154 = vld [vmem:[#allocation2 + $0x48] sm:$0xff]
  %v155 = vld [vmem:[#allocation2 + $0x50] sm:$0xff]
  %v156 = vld [vmem:[#allocation2 + $0x58] sm:$0xff]
  %v157 = vld [vmem:[#allocation2 + $0x60] sm:$0xff]
  %v158 = vld [vmem:[#allocation2 + $0x68] sm:$0xff]
  %v159 = vld [vmem:[#allocation2 + $0x70] sm:$0xff]
  %v160 = vld [vmem:[#allocation2 + $0x78] sm:$0xff]
  %v161 = vld [vmem:[#allocation2 + $0x80] sm:$0xff]
  %v162 = vld [vmem:[#allocation2 + $0x88] sm:$0xff]
  %v163 = vld [vmem:[#allocation2 + $0x90] sm:$0xff]
  %v164 = vld [vmem:[#allocation2 + $0x98] sm:$0xff]
  %v165 = vld [vmem:[#allocation2 + $0xa0] sm:$0xff]
  %v166 = vld [vmem:[#allocation2 + $0xa8] sm:$0xff]
  %v167 = vld [vmem:[#allocation2 + $0xb0] sm:$0xff]
  %v168 = vld [vmem:[#allocation2 + $0xb8] sm:$0xff]
  %v169 = vld [vmem:[#allocation2 + $0xc0] sm:$0xff]
  %v170 = vld [vmem:[#allocation2 + $0xc8] sm:$0xff]
  %v171 = vld [vmem:[#allocation2 + $0xd0] sm:$0xff]
  %v172 = vld [vmem:[#allocation2 + $0xd8] sm:$0xff]
  %v173 = vld [vmem:[#allocation2 + $0xe0] sm:$0xff]
  %v174 = vld [vmem:[#allocation2 + $0xe8] sm:$0xff]
  %v175 = vld [vmem:[#allocation2 + $0xf0] sm:$0xff]
  %v176 = vld [vmem:[#allocation2 + $0xf8] sm:$0xff]
  %v177 = vld [vmem:[#allocation2 + $0x100] sm:$0xff]
  %v178 = vld [vmem:[#allocation2 + $0x108] sm:$0xff]
  %v179 = vld [vmem:[#allocation2 + $0x110] sm:$0xff]
  %v180 = vld [vmem:[#allocation2 + $0x118] sm:$0xff]
  %v181 = vld [vmem:[#allocation2 + $0x120] sm:$0xff]
  %v182 = vld [vmem:[#allocation2 + $0x128] sm:$0xff]
  %v183 = vld [vmem:[#allocation2 + $0x130] sm:$0xff]
  %v184 = vld [vmem:[#allocation2 + $0x138] sm:$0xff]
  %v185 = vld [vmem:[#allocation2 + $0x140] sm:$0xff]
  %v186 = vld [vmem:[#allocation2 + $0x148] sm:$0xff]
  %v187 = vld [vmem:[#allocation2 + $0x150] sm:$0xff]
  %v188 = vld [vmem:[#allocation2 + $0x158] sm:$0xff]
  %v189 = vld [vmem:[#allocation2 + $0x160] sm:$0xff]
  %v190 = vld [vmem:[#allocation2 + $0x168] sm:$0xff]
  %v191 = vld [vmem:[#allocation2 + $0x170] sm:$0xff]
  %v192 = vld [vmem:[#allocation2 + $0x178] sm:$0xff]
  %v193 = vld [vmem:[#allocation2 + $0x180] sm:$0xff]
  %v194 = vld [vmem:[#allocation2 + $0x188] sm:$0xff]
  %v195 = vld [vmem:[#allocation2 + $0x190] sm:$0xff]
  %v196 = vld [vmem:[#allocation2 + $0x198] sm:$0xff]
  %v197 = vld [vmem:[#allocation2 + $0x1a0] sm:$0xff]
  %v198 = vld [vmem:[#allocation2 + $0x1a8] sm:$0xff]
  %v199 = vld [vmem:[#allocation2 + $0x1b0] sm:$0xff]
  %v200 = vld [vmem:[#allocation2 + $0x1b8] sm:$0xff]
  %v201 = vld [vmem:[#allocation2 + $0x1c0] sm:$0xff]
  %v202 = vld [vmem:[#allocation2 + $0x1c8] sm:$0xff]
  %v203 = vld [vmem:[#allocation2 + $0x1d0] sm:$0xff]
  %v204 = vld [vmem:[#allocation2 + $0x1d8] sm:$0xff]
  %v205 = vld [vmem:[#allocation2 + $0x1e0] sm:$0xff]
  %v206 = vld [vmem:[#allocation2 + $0x1e8] sm:$0xff]
  %v207 = vld [vmem:[#allocation2 + $0x1f0] sm:$0xff]
  %v208 = vld [vmem:[#allocation2 + $0x1f8] sm:$0xff]
  %v209 = vld [vmem:[%s1] sm:$0xf]
  %v210 = vld [vmem:[%s1 + $0x4] sm:$0xf]
  %v211 = vld [vmem:[%s1 + $0x8] sm:$0xf]
  %v212 = vld [vmem:[%s1 + $0xc] sm:$0xf]
  %v213 = vld [vmem:[%s1 + $0x10] sm:$0xf]
  %v214 = vld [vmem:[%s1 + $0x14] sm:$0xf]
  %v279 = vunpack.c.l.b16 %v81
  %v280 = vunpack.c.l.b16 %v82
  %v281 = vunpack.c.l.b16 %v83
  %v282 = vunpack.c.l.b16 %v84
  %v283 = vunpack.c.l.b16 %v85
  %v284 = vunpack.c.l.b16 %v86
  %v285 = vunpack.c.l.b16 %v87
  %v286 = vunpack.c.l.b16 %v88
  %v287 = vunpack.c.l.b16 %v89
  %v288 = vunpack.c.l.b16 %v90
  %v289 = vunpack.c.l.b16 %v91
  %v290 = vunpack.c.l.b16 %v92
  %v291 = vunpack.c.l.b16 %v93
  %v292 = vunpack.c.l.b16 %v94
  %v293 = vunpack.c.l.b16 %v95
  %v294 = vunpack.c.l.b16 %v96
  %v295 = vunpack.c.l.b16 %v97
  %v296 = vunpack.c.l.b16 %v98
  %v297 = vunpack.c.l.b16 %v99
  %v298 = vunpack.c.l.b16 %v100
  %v299 = vunpack.c.l.b16 %v101
  %v300 = vunpack.c.l.b16 %v102
  %v301 = vunpack.c.l.b16 %v103
  %v302 = vunpack.c.l.b16 %v104
  %v303 = vunpack.c.l.b16 %v105
  %v304 = vunpack.c.l.b16 %v106
  %v305 = vunpack.c.l.b16 %v107
  %v306 = vunpack.c.l.b16 %v108
  %v307 = vunpack.c.l.b16 %v109
  %v308 = vunpack.c.l.b16 %v110
  %v309 = vunpack.c.l.b16 %v111
  %v310 = vunpack.c.l.b16 %v112
  %v311 = vunpack.c.l.b16 %v113
  %v312 = vunpack.c.l.b16 %v114
  %v313 = vunpack.c.l.b16 %v115
  %v314 = vunpack.c.l.b16 %v116
  %v315 = vunpack.c.l.b16 %v117
  %v316 = vunpack.c.l.b16 %v118
  %v317 = vunpack.c.l.b16 %v119
  %v318 = vunpack.c.l.b16 %v120
  %v319 = vunpack.c.l.b16 %v121
  %v320 = vunpack.c.l.b16 %v122
  %v321 = vunpack.c.l.b16 %v123
  %v322 = vunpack.c.l.b16 %v124
  %v323 = vunpack.c.l.b16 %v125
  %v324 = vunpack.c.l.b16 %v126
  %v325 = vunpack.c.l.b16 %v127
  %v326 = vunpack.c.l.b16 %v128
  %v327 = vunpack.c.l.b16 %v129
  %v328 = vunpack.c.l.b16 %v130
  %v329 = vunpack.c.l.b16 %v131
  %v330 = vunpack.c.l.b16 %v132
  %v331 = vunpack.c.l.b16 %v133
  %v332 = vunpack.c.l.b16 %v134
  %v333 = vunpack.c.l.b16 %v135
  %v334 = vunpack.c.l.b16 %v136
  %v335 = vunpack.c.l.b16 %v137
  %v336 = vunpack.c.l.b16 %v138
  %v337 = vunpack.c.l.b16 %v139
  %v338 = vunpack.c.l.b16 %v140
  %v339 = vunpack.c.l.b16 %v141
  %v340 = vunpack.c.l.b16 %v142
  %v341 = vunpack.c.l.b16 %v143
  %v342 = vunpack.c.l.b16 %v144
  %v343 = vpack.c.b16 %v280, %v279
  %v344 = vpack.c.b16 %v282, %v281
  %v345 = vpack.c.b16 %v284, %v283
  %v346 = vpack.c.b16 %v286, %v285
  %v347 = vpack.c.b16 %v288, %v287
  %v348 = vpack.c.b16 %v290, %v289
  %v349 = vpack.c.b16 %v292, %v291
  %v350 = vpack.c.b16 %v294, %v293
  %v351 = vpack.c.b16 %v296, %v295
  %v352 = vpack.c.b16 %v298, %v297
  %v353 = vpack.c.b16 %v300, %v299
  %v354 = vpack.c.b16 %v302, %v301
  %v355 = vpack.c.b16 %v304, %v303
  %v356 = vpack.c.b16 %v306, %v305
  %v357 = vpack.c.b16 %v308, %v307
  %v358 = vpack.c.b16 %v310, %v309
  %v359 = vpack.c.b16 %v312, %v311
  %v360 = vpack.c.b16 %v314, %v313
  %v361 = vpack.c.b16 %v316, %v315
  %v362 = vpack.c.b16 %v318, %v317
  %v363 = vpack.c.b16 %v320, %v319
  %v364 = vpack.c.b16 %v322, %v321
  %v365 = vpack.c.b16 %v324, %v323
  %v366 = vpack.c.b16 %v326, %v325
  %v367 = vpack.c.b16 %v328, %v327
  %v368 = vpack.c.b16 %v330, %v329
  %v369 = vpack.c.b16 %v332, %v331
  %v370 = vpack.c.b16 %v334, %v333
  %v371 = vpack.c.b16 %v336, %v335
  %v372 = vpack.c.b16 %v338, %v337
  %v373 = vpack.c.b16 %v340, %v339
  %v374 = vpack.c.b16 %v342, %v341
  %v381 = vunpack.c.l.b16 %v209
  %v382 = vunpack.c.l.b16 %v210
  %v383 = vunpack.c.l.b16 %v211
  %v384 = vunpack.c.l.b16 %v212
  %v385 = vunpack.c.l.b16 %v213
  %v386 = vunpack.c.l.b16 %v214
  %v387 = vpack.c.b16 %v382, %v381
  %v388 = vpack.c.b16 %v384, %v383
  %v389 = vpack.c.b16 %v386, %v385
  %vm393 = vcmask 392192
  %v395 = vsel %vm393, %v343, 0
  %v398 = vsel %vm393, %v344, 0
  %v401 = vsel %vm393, %v345, 0
  %v404 = vsel %vm393, %v346, 0
  %v407 = vsel %vm393, %v347, 0
  %v410 = vsel %vm393, %v348, 0
  %v413 = vsel %vm393, %v349, 0
  %v416 = vsel %vm393, %v350, 0
  %v419 = vsel %vm393, %v351, 0
  %v422 = vsel %vm393, %v352, 0
  %v425 = vsel %vm393, %v353, 0
  %v428 = vsel %vm393, %v354, 0
  %v431 = vsel %vm393, %v355, 0
  %v434 = vsel %vm393, %v356, 0
  %v437 = vsel %vm393, %v357, 0
  %v440 = vsel %vm393, %v358, 0
  %v443 = vsel %vm393, %v359, 0
  %v446 = vsel %vm393, %v360, 0
  %v449 = vsel %vm393, %v361, 0
  %v452 = vsel %vm393, %v362, 0
  %v455 = vsel %vm393, %v363, 0
  %v458 = vsel %vm393, %v364, 0
  %v461 = vsel %vm393, %v365, 0
  %v464 = vsel %vm393, %v366, 0
  %v467 = vsel %vm393, %v367, 0
  %v470 = vsel %vm393, %v368, 0
  %v473 = vsel %vm393, %v369, 0
  %v476 = vsel %vm393, %v370, 0
  %v479 = vsel %vm393, %v371, 0
  %v482 = vsel %vm393, %v372, 0
  %v485 = vsel %vm393, %v373, 0
  %v488 = vsel %vm393, %v374, 0
  %490 = vmatpush.bf16.msra.mxu0 0
  %491 = vmatpush.bf16.msra.mxu0 0
  %492 = vmatpush.bf16.msra.mxu0 0
  %493 = vmatpush.bf16.msra.mxu0 0
  %494 = vmatpush.bf16.msra.mxu0 0
  %495 = vmatpush.bf16.msra.mxu0 %v389
  %496 = vmatpush.bf16.msra.mxu0 %v388
  %497 = vmatpush.bf16.msra.mxu0 %v387
  %498 = vmatmul.bf16.gmra.mxu0 %v395
  %v499 = vpop.f32.mrf.mxu0
  %v500 = vadd.f32 0.0, %v499
  %v501 = vpop.f32.mrf.mxu0
  %v502 = vadd.f32 0.0, %v501
  %503 = vmatmul.bf16.gmra.mxu0 %v398
  %v504 = vpop.f32.mrf.mxu0
  %v505 = vadd.f32 0.0, %v504
  %v506 = vpop.f32.mrf.mxu0
  %v507 = vadd.f32 0.0, %v506
  %508 = vmatmul.bf16.gmra.mxu0 %v401
  %v509 = vpop.f32.mrf.mxu0
  %v510 = vadd.f32 0.0, %v509
  %v511 = vpop.f32.mrf.mxu0
  %v512 = vadd.f32 0.0, %v511
  %513 = vmatmul.bf16.gmra.mxu0 %v404
  %v514 = vpop.f32.mrf.mxu0
  %v515 = vadd.f32 0.0, %v514
  %v516 = vpop.f32.mrf.mxu0
  %v517 = vadd.f32 0.0, %v516
  %518 = vmatmul.bf16.gmra.mxu0 %v407
  %v519 = vpop.f32.mrf.mxu0
  %v520 = vadd.f32 0.0, %v519
  %v521 = vpop.f32.mrf.mxu0
  %v522 = vadd.f32 0.0, %v521
  %523 = vmatmul.bf16.gmra.mxu0 %v410
  %v524 = vpop.f32.mrf.mxu0
  %v525 = vadd.f32 0.0, %v524
  %v526 = vpop.f32.mrf.mxu0
  %v527 = vadd.f32 0.0, %v526
  %528 = vmatmul.bf16.gmra.mxu0 %v413
  %v529 = vpop.f32.mrf.mxu0
  %v530 = vadd.f32 0.0, %v529
  %v531 = vpop.f32.mrf.mxu0
  %v532 = vadd.f32 0.0, %v531
  %533 = vmatmul.bf16.gmra.mxu0 %v416
  %v534 = vpop.f32.mrf.mxu0
  %v535 = vadd.f32 0.0, %v534
  %v536 = vpop.f32.mrf.mxu0
  %v537 = vadd.f32 0.0, %v536
  %538 = vmatmul.bf16.gmra.mxu0 %v419
  %v539 = vpop.f32.mrf.mxu0
  %v540 = vadd.f32 0.0, %v539
  %v541 = vpop.f32.mrf.mxu0
  %v542 = vadd.f32 0.0, %v541
  %543 = vmatmul.bf16.gmra.mxu0 %v422
  %v544 = vpop.f32.mrf.mxu0
  %v545 = vadd.f32 0.0, %v544
  %v546 = vpop.f32.mrf.mxu0
  %v547 = vadd.f32 0.0, %v546
  %548 = vmatmul.bf16.gmra.mxu0 %v425
  %v549 = vpop.f32.mrf.mxu0
  %v550 = vadd.f32 0.0, %v549
  %v551 = vpop.f32.mrf.mxu0
  %v552 = vadd.f32 0.0, %v551
  %553 = vmatmul.bf16.gmra.mxu0 %v428
  %v554 = vpop.f32.mrf.mxu0
  %v555 = vadd.f32 0.0, %v554
  %v556 = vpop.f32.mrf.mxu0
  %v557 = vadd.f32 0.0, %v556
  %558 = vmatmul.bf16.gmra.mxu0 %v431
  %v559 = vpop.f32.mrf.mxu0
  %v560 = vadd.f32 0.0, %v559
  %v561 = vpop.f32.mrf.mxu0
  %v562 = vadd.f32 0.0, %v561
  %563 = vmatmul.bf16.gmra.mxu0 %v434
  %v564 = vpop.f32.mrf.mxu0
  %v565 = vadd.f32 0.0, %v564
  %v566 = vpop.f32.mrf.mxu0
  %v567 = vadd.f32 0.0, %v566
  %568 = vmatmul.bf16.gmra.mxu0 %v437
  %v569 = vpop.f32.mrf.mxu0
  %v570 = vadd.f32 0.0, %v569
  %v571 = vpop.f32.mrf.mxu0
  %v572 = vadd.f32 0.0, %v571
  %573 = vmatmul.bf16.gmra.mxu0 %v440
  %v574 = vpop.f32.mrf.mxu0
  %v575 = vadd.f32 0.0, %v574
  %v576 = vpop.f32.mrf.mxu0
  %v577 = vadd.f32 0.0, %v576
  %578 = vmatmul.bf16.gmra.mxu0 %v443
  %v579 = vpop.f32.mrf.mxu0
  %v580 = vadd.f32 0.0, %v579
  %v581 = vpop.f32.mrf.mxu0
  %v582 = vadd.f32 0.0, %v581
  %583 = vmatmul.bf16.gmra.mxu0 %v446
  %v584 = vpop.f32.mrf.mxu0
  %v585 = vadd.f32 0.0, %v584
  %v586 = vpop.f32.mrf.mxu0
  %v587 = vadd.f32 0.0, %v586
  %588 = vmatmul.bf16.gmra.mxu0 %v449
  %v589 = vpop.f32.mrf.mxu0
  %v590 = vadd.f32 0.0, %v589
  %v591 = vpop.f32.mrf.mxu0
  %v592 = vadd.f32 0.0, %v591
  %593 = vmatmul.bf16.gmra.mxu0 %v452
  %v594 = vpop.f32.mrf.mxu0
  %v595 = vadd.f32 0.0, %v594
  %v596 = vpop.f32.mrf.mxu0
  %v597 = vadd.f32 0.0, %v596
  %598 = vmatmul.bf16.gmra.mxu0 %v455
  %v599 = vpop.f32.mrf.mxu0
  %v600 = vadd.f32 0.0, %v599
  %v601 = vpop.f32.mrf.mxu0
  %v602 = vadd.f32 0.0, %v601
  %603 = vmatmul.bf16.gmra.mxu0 %v458
  %v604 = vpop.f32.mrf.mxu0
  %v605 = vadd.f32 0.0, %v604
  %v606 = vpop.f32.mrf.mxu0
  %v607 = vadd.f32 0.0, %v606
  %608 = vmatmul.bf16.gmra.mxu0 %v461
  %v609 = vpop.f32.mrf.mxu0
  %v610 = vadd.f32 0.0, %v609
  %v611 = vpop.f32.mrf.mxu0
  %v612 = vadd.f32 0.0, %v611
  %613 = vmatmul.bf16.gmra.mxu0 %v464
  %v614 = vpop.f32.mrf.mxu0
  %v615 = vadd.f32 0.0, %v614
  %v616 = vpop.f32.mrf.mxu0
  %v617 = vadd.f32 0.0, %v616
  %618 = vmatmul.bf16.gmra.mxu0 %v467
  %v619 = vpop.f32.mrf.mxu0
  %v620 = vadd.f32 0.0, %v619
  %v621 = vpop.f32.mrf.mxu0
  %v622 = vadd.f32 0.0, %v621
  %623 = vmatmul.bf16.gmra.mxu0 %v470
  %v624 = vpop.f32.mrf.mxu0
  %v625 = vadd.f32 0.0, %v624
  %v626 = vpop.f32.mrf.mxu0
  %v627 = vadd.f32 0.0, %v626
  %628 = vmatmul.bf16.gmra.mxu0 %v473
  %v629 = vpop.f32.mrf.mxu0
  %v630 = vadd.f32 0.0, %v629
  %v631 = vpop.f32.mrf.mxu0
  %v632 = vadd.f32 0.0, %v631
  %633 = vmatmul.bf16.gmra.mxu0 %v476
  %v634 = vpop.f32.mrf.mxu0
  %v635 = vadd.f32 0.0, %v634
  %v636 = vpop.f32.mrf.mxu0
  %v637 = vadd.f32 0.0, %v636
  %638 = vmatmul.bf16.gmra.mxu0 %v479
  %v639 = vpop.f32.mrf.mxu0
  %v640 = vadd.f32 0.0, %v639
  %v641 = vpop.f32.mrf.mxu0
  %v642 = vadd.f32 0.0, %v641
  %643 = vmatmul.bf16.gmra.mxu0 %v482
  %v644 = vpop.f32.mrf.mxu0
  %v645 = vadd.f32 0.0, %v644
  %v646 = vpop.f32.mrf.mxu0
  %v647 = vadd.f32 0.0, %v646
  %648 = vmatmul.bf16.gmra.mxu0 %v485
  %v649 = vpop.f32.mrf.mxu0
  %v650 = vadd.f32 0.0, %v649
  %v651 = vpop.f32.mrf.mxu0
  %v652 = vadd.f32 0.0, %v651
  %653 = vmatmul.bf16.gmra.mxu0 %v488
  %v654 = vpop.f32.mrf.mxu0
  %v655 = vadd.f32 0.0, %v654
  %v656 = vpop.f32.mrf.mxu0
  %v657 = vadd.f32 0.0, %v656
  %658 = vdwg.mxu0
  %v659 = vadd.f32 %v145, %v500
  %v660 = vadd.f32 %v146, %v502
  %v661 = vadd.f32 %v147, %v505
  %v662 = vadd.f32 %v148, %v507
  %v663 = vadd.f32 %v149, %v510
  %v664 = vadd.f32 %v150, %v512
  %v665 = vadd.f32 %v151, %v515
  %v666 = vadd.f32 %v152, %v517
  %v667 = vadd.f32 %v153, %v520
  %v668 = vadd.f32 %v154, %v522
  %v669 = vadd.f32 %v155, %v525
  %v670 = vadd.f32 %v156, %v527
  %v671 = vadd.f32 %v157, %v530
  %v672 = vadd.f32 %v158, %v532
  %v673 = vadd.f32 %v159, %v535
  %v674 = vadd.f32 %v160, %v537
  %v675 = vadd.f32 %v161, %v540
  %v676 = vadd.f32 %v162, %v542
  %v677 = vadd.f32 %v163, %v545
  %v678 = vadd.f32 %v164, %v547
  %v679 = vadd.f32 %v165, %v550
  %v680 = vadd.f32 %v166, %v552
  %v681 = vadd.f32 %v167, %v555
  %v682 = vadd.f32 %v168, %v557
  %v683 = vadd.f32 %v169, %v560
  %v684 = vadd.f32 %v170, %v562
  %v685 = vadd.f32 %v171, %v565
  %v686 = vadd.f32 %v172, %v567
  %v687 = vadd.f32 %v173, %v570
  %v688 = vadd.f32 %v174, %v572
  %v689 = vadd.f32 %v175, %v575
  %v690 = vadd.f32 %v176, %v577
  %v691 = vadd.f32 %v177, %v580
  %v692 = vadd.f32 %v178, %v582
  %v693 = vadd.f32 %v179, %v585
  %v694 = vadd.f32 %v180, %v587
  %v695 = vadd.f32 %v181, %v590
  %v696 = vadd.f32 %v182, %v592
  %v697 = vadd.f32 %v183, %v595
  %v698 = vadd.f32 %v184, %v597
  %v699 = vadd.f32 %v185, %v600
  %v700 = vadd.f32 %v186, %v602
  %v701 = vadd.f32 %v187, %v605
  %v702 = vadd.f32 %v188, %v607
  %v703 = vadd.f32 %v189, %v610
  %v704 = vadd.f32 %v190, %v612
  %v705 = vadd.f32 %v191, %v615
  %v706 = vadd.f32 %v192, %v617
  %v707 = vadd.f32 %v193, %v620
  %v708 = vadd.f32 %v194, %v622
  %v709 = vadd.f32 %v195, %v625
  %v710 = vadd.f32 %v196, %v627
  %v711 = vadd.f32 %v197, %v630
  %v712 = vadd.f32 %v198, %v632
  %v713 = vadd.f32 %v199, %v635
  %v714 = vadd.f32 %v200, %v637
  %v715 = vadd.f32 %v201, %v640
  %v716 = vadd.f32 %v202, %v642
  %v717 = vadd.f32 %v203, %v645
  %v718 = vadd.f32 %v204, %v647
  %v719 = vadd.f32 %v205, %v650
  %v720 = vadd.f32 %v206, %v652
  %v721 = vadd.f32 %v207, %v655
  %v722 = vadd.f32 %v208, %v657
  %vm723 = vcmask 64512
  %724 = vst.msk [vmem:[#allocation2] sm:$0xff] %vm723, %v659
  %725 = vst.msk [vmem:[#allocation2 + $0x8] sm:$0xff] %vm723, %v660
  %726 = vst.msk [vmem:[#allocation2 + $0x10] sm:$0xff] %vm723, %v661
  %727 = vst.msk [vmem:[#allocation2 + $0x18] sm:$0xff] %vm723, %v662
  %728 = vst.msk [vmem:[#allocation2 + $0x20] sm:$0xff] %vm723, %v663
  %729 = vst.msk [vmem:[#allocation2 + $0x28] sm:$0xff] %vm723, %v664
  %730 = vst.msk [vmem:[#allocation2 + $0x30] sm:$0xff] %vm723, %v665
  %731 = vst.msk [vmem:[#allocation2 + $0x38] sm:$0xff] %vm723, %v666
  %732 = vst.msk [vmem:[#allocation2 + $0x40] sm:$0xff] %vm723, %v667
  %733 = vst.msk [vmem:[#allocation2 + $0x48] sm:$0xff] %vm723, %v668
  %734 = vst.msk [vmem:[#allocation2 + $0x50] sm:$0xff] %vm723, %v669
  %735 = vst.msk [vmem:[#allocation2 + $0x58] sm:$0xff] %vm723, %v670
  %736 = vst.msk [vmem:[#allocation2 + $0x60] sm:$0xff] %vm723, %v671
  %737 = vst.msk [vmem:[#allocation2 + $0x68] sm:$0xff] %vm723, %v672
  %738 = vst.msk [vmem:[#allocation2 + $0x70] sm:$0xff] %vm723, %v673
  %739 = vst.msk [vmem:[#allocation2 + $0x78] sm:$0xff] %vm723, %v674
  %740 = vst.msk [vmem:[#allocation2 + $0x80] sm:$0xff] %vm723, %v675
  %741 = vst.msk [vmem:[#allocation2 + $0x88] sm:$0xff] %vm723, %v676
  %742 = vst.msk [vmem:[#allocation2 + $0x90] sm:$0xff] %vm723, %v677
  %743 = vst.msk [vmem:[#allocation2 + $0x98] sm:$0xff] %vm723, %v678
  %744 = vst.msk [vmem:[#allocation2 + $0xa0] sm:$0xff] %vm723, %v679
  %745 = vst.msk [vmem:[#allocation2 + $0xa8] sm:$0xff] %vm723, %v680
  %746 = vst.msk [vmem:[#allocation2 + $0xb0] sm:$0xff] %vm723, %v681
  %747 = vst.msk [vmem:[#allocation2 + $0xb8] sm:$0xff] %vm723, %v682
  %748 = vst.msk [vmem:[#allocation2 + $0xc0] sm:$0xff] %vm723, %v683
  %749 = vst.msk [vmem:[#allocation2 + $0xc8] sm:$0xff] %vm723, %v684
  %750 = vst.msk [vmem:[#allocation2 + $0xd0] sm:$0xff] %vm723, %v685
  %751 = vst.msk [vmem:[#allocation2 + $0xd8] sm:$0xff] %vm723, %v686
  %752 = vst.msk [vmem:[#allocation2 + $0xe0] sm:$0xff] %vm723, %v687
  %753 = vst.msk [vmem:[#allocation2 + $0xe8] sm:$0xff] %vm723, %v688
  %754 = vst.msk [vmem:[#allocation2 + $0xf0] sm:$0xff] %vm723, %v689
  %755 = vst.msk [vmem:[#allocation2 + $0xf8] sm:$0xff] %vm723, %v690
  %756 = vst.msk [vmem:[#allocation2 + $0x100] sm:$0xff] %vm723, %v691
  %757 = vst.msk [vmem:[#allocation2 + $0x108] sm:$0xff] %vm723, %v692
  %758 = vst.msk [vmem:[#allocation2 + $0x110] sm:$0xff] %vm723, %v693
  %759 = vst.msk [vmem:[#allocation2 + $0x118] sm:$0xff] %vm723, %v694
  %760 = vst.msk [vmem:[#allocation2 + $0x120] sm:$0xff] %vm723, %v695
  %761 = vst.msk [vmem:[#allocation2 + $0x128] sm:$0xff] %vm723, %v696
  %762 = vst.msk [vmem:[#allocation2 + $0x130] sm:$0xff] %vm723, %v697
  %763 = vst.msk [vmem:[#allocation2 + $0x138] sm:$0xff] %vm723, %v698
  %764 = vst.msk [vmem:[#allocation2 + $0x140] sm:$0xff] %vm723, %v699
  %765 = vst.msk [vmem:[#allocation2 + $0x148] sm:$0xff] %vm723, %v700
  %766 = vst.msk [vmem:[#allocation2 + $0x150] sm:$0xff] %vm723, %v701
  %767 = vst.msk [vmem:[#allocation2 + $0x158] sm:$0xff] %vm723, %v702
  %768 = vst.msk [vmem:[#allocation2 + $0x160] sm:$0xff] %vm723, %v703
  %769 = vst.msk [vmem:[#allocation2 + $0x168] sm:$0xff] %vm723, %v704
  %770 = vst.msk [vmem:[#allocation2 + $0x170] sm:$0xff] %vm723, %v705
  %771 = vst.msk [vmem:[#allocation2 + $0x178] sm:$0xff] %vm723, %v706
  %772 = vst.msk [vmem:[#allocation2 + $0x180] sm:$0xff] %vm723, %v707
  %773 = vst.msk [vmem:[#allocation2 + $0x188] sm:$0xff] %vm723, %v708
  %774 = vst.msk [vmem:[#allocation2 + $0x190] sm:$0xff] %vm723, %v709
  %775 = vst.msk [vmem:[#allocation2 + $0x198] sm:$0xff] %vm723, %v710
  %776 = vst.msk [vmem:[#allocation2 + $0x1a0] sm:$0xff] %vm723, %v711
  %777 = vst.msk [vmem:[#allocation2 + $0x1a8] sm:$0xff] %vm723, %v712
  %778 = vst.msk [vmem:[#allocation2 + $0x1b0] sm:$0xff] %vm723, %v713
  %779 = vst.msk [vmem:[#allocation2 + $0x1b8] sm:$0xff] %vm723, %v714
  %780 = vst.msk [vmem:[#allocation2 + $0x1c0] sm:$0xff] %vm723, %v715
  %781 = vst.msk [vmem:[#allocation2 + $0x1c8] sm:$0xff] %vm723, %v716
  %782 = vst.msk [vmem:[#allocation2 + $0x1d0] sm:$0xff] %vm723, %v717
  %783 = vst.msk [vmem:[#allocation2 + $0x1d8] sm:$0xff] %vm723, %v718
  %784 = vst.msk [vmem:[#allocation2 + $0x1e0] sm:$0xff] %vm723, %v719
  %785 = vst.msk [vmem:[#allocation2 + $0x1e8] sm:$0xff] %vm723, %v720
  %786 = vst.msk [vmem:[#allocation2 + $0x1f0] sm:$0xff] %vm723, %v721
  %787 = vst.msk [vmem:[#allocation2 + $0x1f8] sm:$0xff] %vm723, %v722
  // Predicated region
  $region14: #{_lambda_.7} parent=0 // pred_check
    %p788 = pneg %p12
  $region15: #{_lambda_.7} parent=0 // pred_check_branch
    %790 = sbr.rel (%p788) target = $region17
  $region16: #{_lambda_.7} parent=0 // pred_region
    %v791 = vld [vmem:[#allocation2] sm:$0xff]
    %v792 = vld [vmem:[#allocation2 + $0x8] sm:$0xff]
    %v793 = vld [vmem:[#allocation2 + $0x10] sm:$0xff]
    %v794 = vld [vmem:[#allocation2 + $0x18] sm:$0xff]
    %v795 = vld [vmem:[#allocation2 + $0x20] sm:$0xff]
    %v796 = vld [vmem:[#allocation2 + $0x28] sm:$0xff]
    %v797 = vld [vmem:[#allocation2 + $0x30] sm:$0xff]
    %v798 = vld [vmem:[#allocation2 + $0x38] sm:$0xff]
    %v799 = vld [vmem:[#allocation2 + $0x40] sm:$0xff]
    %v800 = vld [vmem:[#allocation2 + $0x48] sm:$0xff]
    %v801 = vld [vmem:[#allocation2 + $0x50] sm:$0xff]
    %v802 = vld [vmem:[#allocation2 + $0x58] sm:$0xff]
    %v803 = vld [vmem:[#allocation2 + $0x60] sm:$0xff]
    %v804 = vld [vmem:[#allocation2 + $0x68] sm:$0xff]
    %v805 = vld [vmem:[#allocation2 + $0x70] sm:$0xff]
    %v806 = vld [vmem:[#allocation2 + $0x78] sm:$0xff]
    %v807 = vld [vmem:[#allocation2 + $0x80] sm:$0xff]
    %v808 = vld [vmem:[#allocation2 + $0x88] sm:$0xff]
    %v809 = vld [vmem:[#allocation2 + $0x90] sm:$0xff]
    %v810 = vld [vmem:[#allocation2 + $0x98] sm:$0xff]
    %v811 = vld [vmem:[#allocation2 + $0xa0] sm:$0xff]
    %v812 = vld [vmem:[#allocation2 + $0xa8] sm:$0xff]
    %v813 = vld [vmem:[#allocation2 + $0xb0] sm:$0xff]
    %v814 = vld [vmem:[#allocation2 + $0xb8] sm:$0xff]
    %v815 = vld [vmem:[#allocation2 + $0xc0] sm:$0xff]
    %v816 = vld [vmem:[#allocation2 + $0xc8] sm:$0xff]
    %v817 = vld [vmem:[#allocation2 + $0xd0] sm:$0xff]
    %v818 = vld [vmem:[#allocation2 + $0xd8] sm:$0xff]
    %v819 = vld [vmem:[#allocation2 + $0xe0] sm:$0xff]
    %v820 = vld [vmem:[#allocation2 + $0xe8] sm:$0xff]
    %v821 = vld [vmem:[#allocation2 + $0xf0] sm:$0xff]
    %v822 = vld [vmem:[#allocation2 + $0xf8] sm:$0xff]
    %v823 = vld [vmem:[#allocation2 + $0x100] sm:$0xff]
    %v824 = vld [vmem:[#allocation2 + $0x108] sm:$0xff]
    %v825 = vld [vmem:[#allocation2 + $0x110] sm:$0xff]
    %v826 = vld [vmem:[#allocation2 + $0x118] sm:$0xff]
    %v827 = vld [vmem:[#allocation2 + $0x120] sm:$0xff]
    %v828 = vld [vmem:[#allocation2 + $0x128] sm:$0xff]
    %v829 = vld [vmem:[#allocation2 + $0x130] sm:$0xff]
    %v830 = vld [vmem:[#allocation2 + $0x138] sm:$0xff]
    %v831 = vld [vmem:[#allocation2 + $0x140] sm:$0xff]
    %v832 = vld [vmem:[#allocation2 + $0x148] sm:$0xff]
    %v833 = vld [vmem:[#allocation2 + $0x150] sm:$0xff]
    %v834 = vld [vmem:[#allocation2 + $0x158] sm:$0xff]
    %v835 = vld [vmem:[#allocation2 + $0x160] sm:$0xff]
    %v836 = vld [vmem:[#allocation2 + $0x168] sm:$0xff]
    %v837 = vld [vmem:[#allocation2 + $0x170] sm:$0xff]
    %v838 = vld [vmem:[#allocation2 + $0x178] sm:$0xff]
    %v839 = vld [vmem:[#allocation2 + $0x180] sm:$0xff]
    %v840 = vld [vmem:[#allocation2 + $0x188] sm:$0xff]
    %v841 = vld [vmem:[#allocation2 + $0x190] sm:$0xff]
    %v842 = vld [vmem:[#allocation2 + $0x198] sm:$0xff]
    %v843 = vld [vmem:[#allocation2 + $0x1a0] sm:$0xff]
    %v844 = vld [vmem:[#allocation2 + $0x1a8] sm:$0xff]
    %v845 = vld [vmem:[#allocation2 + $0x1b0] sm:$0xff]
    %v846 = vld [vmem:[#allocation2 + $0x1b8] sm:$0xff]
    %v847 = vld [vmem:[#allocation2 + $0x1c0] sm:$0xff]
    %v848 = vld [vmem:[#allocation2 + $0x1c8] sm:$0xff]
    %v849 = vld [vmem:[#allocation2 + $0x1d0] sm:$0xff]
    %v850 = vld [vmem:[#allocation2 + $0x1d8] sm:$0xff]
    %v851 = vld [vmem:[#allocation2 + $0x1e0] sm:$0xff]
    %v852 = vld [vmem:[#allocation2 + $0x1e8] sm:$0xff]
    %v853 = vld [vmem:[#allocation2 + $0x1f0] sm:$0xff]
    %v854 = vld [vmem:[#allocation2 + $0x1f8] sm:$0xff]
    %v855 = vpack.c.bf16 %v791, %v791
    %v856 = vpack.c.bf16 %v792, %v792
    %v857 = vpack.c.bf16 %v793, %v793
    %v858 = vpack.c.bf16 %v794, %v794
    %v859 = vpack.c.bf16 %v795, %v795
    %v860 = vpack.c.bf16 %v796, %v796
    %v861 = vpack.c.bf16 %v797, %v797
    %v862 = vpack.c.bf16 %v798, %v798
    %v863 = vpack.c.bf16 %v799, %v799
    %v864 = vpack.c.bf16 %v800, %v800
    %v865 = vpack.c.bf16 %v801, %v801
    %v866 = vpack.c.bf16 %v802, %v802
    %v867 = vpack.c.bf16 %v803, %v803
    %v868 = vpack.c.bf16 %v804, %v804
    %v869 = vpack.c.bf16 %v805, %v805
    %v870 = vpack.c.bf16 %v806, %v806
    %v871 = vpack.c.bf16 %v807, %v807
    %v872 = vpack.c.bf16 %v808, %v808
    %v873 = vpack.c.bf16 %v809, %v809
    %v874 = vpack.c.bf16 %v810, %v810
    %v875 = vpack.c.bf16 %v811, %v811
    %v876 = vpack.c.bf16 %v812, %v812
    %v877 = vpack.c.bf16 %v813, %v813
    %v878 = vpack.c.bf16 %v814, %v814
    %v879 = vpack.c.bf16 %v815, %v815
    %v880 = vpack.c.bf16 %v816, %v816
    %v881 = vpack.c.bf16 %v817, %v817
    %v882 = vpack.c.bf16 %v818, %v818
    %v883 = vpack.c.bf16 %v819, %v819
    %v884 = vpack.c.bf16 %v820, %v820
    %v885 = vpack.c.bf16 %v821, %v821
    %v886 = vpack.c.bf16 %v822, %v822
    %v887 = vpack.c.bf16 %v823, %v823
    %v888 = vpack.c.bf16 %v824, %v824
    %v889 = vpack.c.bf16 %v825, %v825
    %v890 = vpack.c.bf16 %v826, %v826
    %v891 = vpack.c.bf16 %v827, %v827
    %v892 = vpack.c.bf16 %v828, %v828
    %v893 = vpack.c.bf16 %v829, %v829
    %v894 = vpack.c.bf16 %v830, %v830
    %v895 = vpack.c.bf16 %v831, %v831
    %v896 = vpack.c.bf16 %v832, %v832
    %v897 = vpack.c.bf16 %v833, %v833
    %v898 = vpack.c.bf16 %v834, %v834
    %v899 = vpack.c.bf16 %v835, %v835
    %v900 = vpack.c.bf16 %v836, %v836
    %v901 = vpack.c.bf16 %v837, %v837
    %v902 = vpack.c.bf16 %v838, %v838
    %v903 = vpack.c.bf16 %v839, %v839
    %v904 = vpack.c.bf16 %v840, %v840
    %v905 = vpack.c.bf16 %v841, %v841
    %v906 = vpack.c.bf16 %v842, %v842
    %v907 = vpack.c.bf16 %v843, %v843
    %v908 = vpack.c.bf16 %v844, %v844
    %v909 = vpack.c.bf16 %v845, %v845
    %v910 = vpack.c.bf16 %v846, %v846
    %v911 = vpack.c.bf16 %v847, %v847
    %v912 = vpack.c.bf16 %v848, %v848
    %v913 = vpack.c.bf16 %v849, %v849
    %v914 = vpack.c.bf16 %v850, %v850
    %v915 = vpack.c.bf16 %v851, %v851
    %v916 = vpack.c.bf16 %v852, %v852
    %v917 = vpack.c.bf16 %v853, %v853
    %v918 = vpack.c.bf16 %v854, %v854
    %vm919 = vcmask 60416
    %920 = vst.msk [vmem:[%s2] sm:$0xf] %vm919, %v855
    %921 = vst.msk [vmem:[%s2 + $0x4] sm:$0xf] %vm919, %v856
    %922 = vst.msk [vmem:[%s2 + $0x8] sm:$0xf] %vm919, %v857
    %923 = vst.msk [vmem:[%s2 + $0xc] sm:$0xf] %vm919, %v858
    %924 = vst.msk [vmem:[%s2 + $0x10] sm:$0xf] %vm919, %v859
    %925 = vst.msk [vmem:[%s2 + $0x14] sm:$0xf] %vm919, %v860
    %926 = vst.msk [vmem:[%s2 + $0x18] sm:$0xf] %vm919, %v861
    %927 = vst.msk [vmem:[%s2 + $0x1c] sm:$0xf] %vm919, %v862
    %928 = vst.msk [vmem:[%s2 + $0x20] sm:$0xf] %vm919, %v863
    %929 = vst.msk [vmem:[%s2 + $0x24] sm:$0xf] %vm919, %v864
    %930 = vst.msk [vmem:[%s2 + $0x28] sm:$0xf] %vm919, %v865
    %931 = vst.msk [vmem:[%s2 + $0x2c] sm:$0xf] %vm919, %v866
    %932 = vst.msk [vmem:[%s2 + $0x30] sm:$0xf] %vm919, %v867
    %933 = vst.msk [vmem:[%s2 + $0x34] sm:$0xf] %vm919, %v868
    %934 = vst.msk [vmem:[%s2 + $0x38] sm:$0xf] %vm919, %v869
    %935 = vst.msk [vmem:[%s2 + $0x3c] sm:$0xf] %vm919, %v870
    %936 = vst.msk [vmem:[%s2 + $0x40] sm:$0xf] %vm919, %v871
    %937 = vst.msk [vmem:[%s2 + $0x44] sm:$0xf] %vm919, %v872
    %938 = vst.msk [vmem:[%s2 + $0x48] sm:$0xf] %vm919, %v873
    %939 = vst.msk [vmem:[%s2 + $0x4c] sm:$0xf] %vm919, %v874
    %940 = vst.msk [vmem:[%s2 + $0x50] sm:$0xf] %vm919, %v875
    %941 = vst.msk [vmem:[%s2 + $0x54] sm:$0xf] %vm919, %v876
    %942 = vst.msk [vmem:[%s2 + $0x58] sm:$0xf] %vm919, %v877
    %943 = vst.msk [vmem:[%s2 + $0x5c] sm:$0xf] %vm919, %v878
    %944 = vst.msk [vmem:[%s2 + $0x60] sm:$0xf] %vm919, %v879
    %945 = vst.msk [vmem:[%s2 + $0x64] sm:$0xf] %vm919, %v880
    %946 = vst.msk [vmem:[%s2 + $0x68] sm:$0xf] %vm919, %v881
    %947 = vst.msk [vmem:[%s2 + $0x6c] sm:$0xf] %vm919, %v882
    %948 = vst.msk [vmem:[%s2 + $0x70] sm:$0xf] %vm919, %v883
    %949 = vst.msk [vmem:[%s2 + $0x74] sm:$0xf] %vm919, %v884
    %950 = vst.msk [vmem:[%s2 + $0x78] sm:$0xf] %vm919, %v885
    %951 = vst.msk [vmem:[%s2 + $0x7c] sm:$0xf] %vm919, %v886
    %952 = vst.msk [vmem:[%s2 + $0x80] sm:$0xf] %vm919, %v887
    %953 = vst.msk [vmem:[%s2 + $0x84] sm:$0xf] %vm919, %v888
    %954 = vst.msk [vmem:[%s2 + $0x88] sm:$0xf] %vm919, %v889
    %955 = vst.msk [vmem:[%s2 + $0x8c] sm:$0xf] %vm919, %v890
    %956 = vst.msk [vmem:[%s2 + $0x90] sm:$0xf] %vm919, %v891
    %957 = vst.msk [vmem:[%s2 + $0x94] sm:$0xf] %vm919, %v892
    %958 = vst.msk [vmem:[%s2 + $0x98] sm:$0xf] %vm919, %v893
    %959 = vst.msk [vmem:[%s2 + $0x9c] sm:$0xf] %vm919, %v894
    %960 = vst.msk [vmem:[%s2 + $0xa0] sm:$0xf] %vm919, %v895
    %961 = vst.msk [vmem:[%s2 + $0xa4] sm:$0xf] %vm919, %v896
    %962 = vst.msk [vmem:[%s2 + $0xa8] sm:$0xf] %vm919, %v897
    %963 = vst.msk [vmem:[%s2 + $0xac] sm:$0xf] %vm919, %v898
    %964 = vst.msk [vmem:[%s2 + $0xb0] sm:$0xf] %vm919, %v899
    %965 = vst.msk [vmem:[%s2 + $0xb4] sm:$0xf] %vm919, %v900
    %966 = vst.msk [vmem:[%s2 + $0xb8] sm:$0xf] %vm919, %v901
    %967 = vst.msk [vmem:[%s2 + $0xbc] sm:$0xf] %vm919, %v902
    %968 = vst.msk [vmem:[%s2 + $0xc0] sm:$0xf] %vm919, %v903
    %969 = vst.msk [vmem:[%s2 + $0xc4] sm:$0xf] %vm919, %v904
    %970 = vst.msk [vmem:[%s2 + $0xc8] sm:$0xf] %vm919, %v905
    %971 = vst.msk [vmem:[%s2 + $0xcc] sm:$0xf] %vm919, %v906
    %972 = vst.msk [vmem:[%s2 + $0xd0] sm:$0xf] %vm919, %v907
    %973 = vst.msk [vmem:[%s2 + $0xd4] sm:$0xf] %vm919, %v908
    %974 = vst.msk [vmem:[%s2 + $0xd8] sm:$0xf] %vm919, %v909
    %975 = vst.msk [vmem:[%s2 + $0xdc] sm:$0xf] %vm919, %v910
    %976 = vst.msk [vmem:[%s2 + $0xe0] sm:$0xf] %vm919, %v911
    %977 = vst.msk [vmem:[%s2 + $0xe4] sm:$0xf] %vm919, %v912
    %978 = vst.msk [vmem:[%s2 + $0xe8] sm:$0xf] %vm919, %v913
    %979 = vst.msk [vmem:[%s2 + $0xec] sm:$0xf] %vm919, %v914
    %980 = vst.msk [vmem:[%s2 + $0xf0] sm:$0xf] %vm919, %v915
    %981 = vst.msk [vmem:[%s2 + $0xf4] sm:$0xf] %vm919, %v916
    %982 = vst.msk [vmem:[%s2 + $0xf8] sm:$0xf] %vm919, %v917
    %983 = vst.msk [vmem:[%s2 + $0xfc] sm:$0xf] %vm919, %v918
  $region17: #{_lambda_.7} parent=0 // pred_fallthru
    _
  // Predicated region
  $region18: #{_lambda_.7} parent=0 // pred_check
    _
  $region19: #{_lambda_.7} parent=0 // pred_check_branch
    %985 = sbr.rel (0) target = $region21
  $region20: #{_lambda_.7} parent=0 // pred_region
    _
  $region21: #{_lambda_.7} parent=0 // pred_fallthru
    _
  // Predicated region
  $region22: #{_lambda_.7} parent=0 // pred_check
    _
  $region23: #{_lambda_.7} parent=0 // pred_check_branch
    %987 = sbr.rel (0) target = $region25
  $region24: #{_lambda_.7} parent=0 // pred_region
    _
  $region25: #{_lambda_.7} parent=0 // pred_fallthru
    _

// kernel: _lambda_.8
$region0: #{_lambda_.8}
  #allocation0 [shape = 'u32[]', space=smem, size = 0x4, offset = 0x4, fixed_abs, tag = 'smem constant byte address 0x4 - core index']
  #allocation1 [shape = 'u32[72,128]{1,0:T(1,128)}', space=vmem, size = 0x9000, scoped, tag = 'internal scratch']
  #allocation2 [shape = 'f32[128,16]{1,0:T(8,128)}', space=vmem, size = 0x10000, scoped, tag = 'scratch operand']
  %s0 = inlined_call_operand.vmem [shape: bf16[128,128], index: 0, kind: input, shape index: {}]
  %s1 = inlined_call_operand.vmem [shape: bf16[128,16], index: 1, kind: input, shape index: {}]
  %s2 = inlined_call_operand.vmem [shape: bf16[128,16], index: 2, kind: output, shape index: {0}]
  %s3 = inlined_call_operand.vmem [shape: f32[2,16], index: 3, kind: output, shape index: {1}]
  %4 = xla_tuple %s2, %s3
  %s5 = sld [smem:[#allocation0]]
  $region38: #{_lambda_.8} parent=0
    _
  %s7 = ssub.s32 1, %s5
  %s8 = scalar_select 0, %s7, %s5
  // Predicated region
  $region2: #{_lambda_.8} parent=0 // pred_check
    _
  $region3: #{_lambda_.8} parent=0 // pred_check_branch
    %10 = sbr.rel (0) target = $region5
  $region4: #{_lambda_.8} parent=0 // pred_region
    _
  $region5: #{_lambda_.8} parent=0 // pred_fallthru
    _
  // Predicated region
  $region6: #{_lambda_.8} parent=0 // pred_check
    _
  $region7: #{_lambda_.8} parent=0 // pred_check_branch
    %12 = sbr.rel (0) target = $region9
  $region8: #{_lambda_.8} parent=0 // pred_region
    _
  $region9: #{_lambda_.8} parent=0 // pred_fallthru
    _
  %p13 = scmp.eq.s32.totalorder 0, 0
  // Predicated region
  $region10: #{_lambda_.8} parent=0 // pred_check
    %p14 = pneg %p13
  $region11: #{_lambda_.8} parent=0 // pred_check_branch
    %16 = sbr.rel (%p14) target = $region13
  $region12: #{_lambda_.8} parent=0 // pred_region
    %vm17 = vcmask 130048
    %18 = vst.msk [vmem:[#allocation2] sm:$0xff] %vm17, 0.0
    %19 = vst.msk [vmem:[#allocation2 + $0x8] sm:$0xff] %vm17, 0.0
    %20 = vst.msk [vmem:[#allocation2 + $0x10] sm:$0xff] %vm17, 0.0
    %21 = vst.msk [vmem:[#allocation2 + $0x18] sm:$0xff] %vm17, 0.0
    %22 = vst.msk [vmem:[#allocation2 + $0x20] sm:$0xff] %vm17, 0.0
    %23 = vst.msk [vmem:[#allocation2 + $0x28] sm:$0xff] %vm17, 0.0
    %24 = vst.msk [vmem:[#allocation2 + $0x30] sm:$0xff] %vm17, 0.0
    %25 = vst.msk [vmem:[#allocation2 + $0x38] sm:$0xff] %vm17, 0.0
    %26 = vst.msk [vmem:[#allocation2 + $0x40] sm:$0xff] %vm17, 0.0
    %27 = vst.msk [vmem:[#allocation2 + $0x48] sm:$0xff] %vm17, 0.0
    %28 = vst.msk [vmem:[#allocation2 + $0x50] sm:$0xff] %vm17, 0.0
    %29 = vst.msk [vmem:[#allocation2 + $0x58] sm:$0xff] %vm17, 0.0
    %30 = vst.msk [vmem:[#allocation2 + $0x60] sm:$0xff] %vm17, 0.0
    %31 = vst.msk [vmem:[#allocation2 + $0x68] sm:$0xff] %vm17, 0.0
    %32 = vst.msk [vmem:[#allocation2 + $0x70] sm:$0xff] %vm17, 0.0
    %33 = vst.msk [vmem:[#allocation2 + $0x78] sm:$0xff] %vm17, 0.0
  $region13: #{_lambda_.8} parent=0 // pred_fallthru
    _
  %p34 = scmp.eq.s32.totalorder 0, 0
  %p35 = pnand %p34, %p13
  %p36 = pneg %p35
  // Predicated region
  $region14: #{_lambda_.8} parent=0 // pred_check
    _
  $region15: #{_lambda_.8} parent=0 // pred_check_branch
    %38 = sbr.rel (%p35) target = $region17
  $region16: #{_lambda_.8} parent=0 // pred_region
    %vm39 = vcmask 123904
    %40 = vst.msk [vmem:[%s3] sm:$0x3] %vm39, 0.0
  $region17: #{_lambda_.8} parent=0 // pred_fallthru
    _
  %v41 = vld [vmem:[%s0] sm:$0xf]
  %v42 = vld [vmem:[%s0 + $0x4] sm:$0xf]
  %v43 = vld [vmem:[%s0 + $0x8] sm:$0xf]
  %v44 = vld [vmem:[%s0 + $0xc] sm:$0xf]
  %v45 = vld [vmem:[%s0 + $0x10] sm:$0xf]
  %v46 = vld [vmem:[%s0 + $0x14] sm:$0xf]
  %v47 = vld [vmem:[%s0 + $0x18] sm:$0xf]
  %v48 = vld [vmem:[%s0 + $0x1c] sm:$0xf]
  %v49 = vld [vmem:[%s0 + $0x20] sm:$0xf]
  %v50 = vld [vmem:[%s0 + $0x24] sm:$0xf]
  %v51 = vld [vmem:[%s0 + $0x28] sm:$0xf]
  %v52 = vld [vmem:[%s0 + $0x2c] sm:$0xf]
  %v53 = vld [vmem:[%s0 + $0x30] sm:$0xf]
  %v54 = vld [vmem:[%s0 + $0x34] sm:$0xf]
  %v55 = vld [vmem:[%s0 + $0x38] sm:$0xf]
  %v56 = vld [vmem:[%s0 + $0x3c] sm:$0xf]
  %v57 = vunpack.c.l.bf16 %v41
  %v58 = vunpack.c.l.bf16 %v42
  %v59 = vunpack.c.l.bf16 %v43
  %v60 = vunpack.c.l.bf16 %v44
  %v61 = vunpack.c.l.bf16 %v45
  %v62 = vunpack.c.l.bf16 %v46
  %v63 = vunpack.c.l.bf16 %v47
  %v64 = vunpack.c.l.bf16 %v48
  %v65 = vunpack.c.l.bf16 %v49
  %v66 = vunpack.c.l.bf16 %v50
  %v67 = vunpack.c.l.bf16 %v51
  %v68 = vunpack.c.l.bf16 %v52
  %v69 = vunpack.c.l.bf16 %v53
  %v70 = vunpack.c.l.bf16 %v54
  %v71 = vunpack.c.l.bf16 %v55
  %v72 = vunpack.c.l.bf16 %v56
  %vm73 = vcmp.gt.f32.partialorder %v57, 0.0
  %vm74 = vcmp.gt.f32.partialorder %v58, 0.0
  %vm75 = vcmp.gt.f32.partialorder %v59, 0.0
  %vm76 = vcmp.gt.f32.partialorder %v60, 0.0
  %vm77 = vcmp.gt.f32.partialorder %v61, 0.0
  %vm78 = vcmp.gt.f32.partialorder %v62, 0.0
  %vm79 = vcmp.gt.f32.partialorder %v63, 0.0
  %vm80 = vcmp.gt.f32.partialorder %v64, 0.0
  %vm81 = vcmp.gt.f32.partialorder %v65, 0.0
  %vm82 = vcmp.gt.f32.partialorder %v66, 0.0
  %vm83 = vcmp.gt.f32.partialorder %v67, 0.0
  %vm84 = vcmp.gt.f32.partialorder %v68, 0.0
  %vm85 = vcmp.gt.f32.partialorder %v69, 0.0
  %vm86 = vcmp.gt.f32.partialorder %v70, 0.0
  %vm87 = vcmp.gt.f32.partialorder %v71, 0.0
  %vm88 = vcmp.gt.f32.partialorder %v72, 0.0
  %v89 = vmul.f32 %v57, 0.20019531
  %v90 = vmul.f32 %v58, 0.20019531
  %v91 = vmul.f32 %v59, 0.20019531
  %v92 = vmul.f32 %v60, 0.20019531
  %v93 = vmul.f32 %v61, 0.20019531
  %v94 = vmul.f32 %v62, 0.20019531
  %v95 = vmul.f32 %v63, 0.20019531
  %v96 = vmul.f32 %v64, 0.20019531
  %v97 = vmul.f32 %v65, 0.20019531
  %v98 = vmul.f32 %v66, 0.20019531
  %v99 = vmul.f32 %v67, 0.20019531
  %v100 = vmul.f32 %v68, 0.20019531
  %v101 = vmul.f32 %v69, 0.20019531
  %v102 = vmul.f32 %v70, 0.20019531
  %v103 = vmul.f32 %v71, 0.20019531
  %v104 = vmul.f32 %v72, 0.20019531
  %v105 = vpack.c.bf16 %v89, %v89
  %v106 = vpack.c.bf16 %v90, %v90
  %v107 = vpack.c.bf16 %v91, %v91
  %v108 = vpack.c.bf16 %v92, %v92
  %v109 = vpack.c.bf16 %v93, %v93
  %v110 = vpack.c.bf16 %v94, %v94
  %v111 = vpack.c.bf16 %v95, %v95
  %v112 = vpack.c.bf16 %v96, %v96
  %v113 = vpack.c.bf16 %v97, %v97
  %v114 = vpack.c.bf16 %v98, %v98
  %v115 = vpack.c.bf16 %v99, %v99
  %v116 = vpack.c.bf16 %v100, %v100
  %v117 = vpack.c.bf16 %v101, %v101
  %v118 = vpack.c.bf16 %v102, %v102
  %v119 = vpack.c.bf16 %v103, %v103
  %v120 = vpack.c.bf16 %v104, %v104
  %vm121 = vmpackc.low %vm73, %vm73
  %vm122 = vmpackc.low %vm74, %vm74
  %vm123 = vmpackc.low %vm75, %vm75
  %vm124 = vmpackc.low %vm76, %vm76
  %vm125 = vmpackc.low %vm77, %vm77
  %vm126 = vmpackc.low %vm78, %vm78
  %vm127 = vmpackc.low %vm79, %vm79
  %vm128 = vmpackc.low %vm80, %vm80
  %vm129 = vmpackc.low %vm81, %vm81
  %vm130 = vmpackc.low %vm82, %vm82
  %vm131 = vmpackc.low %vm83, %vm83
  %vm132 = vmpackc.low %vm84, %vm84
  %vm133 = vmpackc.low %vm85, %vm85
  %vm134 = vmpackc.low %vm86, %vm86
  %vm135 = vmpackc.low %vm87, %vm87
  %vm136 = vmpackc.low %vm88, %vm88
  %v137 = vsel %vm121, %v41, %v105
  %v138 = vsel %vm122, %v42, %v106
  %v139 = vsel %vm123, %v43, %v107
  %v140 = vsel %vm124, %v44, %v108
  %v141 = vsel %vm125, %v45, %v109
  %v142 = vsel %vm126, %v46, %v110
  %v143 = vsel %vm127, %v47, %v111
  %v144 = vsel %vm128, %v48, %v112
  %v145 = vsel %vm129, %v49, %v113
  %v146 = vsel %vm130, %v50, %v114
  %v147 = vsel %vm131, %v51, %v115
  %v148 = vsel %vm132, %v52, %v116
  %v149 = vsel %vm133, %v53, %v117
  %v150 = vsel %vm134, %v54, %v118
  %v151 = vsel %vm135, %v55, %v119
  %v152 = vsel %vm136, %v56, %v120
  %v153 = vld [vmem:[#allocation2] sm:$0xff]
  %v154 = vld [vmem:[#allocation2 + $0x8] sm:$0xff]
  %v155 = vld [vmem:[#allocation2 + $0x10] sm:$0xff]
  %v156 = vld [vmem:[#allocation2 + $0x18] sm:$0xff]
  %v157 = vld [vmem:[#allocation2 + $0x20] sm:$0xff]
  %v158 = vld [vmem:[#allocation2 + $0x28] sm:$0xff]
  %v159 = vld [vmem:[#allocation2 + $0x30] sm:$0xff]
  %v160 = vld [vmem:[#allocation2 + $0x38] sm:$0xff]
  %v161 = vld [vmem:[#allocation2 + $0x40] sm:$0xff]
  %v162 = vld [vmem:[#allocation2 + $0x48] sm:$0xff]
  %v163 = vld [vmem:[#allocation2 + $0x50] sm:$0xff]
  %v164 = vld [vmem:[#allocation2 + $0x58] sm:$0xff]
  %v165 = vld [vmem:[#allocation2 + $0x60] sm:$0xff]
  %v166 = vld [vmem:[#allocation2 + $0x68] sm:$0xff]
  %v167 = vld [vmem:[#allocation2 + $0x70] sm:$0xff]
  %v168 = vld [vmem:[#allocation2 + $0x78] sm:$0xff]
  %v169 = vld [vmem:[%s1] sm:$0xf]
  %v170 = vld [vmem:[%s1 + $0x4] sm:$0xf]
  %v171 = vld [vmem:[%s1 + $0x8] sm:$0xf]
  %v172 = vld [vmem:[%s1 + $0xc] sm:$0xf]
  %v173 = vld [vmem:[%s1 + $0x10] sm:$0xf]
  %v174 = vld [vmem:[%s1 + $0x14] sm:$0xf]
  %v175 = vld [vmem:[%s1 + $0x18] sm:$0xf]
  %v176 = vld [vmem:[%s1 + $0x1c] sm:$0xf]
  %v177 = vld [vmem:[%s1 + $0x20] sm:$0xf]
  %v178 = vld [vmem:[%s1 + $0x24] sm:$0xf]
  %v179 = vld [vmem:[%s1 + $0x28] sm:$0xf]
  %v180 = vld [vmem:[%s1 + $0x2c] sm:$0xf]
  %v181 = vld [vmem:[%s1 + $0x30] sm:$0xf]
  %v182 = vld [vmem:[%s1 + $0x34] sm:$0xf]
  %v183 = vld [vmem:[%s1 + $0x38] sm:$0xf]
  %v184 = vld [vmem:[%s1 + $0x3c] sm:$0xf]
  %v201 = vunpack.c.l.b16 %v137
  %v202 = vunpack.c.l.b16 %v138
  %v203 = vunpack.c.l.b16 %v139
  %v204 = vunpack.c.l.b16 %v140
  %v205 = vunpack.c.l.b16 %v141
  %v206 = vunpack.c.l.b16 %v142
  %v207 = vunpack.c.l.b16 %v143
  %v208 = vunpack.c.l.b16 %v144
  %v209 = vunpack.c.l.b16 %v145
  %v210 = vunpack.c.l.b16 %v146
  %v211 = vunpack.c.l.b16 %v147
  %v212 = vunpack.c.l.b16 %v148
  %v213 = vunpack.c.l.b16 %v149
  %v214 = vunpack.c.l.b16 %v150
  %v215 = vunpack.c.l.b16 %v151
  %v216 = vunpack.c.l.b16 %v152
  %v217 = vpack.c.b16 %v202, %v201
  %v218 = vpack.c.b16 %v204, %v203
  %v219 = vpack.c.b16 %v206, %v205
  %v220 = vpack.c.b16 %v208, %v207
  %v221 = vpack.c.b16 %v210, %v209
  %v222 = vpack.c.b16 %v212, %v211
  %v223 = vpack.c.b16 %v214, %v213
  %v224 = vpack.c.b16 %v216, %v215
  %v249 = vunpack.c.l.b16 %v169
  %v250 = vunpack.c.l.b16 %v170
  %v251 = vunpack.c.l.b16 %v171
  %v252 = vunpack.c.l.b16 %v172
  %v253 = vunpack.c.l.b16 %v173
  %v254 = vunpack.c.l.b16 %v174
  %v255 = vunpack.c.l.b16 %v175
  %v256 = vunpack.c.l.b16 %v176
  %v257 = vunpack.c.l.b16 %v177
  %v258 = vunpack.c.l.b16 %v178
  %v259 = vunpack.c.l.b16 %v179
  %v260 = vunpack.c.l.b16 %v180
  %v261 = vunpack.c.l.b16 %v181
  %v262 = vunpack.c.l.b16 %v182
  %v263 = vunpack.c.l.b16 %v183
  %v264 = vunpack.c.l.b16 %v184
  %v265 = vpack.c.b16 %v250, %v249
  %v266 = vpack.c.b16 %v252, %v251
  %v267 = vpack.c.b16 %v254, %v253
  %v268 = vpack.c.b16 %v256, %v255
  %v269 = vpack.c.b16 %v258, %v257
  %v270 = vpack.c.b16 %v260, %v259
  %v271 = vpack.c.b16 %v262, %v261
  %v272 = vpack.c.b16 %v264, %v263
  %281 = vmatpush.bf16.msra.mxu0 %v272
  %282 = vmatpush.bf16.msra.mxu0 %v271
  %283 = vmatpush.bf16.msra.mxu0 %v270
  %284 = vmatpush.bf16.msra.mxu0 %v269
  %285 = vmatpush.bf16.msra.mxu0 %v268
  %286 = vmatpush.bf16.msra.mxu0 %v267
  %287 = vmatpush.bf16.msra.mxu0 %v266
  %288 = vmatpush.bf16.msra.mxu0 %v265
  %289 = vmatmul.bf16.gmra.mxu0 %v217
  %v290 = vpop.f32.mrf.mxu0
  %v291 = vadd.f32 0.0, %v290
  %v292 = vpop.f32.mrf.mxu0
  %v293 = vadd.f32 0.0, %v292
  %294 = vmatmul.bf16.gmra.mxu0 %v218
  %v295 = vpop.f32.mrf.mxu0
  %v296 = vadd.f32 0.0, %v295
  %v297 = vpop.f32.mrf.mxu0
  %v298 = vadd.f32 0.0, %v297
  %299 = vmatmul.bf16.gmra.mxu0 %v219
  %v300 = vpop.f32.mrf.mxu0
  %v301 = vadd.f32 0.0, %v300
  %v302 = vpop.f32.mrf.mxu0
  %v303 = vadd.f32 0.0, %v302
  %304 = vmatmul.bf16.gmra.mxu0 %v220
  %v305 = vpop.f32.mrf.mxu0
  %v306 = vadd.f32 0.0, %v305
  %v307 = vpop.f32.mrf.mxu0
  %v308 = vadd.f32 0.0, %v307
  %309 = vmatmul.bf16.gmra.mxu0 %v221
  %v310 = vpop.f32.mrf.mxu0
  %v311 = vadd.f32 0.0, %v310
  %v312 = vpop.f32.mrf.mxu0
  %v313 = vadd.f32 0.0, %v312
  %314 = vmatmul.bf16.gmra.mxu0 %v222
  %v315 = vpop.f32.mrf.mxu0
  %v316 = vadd.f32 0.0, %v315
  %v317 = vpop.f32.mrf.mxu0
  %v318 = vadd.f32 0.0, %v317
  %319 = vmatmul.bf16.gmra.mxu0 %v223
  %v320 = vpop.f32.mrf.mxu0
  %v321 = vadd.f32 0.0, %v320
  %v322 = vpop.f32.mrf.mxu0
  %v323 = vadd.f32 0.0, %v322
  %324 = vmatmul.bf16.gmra.mxu0 %v224
  %v325 = vpop.f32.mrf.mxu0
  %v326 = vadd.f32 0.0, %v325
  %v327 = vpop.f32.mrf.mxu0
  %v328 = vadd.f32 0.0, %v327
  %329 = vdwg.mxu0
  %v330 = vadd.f32 %v153, %v291
  %v331 = vadd.f32 %v154, %v293
  %v332 = vadd.f32 %v155, %v296
  %v333 = vadd.f32 %v156, %v298
  %v334 = vadd.f32 %v157, %v301
  %v335 = vadd.f32 %v158, %v303
  %v336 = vadd.f32 %v159, %v306
  %v337 = vadd.f32 %v160, %v308
  %v338 = vadd.f32 %v161, %v311
  %v339 = vadd.f32 %v162, %v313
  %v340 = vadd.f32 %v163, %v316
  %v341 = vadd.f32 %v164, %v318
  %v342 = vadd.f32 %v165, %v321
  %v343 = vadd.f32 %v166, %v323
  %v344 = vadd.f32 %v167, %v326
  %v345 = vadd.f32 %v168, %v328
  %vm346 = vcmask 130048
  %347 = vst.msk [vmem:[#allocation2] sm:$0xff] %vm346, %v330
  %348 = vst.msk [vmem:[#allocation2 + $0x8] sm:$0xff] %vm346, %v331
  %349 = vst.msk [vmem:[#allocation2 + $0x10] sm:$0xff] %vm346, %v332
  %350 = vst.msk [vmem:[#allocation2 + $0x18] sm:$0xff] %vm346, %v333
  %351 = vst.msk [vmem:[#allocation2 + $0x20] sm:$0xff] %vm346, %v334
  %352 = vst.msk [vmem:[#allocation2 + $0x28] sm:$0xff] %vm346, %v335
  %353 = vst.msk [vmem:[#allocation2 + $0x30] sm:$0xff] %vm346, %v336
  %354 = vst.msk [vmem:[#allocation2 + $0x38] sm:$0xff] %vm346, %v337
  %355 = vst.msk [vmem:[#allocation2 + $0x40] sm:$0xff] %vm346, %v338
  %356 = vst.msk [vmem:[#allocation2 + $0x48] sm:$0xff] %vm346, %v339
  %357 = vst.msk [vmem:[#allocation2 + $0x50] sm:$0xff] %vm346, %v340
  %358 = vst.msk [vmem:[#allocation2 + $0x58] sm:$0xff] %vm346, %v341
  %359 = vst.msk [vmem:[#allocation2 + $0x60] sm:$0xff] %vm346, %v342
  %360 = vst.msk [vmem:[#allocation2 + $0x68] sm:$0xff] %vm346, %v343
  %361 = vst.msk [vmem:[#allocation2 + $0x70] sm:$0xff] %vm346, %v344
  %362 = vst.msk [vmem:[#allocation2 + $0x78] sm:$0xff] %vm346, %v345
  // Predicated region
  $region18: #{_lambda_.8} parent=0 // pred_check
    %p363 = pneg %p13
  $region19: #{_lambda_.8} parent=0 // pred_check_branch
    %365 = sbr.rel (%p363) target = $region21
  $region20: #{_lambda_.8} parent=0 // pred_region
    %v366 = vld [vmem:[#allocation2] sm:$0xff]
    %v367 = vld [vmem:[#allocation2 + $0x8] sm:$0xff]
    %v368 = vld [vmem:[#allocation2 + $0x10] sm:$0xff]
    %v369 = vld [vmem:[#allocation2 + $0x18] sm:$0xff]
    %v370 = vld [vmem:[#allocation2 + $0x20] sm:$0xff]
    %v371 = vld [vmem:[#allocation2 + $0x28] sm:$0xff]
    %v372 = vld [vmem:[#allocation2 + $0x30] sm:$0xff]
    %v373 = vld [vmem:[#allocation2 + $0x38] sm:$0xff]
    %v374 = vld [vmem:[#allocation2 + $0x40] sm:$0xff]
    %v375 = vld [vmem:[#allocation2 + $0x48] sm:$0xff]
    %v376 = vld [vmem:[#allocation2 + $0x50] sm:$0xff]
    %v377 = vld [vmem:[#allocation2 + $0x58] sm:$0xff]
    %v378 = vld [vmem:[#allocation2 + $0x60] sm:$0xff]
    %v379 = vld [vmem:[#allocation2 + $0x68] sm:$0xff]
    %v380 = vld [vmem:[#allocation2 + $0x70] sm:$0xff]
    %v381 = vld [vmem:[#allocation2 + $0x78] sm:$0xff]
    %v382 = vpack.c.bf16 %v366, %v366
    %v383 = vpack.c.bf16 %v367, %v367
    %v384 = vpack.c.bf16 %v368, %v368
    %v385 = vpack.c.bf16 %v369, %v369
    %v386 = vpack.c.bf16 %v370, %v370
    %v387 = vpack.c.bf16 %v371, %v371
    %v388 = vpack.c.bf16 %v372, %v372
    %v389 = vpack.c.bf16 %v373, %v373
    %v390 = vpack.c.bf16 %v374, %v374
    %v391 = vpack.c.bf16 %v375, %v375
    %v392 = vpack.c.bf16 %v376, %v376
    %v393 = vpack.c.bf16 %v377, %v377
    %v394 = vpack.c.bf16 %v378, %v378
    %v395 = vpack.c.bf16 %v379, %v379
    %v396 = vpack.c.bf16 %v380, %v380
    %v397 = vpack.c.bf16 %v381, %v381
    %vm398 = vcmask 125952
    %399 = vst.msk [vmem:[%s2] sm:$0xf] %vm398, %v382
    %400 = vst.msk [vmem:[%s2 + $0x4] sm:$0xf] %vm398, %v383
    %401 = vst.msk [vmem:[%s2 + $0x8] sm:$0xf] %vm398, %v384
    %402 = vst.msk [vmem:[%s2 + $0xc] sm:$0xf] %vm398, %v385
    %403 = vst.msk [vmem:[%s2 + $0x10] sm:$0xf] %vm398, %v386
    %404 = vst.msk [vmem:[%s2 + $0x14] sm:$0xf] %vm398, %v387
    %405 = vst.msk [vmem:[%s2 + $0x18] sm:$0xf] %vm398, %v388
    %406 = vst.msk [vmem:[%s2 + $0x1c] sm:$0xf] %vm398, %v389
    %407 = vst.msk [vmem:[%s2 + $0x20] sm:$0xf] %vm398, %v390
    %408 = vst.msk [vmem:[%s2 + $0x24] sm:$0xf] %vm398, %v391
    %409 = vst.msk [vmem:[%s2 + $0x28] sm:$0xf] %vm398, %v392
    %410 = vst.msk [vmem:[%s2 + $0x2c] sm:$0xf] %vm398, %v393
    %411 = vst.msk [vmem:[%s2 + $0x30] sm:$0xf] %vm398, %v394
    %412 = vst.msk [vmem:[%s2 + $0x34] sm:$0xf] %vm398, %v395
    %413 = vst.msk [vmem:[%s2 + $0x38] sm:$0xf] %vm398, %v396
    %414 = vst.msk [vmem:[%s2 + $0x3c] sm:$0xf] %vm398, %v397
    %v415 = vld [vmem:[%s3] sm:$0x3]
    %v416 = vsel %vm346, %v366, 0.0
    %v417 = vsel %vm346, %v367, 0.0
    %v418 = vadd.f32 %v416, %v417
    %v419 = vsel %vm346, %v368, 0.0
    %v420 = vadd.f32 %v418, %v419
    %v421 = vsel %vm346, %v369, 0.0
    %v422 = vadd.f32 %v420, %v421
    %v423 = vsel %vm346, %v370, 0.0
    %v424 = vadd.f32 %v422, %v423
    %v425 = vsel %vm346, %v371, 0.0
    %v426 = vadd.f32 %v424, %v425
    %v427 = vsel %vm346, %v372, 0.0
    %v428 = vadd.f32 %v426, %v427
    %v429 = vsel %vm346, %v373, 0.0
    %v430 = vadd.f32 %v428, %v429
    %v431 = vsel %vm346, %v374, 0.0
    %v432 = vadd.f32 %v430, %v431
    %v433 = vsel %vm346, %v375, 0.0
    %v434 = vadd.f32 %v432, %v433
    %v435 = vsel %vm346, %v376, 0.0
    %v436 = vadd.f32 %v434, %v435
    %v437 = vsel %vm346, %v377, 0.0
    %v438 = vadd.f32 %v436, %v437
    %v439 = vsel %vm346, %v378, 0.0
    %v440 = vadd.f32 %v438, %v439
    %v441 = vsel %vm346, %v379, 0.0
    %v442 = vadd.f32 %v440, %v441
    %v443 = vsel %vm346, %v380, 0.0
    %v444 = vadd.f32 %v442, %v443
    %v445 = vsel %vm346, %v381, 0.0
    %v446 = vadd.f32 %v444, %v445
    %v447 = vrot.slane %v446, 4
    %v448 = vadd.f32 %v446, %v447
    %v449 = vrot.slane %v448, 2
    %v450 = vadd.f32 %v448, %v449
    %v451 = vrot.slane %v450, 1
    %v452 = vadd.f32 %v450, %v451
    %v453 = vmul.f32 %v366, %v366
    %v454 = vmul.f32 %v367, %v367
    %v455 = vmul.f32 %v368, %v368
    %v456 = vmul.f32 %v369, %v369
    %v457 = vmul.f32 %v370, %v370
    %v458 = vmul.f32 %v371, %v371
    %v459 = vmul.f32 %v372, %v372
    %v460 = vmul.f32 %v373, %v373
    %v461 = vmul.f32 %v374, %v374
    %v462 = vmul.f32 %v375, %v375
    %v463 = vmul.f32 %v376, %v376
    %v464 = vmul.f32 %v377, %v377
    %v465 = vmul.f32 %v378, %v378
    %v466 = vmul.f32 %v379, %v379
    %v467 = vmul.f32 %v380, %v380
    %v468 = vmul.f32 %v381, %v381
    %v469 = vsel %vm346, %v453, 0.0
    %v470 = vsel %vm346, %v454, 0.0
    %v471 = vadd.f32 %v469, %v470
    %v472 = vsel %vm346, %v455, 0.0
    %v473 = vadd.f32 %v471, %v472
    %v474 = vsel %vm346, %v456, 0.0
    %v475 = vadd.f32 %v473, %v474
    %v476 = vsel %vm346, %v457, 0.0
    %v477 = vadd.f32 %v475, %v476
    %v478 = vsel %vm346, %v458, 0.0
    %v479 = vadd.f32 %v477, %v478
    %v480 = vsel %vm346, %v459, 0.0
    %v481 = vadd.f32 %v479, %v480
    %v482 = vsel %vm346, %v460, 0.0
    %v483 = vadd.f32 %v481, %v482
    %v484 = vsel %vm346, %v461, 0.0
    %v485 = vadd.f32 %v483, %v484
    %v486 = vsel %vm346, %v462, 0.0
    %v487 = vadd.f32 %v485, %v486
    %v488 = vsel %vm346, %v463, 0.0
    %v489 = vadd.f32 %v487, %v488
    %v490 = vsel %vm346, %v464, 0.0
    %v491 = vadd.f32 %v489, %v490
    %v492 = vsel %vm346, %v465, 0.0
    %v493 = vadd.f32 %v491, %v492
    %v494 = vsel %vm346, %v466, 0.0
    %v495 = vadd.f32 %v493, %v494
    %v496 = vsel %vm346, %v467, 0.0
    %v497 = vadd.f32 %v495, %v496
    %v498 = vsel %vm346, %v468, 0.0
    %v499 = vadd.f32 %v497, %v498
    %v500 = vrot.slane %v499, 4
    %v501 = vadd.f32 %v499, %v500
    %v502 = vrot.slane %v501, 2
    %v503 = vadd.f32 %v501, %v502
    %v504 = vrot.slane %v503, 1
    %v505 = vadd.f32 %v503, %v504
    %vm506 = vcmask 1040384
    %v507 = vsel %vm506, %v452, %v505
    %v508 = vadd.f32 %v415, %v507
    %vm509 = vcmask 123904
    %510 = vst.msk [vmem:[%s3] sm:$0x3] %vm509, %v508
  $region21: #{_lambda_.8} parent=0 // pred_fallthru
    _
  // Predicated region
  $region22: #{_lambda_.8} parent=0 // pred_check
    _
  $region23: #{_lambda_.8} parent=0 // pred_check_branch
    %512 = sbr.rel (0) target = $region25
  $region24: #{_lambda_.8} parent=0 // pred_region
    _
  $region25: #{_lambda_.8} parent=0 // pred_fallthru
    _
  // Predicated region
  $region26: #{_lambda_.8} parent=0 // pred_check
    _
  $region27: #{_lambda_.8} parent=0 // pred_check_branch
    %514 = sbr.rel (0) target = $region29
  $region28: #{_lambda_.8} parent=0 // pred_region
    _
  $region29: #{_lambda_.8} parent=0 // pred_fallthru
    _
  // Predicated region
  $region30: #{_lambda_.8} parent=0 // pred_check
    _
  $region31: #{_lambda_.8} parent=0 // pred_check_branch
    %516 = sbr.rel (0) target = $region33
  $region32: #{_lambda_.8} parent=0 // pred_region
    _
  $region33: #{_lambda_.8} parent=0 // pred_fallthru
    _
  // Predicated region
  $region34: #{_lambda_.8} parent=0 // pred_check
    _
  $region35: #{_lambda_.8} parent=0 // pred_check_branch
    %518 = sbr.rel (0) target = $region37
  $region36: #{_lambda_.8} parent=0 // pred_region
    _
  $region37: #{_lambda_.8} parent=0 // pred_fallthru
    _

// kernel: _lambda_.9
$region0: #{_lambda_.9}
  #allocation0 [shape = 'u32[]', space=smem, size = 0x4, offset = 0x4, fixed_abs, tag = 'smem constant byte address 0x4 - core index']
  #allocation1 [shape = 'u32[72,128]{1,0:T(1,128)}', space=vmem, size = 0x9000, scoped, tag = 'internal scratch']
  %s0 = inlined_call_operand.vmem [shape: bf16[128,16], index: 0, kind: input, shape index: {}]
  %s1 = inlined_call_operand.vmem [shape: f32[1,16], index: 1, kind: input, shape index: {}]
  %s2 = inlined_call_operand.vmem [shape: f32[1,16], index: 2, kind: input, shape index: {}]
  %s3 = inlined_call_operand.vmem [shape: bf16[128,16], index: 3, kind: output, shape index: {}]
  %s4 = sld [smem:[#allocation0]]
  $region22: #{_lambda_.9} parent=0
    _
  %s6 = ssub.s32 1, %s4
  %s7 = scalar_select 0, %s6, %s4
  // Predicated region
  $region2: #{_lambda_.9} parent=0 // pred_check
    _
  $region3: #{_lambda_.9} parent=0 // pred_check_branch
    %9 = sbr.rel (0) target = $region5
  $region4: #{_lambda_.9} parent=0 // pred_region
    _
  $region5: #{_lambda_.9} parent=0 // pred_fallthru
    _
  // Predicated region
  $region6: #{_lambda_.9} parent=0 // pred_check
    _
  $region7: #{_lambda_.9} parent=0 // pred_check_branch
    %11 = sbr.rel (0) target = $region9
  $region8: #{_lambda_.9} parent=0 // pred_region
    _
  $region9: #{_lambda_.9} parent=0 // pred_fallthru
    _
  // Predicated region
  $region10: #{_lambda_.9} parent=0 // pred_check
    _
  $region11: #{_lambda_.9} parent=0 // pred_check_branch
    %13 = sbr.rel (0) target = $region13
  $region12: #{_lambda_.9} parent=0 // pred_region
    _
  $region13: #{_lambda_.9} parent=0 // pred_fallthru
    _
  %v14 = vld [vmem:[%s0] sm:$0xf]
  %v15 = vld [vmem:[%s0 + $0x4] sm:$0xf]
  %v16 = vld [vmem:[%s0 + $0x8] sm:$0xf]
  %v17 = vld [vmem:[%s0 + $0xc] sm:$0xf]
  %v18 = vld [vmem:[%s0 + $0x10] sm:$0xf]
  %v19 = vld [vmem:[%s0 + $0x14] sm:$0xf]
  %v20 = vld [vmem:[%s0 + $0x18] sm:$0xf]
  %v21 = vld [vmem:[%s0 + $0x1c] sm:$0xf]
  %v22 = vld [vmem:[%s0 + $0x20] sm:$0xf]
  %v23 = vld [vmem:[%s0 + $0x24] sm:$0xf]
  %v24 = vld [vmem:[%s0 + $0x28] sm:$0xf]
  %v25 = vld [vmem:[%s0 + $0x2c] sm:$0xf]
  %v26 = vld [vmem:[%s0 + $0x30] sm:$0xf]
  %v27 = vld [vmem:[%s0 + $0x34] sm:$0xf]
  %v28 = vld [vmem:[%s0 + $0x38] sm:$0xf]
  %v29 = vld [vmem:[%s0 + $0x3c] sm:$0xf]
  %v30 = vunpack.c.l.bf16 %v14
  %v31 = vunpack.c.l.bf16 %v15
  %v32 = vunpack.c.l.bf16 %v16
  %v33 = vunpack.c.l.bf16 %v17
  %v34 = vunpack.c.l.bf16 %v18
  %v35 = vunpack.c.l.bf16 %v19
  %v36 = vunpack.c.l.bf16 %v20
  %v37 = vunpack.c.l.bf16 %v21
  %v38 = vunpack.c.l.bf16 %v22
  %v39 = vunpack.c.l.bf16 %v23
  %v40 = vunpack.c.l.bf16 %v24
  %v41 = vunpack.c.l.bf16 %v25
  %v42 = vunpack.c.l.bf16 %v26
  %v43 = vunpack.c.l.bf16 %v27
  %v44 = vunpack.c.l.bf16 %v28
  %v45 = vunpack.c.l.bf16 %v29
  %v46 = vld [vmem:[%s1] sm:$0x1]
  %v48 = vperm.slane %v46, 0
  %v50 = vmul.f32 %v30, %v48
  %v51 = vmul.f32 %v31, %v48
  %v52 = vmul.f32 %v32, %v48
  %v53 = vmul.f32 %v33, %v48
  %v54 = vmul.f32 %v34, %v48
  %v55 = vmul.f32 %v35, %v48
  %v56 = vmul.f32 %v36, %v48
  %v57 = vmul.f32 %v37, %v48
  %v58 = vmul.f32 %v38, %v48
  %v59 = vmul.f32 %v39, %v48
  %v60 = vmul.f32 %v40, %v48
  %v61 = vmul.f32 %v41, %v48
  %v62 = vmul.f32 %v42, %v48
  %v63 = vmul.f32 %v43, %v48
  %v64 = vmul.f32 %v44, %v48
  %v65 = vmul.f32 %v45, %v48
  %v66 = vld [vmem:[%s2] sm:$0x1]
  %v68 = vperm.slane %v66, 0
  %v70 = vadd.f32 %v50, %v68
  %v71 = vadd.f32 %v51, %v68
  %v72 = vadd.f32 %v52, %v68
  %v73 = vadd.f32 %v53, %v68
  %v74 = vadd.f32 %v54, %v68
  %v75 = vadd.f32 %v55, %v68
  %v76 = vadd.f32 %v56, %v68
  %v77 = vadd.f32 %v57, %v68
  %v78 = vadd.f32 %v58, %v68
  %v79 = vadd.f32 %v59, %v68
  %v80 = vadd.f32 %v60, %v68
  %v81 = vadd.f32 %v61, %v68
  %v82 = vadd.f32 %v62, %v68
  %v83 = vadd.f32 %v63, %v68
  %v84 = vadd.f32 %v64, %v68
  %v85 = vadd.f32 %v65, %v68
  %v86 = vpack.c.bf16 %v70, %v70
  %v87 = vpack.c.bf16 %v71, %v71
  %v88 = vpack.c.bf16 %v72, %v72
  %v89 = vpack.c.bf16 %v73, %v73
  %v90 = vpack.c.bf16 %v74, %v74
  %v91 = vpack.c.bf16 %v75, %v75
  %v92 = vpack.c.bf16 %v76, %v76
  %v93 = vpack.c.bf16 %v77, %v77
  %v94 = vpack.c.bf16 %v78, %v78
  %v95 = vpack.c.bf16 %v79, %v79
  %v96 = vpack.c.bf16 %v80, %v80
  %v97 = vpack.c.bf16 %v81, %v81
  %v98 = vpack.c.bf16 %v82, %v82
  %v99 = vpack.c.bf16 %v83, %v83
  %v100 = vpack.c.bf16 %v84, %v84
  %v101 = vpack.c.bf16 %v85, %v85
  %vm102 = vcmask 125952
  %103 = vst.msk [vmem:[%s3] sm:$0xf] %vm102, %v86
  %104 = vst.msk [vmem:[%s3 + $0x4] sm:$0xf] %vm102, %v87
  %105 = vst.msk [vmem:[%s3 + $0x8] sm:$0xf] %vm102, %v88
  %106 = vst.msk [vmem:[%s3 + $0xc] sm:$0xf] %vm102, %v89
  %107 = vst.msk [vmem:[%s3 + $0x10] sm:$0xf] %vm102, %v90
  %108 = vst.msk [vmem:[%s3 + $0x14] sm:$0xf] %vm102, %v91
  %109 = vst.msk [vmem:[%s3 + $0x18] sm:$0xf] %vm102, %v92
  %110 = vst.msk [vmem:[%s3 + $0x1c] sm:$0xf] %vm102, %v93
  %111 = vst.msk [vmem:[%s3 + $0x20] sm:$0xf] %vm102, %v94
  %112 = vst.msk [vmem:[%s3 + $0x24] sm:$0xf] %vm102, %v95
  %113 = vst.msk [vmem:[%s3 + $0x28] sm:$0xf] %vm102, %v96
  %114 = vst.msk [vmem:[%s3 + $0x2c] sm:$0xf] %vm102, %v97
  %115 = vst.msk [vmem:[%s3 + $0x30] sm:$0xf] %vm102, %v98
  %116 = vst.msk [vmem:[%s3 + $0x34] sm:$0xf] %vm102, %v99
  %117 = vst.msk [vmem:[%s3 + $0x38] sm:$0xf] %vm102, %v100
  %118 = vst.msk [vmem:[%s3 + $0x3c] sm:$0xf] %vm102, %v101
  // Predicated region
  $region14: #{_lambda_.9} parent=0 // pred_check
    _
  $region15: #{_lambda_.9} parent=0 // pred_check_branch
    %120 = sbr.rel (0) target = $region17
  $region16: #{_lambda_.9} parent=0 // pred_region
    _
  $region17: #{_lambda_.9} parent=0 // pred_fallthru
    _
  // Predicated region
  $region18: #{_lambda_.9} parent=0 // pred_check
    _
  $region19: #{_lambda_.9} parent=0 // pred_check_branch
    %122 = sbr.rel (0) target = $region21
  $region20: #{_lambda_.9} parent=0 // pred_region
    _
  $region21: #{_lambda_.9} parent=0 // pred_fallthru
    _

// kernel: _lambda_.11
$region0: #{_lambda_.11}
  #allocation0 [shape = 'u32[]', space=smem, size = 0x4, offset = 0x4, fixed_abs, tag = 'smem constant byte address 0x4 - core index']
  #allocation1 [shape = 'u32[72,128]{1,0:T(1,128)}', space=vmem, size = 0x9000, scoped, tag = 'internal scratch']
  #allocation2 [shape = 'f32[128,32]{1,0:T(8,128)}', space=vmem, size = 0x10000, scoped, tag = 'scratch operand']
  %s0 = inlined_call_operand.vmem [shape: bf16[128,288], index: 0, kind: input, shape index: {}]
  %s1 = inlined_call_operand.vmem [shape: bf16[288,32], index: 1, kind: input, shape index: {}]
  %s2 = inlined_call_operand.vmem [shape: bf16[128,32], index: 2, kind: output, shape index: {0}]
  %s3 = inlined_call_operand.vmem [shape: f32[2,32], index: 3, kind: output, shape index: {1}]
  %4 = xla_tuple %s2, %s3
  %s5 = sld [smem:[#allocation0]]
  $region38: #{_lambda_.11} parent=0
    _
  %s7 = ssub.s32 1, %s5
  %s8 = scalar_select 0, %s7, %s5
  // Predicated region
  $region2: #{_lambda_.11} parent=0 // pred_check
    _
  $region3: #{_lambda_.11} parent=0 // pred_check_branch
    %10 = sbr.rel (0) target = $region5
  $region4: #{_lambda_.11} parent=0 // pred_region
    _
  $region5: #{_lambda_.11} parent=0 // pred_fallthru
    _
  // Predicated region
  $region6: #{_lambda_.11} parent=0 // pred_check
    _
  $region7: #{_lambda_.11} parent=0 // pred_check_branch
    %12 = sbr.rel (0) target = $region9
  $region8: #{_lambda_.11} parent=0 // pred_region
    _
  $region9: #{_lambda_.11} parent=0 // pred_fallthru
    _
  %p14 = scmp.eq.s32.totalorder 0, 0
  // Predicated region
  $region10: #{_lambda_.11} parent=0 // pred_check
    %p15 = pneg %p14
  $region11: #{_lambda_.11} parent=0 // pred_check_branch
    %17 = sbr.rel (%p15) target = $region13
  $region12: #{_lambda_.11} parent=0 // pred_region
    %vm18 = vcmask 261120
    %19 = vst.msk [vmem:[#allocation2] sm:$0xff] %vm18, 0.0
    %20 = vst.msk [vmem:[#allocation2 + $0x8] sm:$0xff] %vm18, 0.0
    %21 = vst.msk [vmem:[#allocation2 + $0x10] sm:$0xff] %vm18, 0.0
    %22 = vst.msk [vmem:[#allocation2 + $0x18] sm:$0xff] %vm18, 0.0
    %23 = vst.msk [vmem:[#allocation2 + $0x20] sm:$0xff] %vm18, 0.0
    %24 = vst.msk [vmem:[#allocation2 + $0x28] sm:$0xff] %vm18, 0.0
    %25 = vst.msk [vmem:[#allocation2 + $0x30] sm:$0xff] %vm18, 0.0
    %26 = vst.msk [vmem:[#allocation2 + $0x38] sm:$0xff] %vm18, 0.0
    %27 = vst.msk [vmem:[#allocation2 + $0x40] sm:$0xff] %vm18, 0.0
    %28 = vst.msk [vmem:[#allocation2 + $0x48] sm:$0xff] %vm18, 0.0
    %29 = vst.msk [vmem:[#allocation2 + $0x50] sm:$0xff] %vm18, 0.0
    %30 = vst.msk [vmem:[#allocation2 + $0x58] sm:$0xff] %vm18, 0.0
    %31 = vst.msk [vmem:[#allocation2 + $0x60] sm:$0xff] %vm18, 0.0
    %32 = vst.msk [vmem:[#allocation2 + $0x68] sm:$0xff] %vm18, 0.0
    %33 = vst.msk [vmem:[#allocation2 + $0x70] sm:$0xff] %vm18, 0.0
    %34 = vst.msk [vmem:[#allocation2 + $0x78] sm:$0xff] %vm18, 0.0
  $region13: #{_lambda_.11} parent=0 // pred_fallthru
    _
  %p35 = scmp.eq.s32.totalorder 0, 0
  %p36 = pnand %p35, %p14
  %p37 = pneg %p36
  // Predicated region
  $region14: #{_lambda_.11} parent=0 // pred_check
    _
  $region15: #{_lambda_.11} parent=0 // pred_check_branch
    %39 = sbr.rel (%p36) target = $region17
  $region16: #{_lambda_.11} parent=0 // pred_region
    %vm40 = vcmask 254976
    %41 = vst.msk [vmem:[%s3] sm:$0x3] %vm40, 0.0
  $region17: #{_lambda_.11} parent=0 // pred_fallthru
    _
  %v42 = vld [vmem:[%s0] sm:$0xff]
  %v43 = vld [vmem:[%s0 + $0x8] sm:$0xf]
  %v44 = vld [vmem:[%s0 + $0xc] sm:$0xff]
  %v45 = vld [vmem:[%s0 + $0x14] sm:$0xf]
  %v46 = vld [vmem:[%s0 + $0x18] sm:$0xff]
  %v47 = vld [vmem:[%s0 + $0x20] sm:$0xf]
  %v48 = vld [vmem:[%s0 + $0x24] sm:$0xff]
  %v49 = vld [vmem:[%s0 + $0x2c] sm:$0xf]
  %v50 = vld [vmem:[%s0 + $0x30] sm:$0xff]
  %v51 = vld [vmem:[%s0 + $0x38] sm:$0xf]
  %v52 = vld [vmem:[%s0 + $0x3c] sm:$0xff]
  %v53 = vld [vmem:[%s0 + $0x44] sm:$0xf]
  %v54 = vld [vmem:[%s0 + $0x48] sm:$0xff]
  %v55 = vld [vmem:[%s0 + $0x50] sm:$0xf]
  %v56 = vld [vmem:[%s0 + $0x54] sm:$0xff]
  %v57 = vld [vmem:[%s0 + $0x5c] sm:$0xf]
  %v58 = vld [vmem:[%s0 + $0x60] sm:$0xff]
  %v59 = vld [vmem:[%s0 + $0x68] sm:$0xf]
  %v60 = vld [vmem:[%s0 + $0x6c] sm:$0xff]
  %v61 = vld [vmem:[%s0 + $0x74] sm:$0xf]
  %v62 = vld [vmem:[%s0 + $0x78] sm:$0xff]
  %v63 = vld [vmem:[%s0 + $0x80] sm:$0xf]
  %v64 = vld [vmem:[%s0 + $0x84] sm:$0xff]
  %v65 = vld [vmem:[%s0 + $0x8c] sm:$0xf]
  %v66 = vld [vmem:[%s0 + $0x90] sm:$0xff]
  %v67 = vld [vmem:[%s0 + $0x98] sm:$0xf]
  %v68 = vld [vmem:[%s0 + $0x9c] sm:$0xff]
  %v69 = vld [vmem:[%s0 + $0xa4] sm:$0xf]
  %v70 = vld [vmem:[%s0 + $0xa8] sm:$0xff]
  %v71 = vld [vmem:[%s0 + $0xb0] sm:$0xf]
  %v72 = vld [vmem:[%s0 + $0xb4] sm:$0xff]
  %v73 = vld [vmem:[%s0 + $0xbc] sm:$0xf]
  %v74 = vunpack.c.l.bf16 %v42
  %v75 = vunpack.c.h.bf16 %v42
  %v76 = vunpack.c.l.bf16 %v43
  %v77 = vunpack.c.l.bf16 %v44
  %v78 = vunpack.c.h.bf16 %v44
  %v79 = vunpack.c.l.bf16 %v45
  %v80 = vunpack.c.l.bf16 %v46
  %v81 = vunpack.c.h.bf16 %v46
  %v82 = vunpack.c.l.bf16 %v47
  %v83 = vunpack.c.l.bf16 %v48
  %v84 = vunpack.c.h.bf16 %v48
  %v85 = vunpack.c.l.bf16 %v49
  %v86 = vunpack.c.l.bf16 %v50
  %v87 = vunpack.c.h.bf16 %v50
  %v88 = vunpack.c.l.bf16 %v51
  %v89 = vunpack.c.l.bf16 %v52
  %v90 = vunpack.c.h.bf16 %v52
  %v91 = vunpack.c.l.bf16 %v53
  %v92 = vunpack.c.l.bf16 %v54
  %v93 = vunpack.c.h.bf16 %v54
  %v94 = vunpack.c.l.bf16 %v55
  %v95 = vunpack.c.l.bf16 %v56
  %v96 = vunpack.c.h.bf16 %v56
  %v97 = vunpack.c.l.bf16 %v57
  %v98 = vunpack.c.l.bf16 %v58
  %v99 = vunpack.c.h.bf16 %v58
  %v100 = vunpack.c.l.bf16 %v59
  %v101 = vunpack.c.l.bf16 %v60
  %v102 = vunpack.c.h.bf16 %v60
  %v103 = vunpack.c.l.bf16 %v61
  %v104 = vunpack.c.l.bf16 %v62
  %v105 = vunpack.c.h.bf16 %v62
  %v106 = vunpack.c.l.bf16 %v63
  %v107 = vunpack.c.l.bf16 %v64
  %v108 = vunpack.c.h.bf16 %v64
  %v109 = vunpack.c.l.bf16 %v65
  %v110 = vunpack.c.l.bf16 %v66
  %v111 = vunpack.c.h.bf16 %v66
  %v112 = vunpack.c.l.bf16 %v67
  %v113 = vunpack.c.l.bf16 %v68
  %v114 = vunpack.c.h.bf16 %v68
  %v115 = vunpack.c.l.bf16 %v69
  %v116 = vunpack.c.l.bf16 %v70
  %v117 = vunpack.c.h.bf16 %v70
  %v118 = vunpack.c.l.bf16 %v71
  %v119 = vunpack.c.l.bf16 %v72
  %v120 = vunpack.c.h.bf16 %v72
  %v121 = vunpack.c.l.bf16 %v73
  %v122 = vmax.f32 %v74, 0.0
  %v123 = vmax.f32 %v75, 0.0
  %v124 = vmax.f32 %v76, 0.0
  %v125 = vmax.f32 %v77, 0.0
  %v126 = vmax.f32 %v78, 0.0
  %v127 = vmax.f32 %v79, 0.0
  %v128 = vmax.f32 %v80, 0.0
  %v129 = vmax.f32 %v81, 0.0
  %v130 = vmax.f32 %v82, 0.0
  %v131 = vmax.f32 %v83, 0.0
  %v132 = vmax.f32 %v84, 0.0
  %v133 = vmax.f32 %v85, 0.0
  %v134 = vmax.f32 %v86, 0.0
  %v135 = vmax.f32 %v87, 0.0
  %v136 = vmax.f32 %v88, 0.0
  %v137 = vmax.f32 %v89, 0.0
  %v138 = vmax.f32 %v90, 0.0
  %v139 = vmax.f32 %v91, 0.0
  %v140 = vmax.f32 %v92, 0.0
  %v141 = vmax.f32 %v93, 0.0
  %v142 = vmax.f32 %v94, 0.0
  %v143 = vmax.f32 %v95, 0.0
  %v144 = vmax.f32 %v96, 0.0
  %v145 = vmax.f32 %v97, 0.0
  %v146 = vmax.f32 %v98, 0.0
  %v147 = vmax.f32 %v99, 0.0
  %v148 = vmax.f32 %v100, 0.0
  %v149 = vmax.f32 %v101, 0.0
  %v150 = vmax.f32 %v102, 0.0
  %v151 = vmax.f32 %v103, 0.0
  %v152 = vmax.f32 %v104, 0.0
  %v153 = vmax.f32 %v105, 0.0
  %v154 = vmax.f32 %v106, 0.0
  %v155 = vmax.f32 %v107, 0.0
  %v156 = vmax.f32 %v108, 0.0
  %v157 = vmax.f32 %v109, 0.0
  %v158 = vmax.f32 %v110, 0.0
  %v159 = vmax.f32 %v111, 0.0
  %v160 = vmax.f32 %v112, 0.0
  %v161 = vmax.f32 %v113, 0.0
  %v162 = vmax.f32 %v114, 0.0
  %v163 = vmax.f32 %v115, 0.0
  %v164 = vmax.f32 %v116, 0.0
  %v165 = vmax.f32 %v117, 0.0
  %v166 = vmax.f32 %v118, 0.0
  %v167 = vmax.f32 %v119, 0.0
  %v168 = vmax.f32 %v120, 0.0
  %v169 = vmax.f32 %v121, 0.0
  %v170 = vpack.c.bf16 %v125, %v122
  %v171 = vpack.c.bf16 %v126, %v123
  %v172 = vpack.c.bf16 %v127, %v124
  %v173 = vpack.c.bf16 %v131, %v128
  %v174 = vpack.c.bf16 %v132, %v129
  %v175 = vpack.c.bf16 %v133, %v130
  %v176 = vpack.c.bf16 %v137, %v134
  %v177 = vpack.c.bf16 %v138, %v135
  %v178 = vpack.c.bf16 %v139, %v136
  %v179 = vpack.c.bf16 %v143, %v140
  %v180 = vpack.c.bf16 %v144, %v141
  %v181 = vpack.c.bf16 %v145, %v142
  %v182 = vpack.c.bf16 %v149, %v146
  %v183 = vpack.c.bf16 %v150, %v147
  %v184 = vpack.c.bf16 %v151, %v148
  %v185 = vpack.c.bf16 %v155, %v152
  %v186 = vpack.c.bf16 %v156, %v153
  %v187 = vpack.c.bf16 %v157, %v154
  %v188 = vpack.c.bf16 %v161, %v158
  %v189 = vpack.c.bf16 %v162, %v159
  %v190 = vpack.c.bf16 %v163, %v160
  %v191 = vpack.c.bf16 %v167, %v164
  %v192 = vpack.c.bf16 %v168, %v165
  %v193 = vpack.c.bf16 %v169, %v166
  %v194 = vld [vmem:[#allocation2] sm:$0xff]
  %v195 = vld [vmem:[#allocation2 + $0x8] sm:$0xff]
  %v196 = vld [vmem:[#allocation2 + $0x10] sm:$0xff]
  %v197 = vld [vmem:[#allocation2 + $0x18] sm:$0xff]
  %v198 = vld [vmem:[#allocation2 + $0x20] sm:$0xff]
  %v199 = vld [vmem:[#allocation2 + $0x28] sm:$0xff]
  %v200 = vld [vmem:[#allocation2 + $0x30] sm:$0xff]
  %v201 = vld [vmem:[#allocation2 + $0x38] sm:$0xff]
  %v202 = vld [vmem:[#allocation2 + $0x40] sm:$0xff]
  %v203 = vld [vmem:[#allocation2 + $0x48] sm:$0xff]
  %v204 = vld [vmem:[#allocation2 + $0x50] sm:$0xff]
  %v205 = vld [vmem:[#allocation2 + $0x58] sm:$0xff]
  %v206 = vld [vmem:[#allocation2 + $0x60] sm:$0xff]
  %v207 = vld [vmem:[#allocation2 + $0x68] sm:$0xff]
  %v208 = vld [vmem:[#allocation2 + $0x70] sm:$0xff]
  %v209 = vld [vmem:[#allocation2 + $0x78] sm:$0xff]
  %v210 = vld [vmem:[%s1] sm:$0xf]
  %v211 = vld [vmem:[%s1 + $0x4] sm:$0xf]
  %v212 = vld [vmem:[%s1 + $0x8] sm:$0xf]
  %v213 = vld [vmem:[%s1 + $0xc] sm:$0xf]
  %v214 = vld [vmem:[%s1 + $0x10] sm:$0xf]
  %v215 = vld [vmem:[%s1 + $0x14] sm:$0xf]
  %v216 = vld [vmem:[%s1 + $0x18] sm:$0xf]
  %v217 = vld [vmem:[%s1 + $0x1c] sm:$0xf]
  %v218 = vld [vmem:[%s1 + $0x20] sm:$0xf]
  %v219 = vld [vmem:[%s1 + $0x24] sm:$0xf]
  %v220 = vld [vmem:[%s1 + $0x28] sm:$0xf]
  %v221 = vld [vmem:[%s1 + $0x2c] sm:$0xf]
  %v222 = vld [vmem:[%s1 + $0x30] sm:$0xf]
  %v223 = vld [vmem:[%s1 + $0x34] sm:$0xf]
  %v224 = vld [vmem:[%s1 + $0x38] sm:$0xf]
  %v225 = vld [vmem:[%s1 + $0x3c] sm:$0xf]
  %v226 = vld [vmem:[%s1 + $0x40] sm:$0xf]
  %v227 = vld [vmem:[%s1 + $0x44] sm:$0xf]
  %v228 = vld [vmem:[%s1 + $0x48] sm:$0xf]
  %v229 = vld [vmem:[%s1 + $0x4c] sm:$0xf]
  %v230 = vld [vmem:[%s1 + $0x50] sm:$0xf]
  %v231 = vld [vmem:[%s1 + $0x54] sm:$0xf]
  %v232 = vld [vmem:[%s1 + $0x58] sm:$0xf]
  %v233 = vld [vmem:[%s1 + $0x5c] sm:$0xf]
  %v234 = vld [vmem:[%s1 + $0x60] sm:$0xf]
  %v235 = vld [vmem:[%s1 + $0x64] sm:$0xf]
  %v236 = vld [vmem:[%s1 + $0x68] sm:$0xf]
  %v237 = vld [vmem:[%s1 + $0x6c] sm:$0xf]
  %v238 = vld [vmem:[%s1 + $0x70] sm:$0xf]
  %v239 = vld [vmem:[%s1 + $0x74] sm:$0xf]
  %v240 = vld [vmem:[%s1 + $0x78] sm:$0xf]
  %v241 = vld [vmem:[%s1 + $0x7c] sm:$0xf]
  %v242 = vld [vmem:[%s1 + $0x80] sm:$0xf]
  %v243 = vld [vmem:[%s1 + $0x84] sm:$0xf]
  %v244 = vld [vmem:[%s1 + $0x88] sm:$0xf]
  %v245 = vld [vmem:[%s1 + $0x8c] sm:$0xf]
  %v282 = vunpack.c.l.b16 %v210
  %v283 = vunpack.c.l.b16 %v211
  %v284 = vunpack.c.l.b16 %v212
  %v285 = vunpack.c.l.b16 %v213
  %v286 = vunpack.c.l.b16 %v214
  %v287 = vunpack.c.l.b16 %v215
  %v288 = vunpack.c.l.b16 %v216
  %v289 = vunpack.c.l.b16 %v217
  %v290 = vunpack.c.l.b16 %v218
  %v291 = vunpack.c.l.b16 %v219
  %v292 = vunpack.c.l.b16 %v220
  %v293 = vunpack.c.l.b16 %v221
  %v294 = vunpack.c.l.b16 %v222
  %v295 = vunpack.c.l.b16 %v223
  %v296 = vunpack.c.l.b16 %v224
  %v297 = vunpack.c.l.b16 %v225
  %v298 = vunpack.c.l.b16 %v226
  %v299 = vunpack.c.l.b16 %v227
  %v300 = vunpack.c.l.b16 %v228
  %v301 = vunpack.c.l.b16 %v229
  %v302 = vunpack.c.l.b16 %v230
  %v303 = vunpack.c.l.b16 %v231
  %v304 = vunpack.c.l.b16 %v232
  %v305 = vunpack.c.l.b16 %v233
  %v306 = vunpack.c.l.b16 %v234
  %v307 = vunpack.c.l.b16 %v235
  %v308 = vunpack.c.l.b16 %v236
  %v309 = vunpack.c.l.b16 %v237
  %v310 = vunpack.c.l.b16 %v238
  %v311 = vunpack.c.l.b16 %v239
  %v312 = vunpack.c.l.b16 %v240
  %v313 = vunpack.c.l.b16 %v241
  %v314 = vunpack.c.l.b16 %v242
  %v315 = vunpack.c.l.b16 %v243
  %v316 = vunpack.c.l.b16 %v244
  %v317 = vunpack.c.l.b16 %v245
  %v318 = vpack.c.b16 %v283, %v282
  %v319 = vpack.c.b16 %v285, %v284
  %v320 = vpack.c.b16 %v287, %v286
  %v321 = vpack.c.b16 %v289, %v288
  %v322 = vpack.c.b16 %v291, %v290
  %v323 = vpack.c.b16 %v293, %v292
  %v324 = vpack.c.b16 %v295, %v294
  %v325 = vpack.c.b16 %v297, %v296
  %v326 = vpack.c.b16 %v299, %v298
  %v327 = vpack.c.b16 %v301, %v300
  %v328 = vpack.c.b16 %v303, %v302
  %v329 = vpack.c.b16 %v305, %v304
  %v330 = vpack.c.b16 %v307, %v306
  %v331 = vpack.c.b16 %v309, %v308
  %v332 = vpack.c.b16 %v311, %v310
  %v333 = vpack.c.b16 %v313, %v312
  %v334 = vpack.c.b16 %v315, %v314
  %v335 = vpack.c.b16 %v317, %v316
  %vm354 = vcmask 261120
  %v356 = vsel %vm354, %v172, 0
  %v359 = vsel %vm354, %v175, 0
  %v362 = vsel %vm354, %v178, 0
  %v365 = vsel %vm354, %v181, 0
  %v368 = vsel %vm354, %v184, 0
  %v371 = vsel %vm354, %v187, 0
  %v374 = vsel %vm354, %v190, 0
  %v377 = vsel %vm354, %v193, 0
  %379 = vmatpush.bf16.msra.mxu0 %v325
  %380 = vmatpush.bf16.msra.mxu0 %v324
  %381 = vmatpush.bf16.msra.mxu0 %v323
  %382 = vmatpush.bf16.msra.mxu0 %v322
  %383 = vmatpush.bf16.msra.mxu0 %v321
  %384 = vmatpush.bf16.msra.mxu0 %v320
  %385 = vmatpush.bf16.msra.mxu0 %v319
  %386 = vmatpush.bf16.msra.mxu0 %v318
  %387 = vmatmul.bf16.gmra.mxu0 %v170
  %v388 = vpop.f32.mrf.mxu0
  %v389 = vadd.f32 0.0, %v388
  %v390 = vpop.f32.mrf.mxu0
  %v391 = vadd.f32 0.0, %v390
  %392 = vmatmul.bf16.gmra.mxu0 %v173
  %v393 = vpop.f32.mrf.mxu0
  %v394 = vadd.f32 0.0, %v393
  %v395 = vpop.f32.mrf.mxu0
  %v396 = vadd.f32 0.0, %v395
  %397 = vmatmul.bf16.gmra.mxu0 %v176
  %v398 = vpop.f32.mrf.mxu0
  %v399 = vadd.f32 0.0, %v398
  %v400 = vpop.f32.mrf.mxu0
  %v401 = vadd.f32 0.0, %v400
  %402 = vmatmul.bf16.gmra.mxu0 %v179
  %v403 = vpop.f32.mrf.mxu0
  %v404 = vadd.f32 0.0, %v403
  %v405 = vpop.f32.mrf.mxu0
  %v406 = vadd.f32 0.0, %v405
  %407 = vmatmul.bf16.gmra.mxu0 %v182
  %v408 = vpop.f32.mrf.mxu0
  %v409 = vadd.f32 0.0, %v408
  %v410 = vpop.f32.mrf.mxu0
  %v411 = vadd.f32 0.0, %v410
  %412 = vmatmul.bf16.gmra.mxu0 %v185
  %v413 = vpop.f32.mrf.mxu0
  %v414 = vadd.f32 0.0, %v413
  %v415 = vpop.f32.mrf.mxu0
  %v416 = vadd.f32 0.0, %v415
  %417 = vmatmul.bf16.gmra.mxu0 %v188
  %v418 = vpop.f32.mrf.mxu0
  %v419 = vadd.f32 0.0, %v418
  %v420 = vpop.f32.mrf.mxu0
  %v421 = vadd.f32 0.0, %v420
  %422 = vmatmul.bf16.gmra.mxu0 %v191
  %v423 = vpop.f32.mrf.mxu0
  %v424 = vadd.f32 0.0, %v423
  %v425 = vpop.f32.mrf.mxu0
  %v426 = vadd.f32 0.0, %v425
  %427 = vdwg.mxu0
  %428 = vmatpush.bf16.msra.mxu0 %v333
  %429 = vmatpush.bf16.msra.mxu0 %v332
  %430 = vmatpush.bf16.msra.mxu0 %v331
  %431 = vmatpush.bf16.msra.mxu0 %v330
  %432 = vmatpush.bf16.msra.mxu0 %v329
  %433 = vmatpush.bf16.msra.mxu0 %v328
  %434 = vmatpush.bf16.msra.mxu0 %v327
  %435 = vmatpush.bf16.msra.mxu0 %v326
  %436 = vmatmul.bf16.gmra.mxu0 %v171
  %v437 = vpop.f32.mrf.mxu0
  %v438 = vadd.f32 %v389, %v437
  %v439 = vpop.f32.mrf.mxu0
  %v440 = vadd.f32 %v391, %v439
  %441 = vmatmul.bf16.gmra.mxu0 %v174
  %v442 = vpop.f32.mrf.mxu0
  %v443 = vadd.f32 %v394, %v442
  %v444 = vpop.f32.mrf.mxu0
  %v445 = vadd.f32 %v396, %v444
  %446 = vmatmul.bf16.gmra.mxu0 %v177
  %v447 = vpop.f32.mrf.mxu0
  %v448 = vadd.f32 %v399, %v447
  %v449 = vpop.f32.mrf.mxu0
  %v450 = vadd.f32 %v401, %v449
  %451 = vmatmul.bf16.gmra.mxu0 %v180
  %v452 = vpop.f32.mrf.mxu0
  %v453 = vadd.f32 %v404, %v452
  %v454 = vpop.f32.mrf.mxu0
  %v455 = vadd.f32 %v406, %v454
  %456 = vmatmul.bf16.gmra.mxu0 %v183
  %v457 = vpop.f32.mrf.mxu0
  %v458 = vadd.f32 %v409, %v457
  %v459 = vpop.f32.mrf.mxu0
  %v460 = vadd.f32 %v411, %v459
  %461 = vmatmul.bf16.gmra.mxu0 %v186
  %v462 = vpop.f32.mrf.mxu0
  %v463 = vadd.f32 %v414, %v462
  %v464 = vpop.f32.mrf.mxu0
  %v465 = vadd.f32 %v416, %v464
  %466 = vmatmul.bf16.gmra.mxu0 %v189
  %v467 = vpop.f32.mrf.mxu0
  %v468 = vadd.f32 %v419, %v467
  %v469 = vpop.f32.mrf.mxu0
  %v470 = vadd.f32 %v421, %v469
  %471 = vmatmul.bf16.gmra.mxu0 %v192
  %v472 = vpop.f32.mrf.mxu0
  %v473 = vadd.f32 %v424, %v472
  %v474 = vpop.f32.mrf.mxu0
  %v475 = vadd.f32 %v426, %v474
  %476 = vdwg.mxu0
  %477 = vmatpush.bf16.msra.mxu0 0
  %478 = vmatpush.bf16.msra.mxu0 0
  %479 = vmatpush.bf16.msra.mxu0 0
  %480 = vmatpush.bf16.msra.mxu0 0
  %481 = vmatpush.bf16.msra.mxu0 0
  %482 = vmatpush.bf16.msra.mxu0 0
  %483 = vmatpush.bf16.msra.mxu0 %v335
  %484 = vmatpush.bf16.msra.mxu0 %v334
  %485 = vmatmul.bf16.gmra.mxu0 %v356
  %v486 = vpop.f32.mrf.mxu0
  %v487 = vadd.f32 %v438, %v486
  %v488 = vpop.f32.mrf.mxu0
  %v489 = vadd.f32 %v440, %v488
  %490 = vmatmul.bf16.gmra.mxu0 %v359
  %v491 = vpop.f32.mrf.mxu0
  %v492 = vadd.f32 %v443, %v491
  %v493 = vpop.f32.mrf.mxu0
  %v494 = vadd.f32 %v445, %v493
  %495 = vmatmul.bf16.gmra.mxu0 %v362
  %v496 = vpop.f32.mrf.mxu0
  %v497 = vadd.f32 %v448, %v496
  %v498 = vpop.f32.mrf.mxu0
  %v499 = vadd.f32 %v450, %v498
  %500 = vmatmul.bf16.gmra.mxu0 %v365
  %v501 = vpop.f32.mrf.mxu0
  %v502 = vadd.f32 %v453, %v501
  %v503 = vpop.f32.mrf.mxu0
  %v504 = vadd.f32 %v455, %v503
  %505 = vmatmul.bf16.gmra.mxu0 %v368
  %v506 = vpop.f32.mrf.mxu0
  %v507 = vadd.f32 %v458, %v506
  %v508 = vpop.f32.mrf.mxu0
  %v509 = vadd.f32 %v460, %v508
  %510 = vmatmul.bf16.gmra.mxu0 %v371
  %v511 = vpop.f32.mrf.mxu0
  %v512 = vadd.f32 %v463, %v511
  %v513 = vpop.f32.mrf.mxu0
  %v514 = vadd.f32 %v465, %v513
  %515 = vmatmul.bf16.gmra.mxu0 %v374
  %v516 = vpop.f32.mrf.mxu0
  %v517 = vadd.f32 %v468, %v516
  %v518 = vpop.f32.mrf.mxu0
  %v519 = vadd.f32 %v470, %v518
  %520 = vmatmul.bf16.gmra.mxu0 %v377
  %v521 = vpop.f32.mrf.mxu0
  %v522 = vadd.f32 %v473, %v521
  %v523 = vpop.f32.mrf.mxu0
  %v524 = vadd.f32 %v475, %v523
  %525 = vdwg.mxu0
  %v526 = vadd.f32 %v194, %v487
  %v527 = vadd.f32 %v195, %v489
  %v528 = vadd.f32 %v196, %v492
  %v529 = vadd.f32 %v197, %v494
  %v530 = vadd.f32 %v198, %v497
  %v531 = vadd.f32 %v199, %v499
  %v532 = vadd.f32 %v200, %v502
  %v533 = vadd.f32 %v201, %v504
  %v534 = vadd.f32 %v202, %v507
  %v535 = vadd.f32 %v203, %v509
  %v536 = vadd.f32 %v204, %v512
  %v537 = vadd.f32 %v205, %v514
  %v538 = vadd.f32 %v206, %v517
  %v539 = vadd.f32 %v207, %v519
  %v540 = vadd.f32 %v208, %v522
  %v541 = vadd.f32 %v209, %v524
  %542 = vst.msk [vmem:[#allocation2] sm:$0xff] %vm354, %v526
  %543 = vst.msk [vmem:[#allocation2 + $0x8] sm:$0xff] %vm354, %v527
  %544 = vst.msk [vmem:[#allocation2 + $0x10] sm:$0xff] %vm354, %v528
  %545 = vst.msk [vmem:[#allocation2 + $0x18] sm:$0xff] %vm354, %v529
  %546 = vst.msk [vmem:[#allocation2 + $0x20] sm:$0xff] %vm354, %v530
  %547 = vst.msk [vmem:[#allocation2 + $0x28] sm:$0xff] %vm354, %v531
  %548 = vst.msk [vmem:[#allocation2 + $0x30] sm:$0xff] %vm354, %v532
  %549 = vst.msk [vmem:[#allocation2 + $0x38] sm:$0xff] %vm354, %v533
  %550 = vst.msk [vmem:[#allocation2 + $0x40] sm:$0xff] %vm354, %v534
  %551 = vst.msk [vmem:[#allocation2 + $0x48] sm:$0xff] %vm354, %v535
  %552 = vst.msk [vmem:[#allocation2 + $0x50] sm:$0xff] %vm354, %v536
  %553 = vst.msk [vmem:[#allocation2 + $0x58] sm:$0xff] %vm354, %v537
  %554 = vst.msk [vmem:[#allocation2 + $0x60] sm:$0xff] %vm354, %v538
  %555 = vst.msk [vmem:[#allocation2 + $0x68] sm:$0xff] %vm354, %v539
  %556 = vst.msk [vmem:[#allocation2 + $0x70] sm:$0xff] %vm354, %v540
  %557 = vst.msk [vmem:[#allocation2 + $0x78] sm:$0xff] %vm354, %v541
  // Predicated region
  $region18: #{_lambda_.11} parent=0 // pred_check
    %p558 = pneg %p14
  $region19: #{_lambda_.11} parent=0 // pred_check_branch
    %560 = sbr.rel (%p558) target = $region21
  $region20: #{_lambda_.11} parent=0 // pred_region
    %v561 = vld [vmem:[#allocation2] sm:$0xff]
    %v562 = vld [vmem:[#allocation2 + $0x8] sm:$0xff]
    %v563 = vld [vmem:[#allocation2 + $0x10] sm:$0xff]
    %v564 = vld [vmem:[#allocation2 + $0x18] sm:$0xff]
    %v565 = vld [vmem:[#allocation2 + $0x20] sm:$0xff]
    %v566 = vld [vmem:[#allocation2 + $0x28] sm:$0xff]
    %v567 = vld [vmem:[#allocation2 + $0x30] sm:$0xff]
    %v568 = vld [vmem:[#allocation2 + $0x38] sm:$0xff]
    %v569 = vld [vmem:[#allocation2 + $0x40] sm:$0xff]
    %v570 = vld [vmem:[#allocation2 + $0x48] sm:$0xff]
    %v571 = vld [vmem:[#allocation2 + $0x50] sm:$0xff]
    %v572 = vld [vmem:[#allocation2 + $0x58] sm:$0xff]
    %v573 = vld [vmem:[#allocation2 + $0x60] sm:$0xff]
    %v574 = vld [vmem:[#allocation2 + $0x68] sm:$0xff]
    %v575 = vld [vmem:[#allocation2 + $0x70] sm:$0xff]
    %v576 = vld [vmem:[#allocation2 + $0x78] sm:$0xff]
    %v577 = vpack.c.bf16 %v561, %v561
    %v578 = vpack.c.bf16 %v562, %v562
    %v579 = vpack.c.bf16 %v563, %v563
    %v580 = vpack.c.bf16 %v564, %v564
    %v581 = vpack.c.bf16 %v565, %v565
    %v582 = vpack.c.bf16 %v566, %v566
    %v583 = vpack.c.bf16 %v567, %v567
    %v584 = vpack.c.bf16 %v568, %v568
    %v585 = vpack.c.bf16 %v569, %v569
    %v586 = vpack.c.bf16 %v570, %v570
    %v587 = vpack.c.bf16 %v571, %v571
    %v588 = vpack.c.bf16 %v572, %v572
    %v589 = vpack.c.bf16 %v573, %v573
    %v590 = vpack.c.bf16 %v574, %v574
    %v591 = vpack.c.bf16 %v575, %v575
    %v592 = vpack.c.bf16 %v576, %v576
    %vm593 = vcmask 257024
    %594 = vst.msk [vmem:[%s2] sm:$0xf] %vm593, %v577
    %595 = vst.msk [vmem:[%s2 + $0x4] sm:$0xf] %vm593, %v578
    %596 = vst.msk [vmem:[%s2 + $0x8] sm:$0xf] %vm593, %v579
    %597 = vst.msk [vmem:[%s2 + $0xc] sm:$0xf] %vm593, %v580
    %598 = vst.msk [vmem:[%s2 + $0x10] sm:$0xf] %vm593, %v581
    %599 = vst.msk [vmem:[%s2 + $0x14] sm:$0xf] %vm593, %v582
    %600 = vst.msk [vmem:[%s2 + $0x18] sm:$0xf] %vm593, %v583
    %601 = vst.msk [vmem:[%s2 + $0x1c] sm:$0xf] %vm593, %v584
    %602 = vst.msk [vmem:[%s2 + $0x20] sm:$0xf] %vm593, %v585
    %603 = vst.msk [vmem:[%s2 + $0x24] sm:$0xf] %vm593, %v586
    %604 = vst.msk [vmem:[%s2 + $0x28] sm:$0xf] %vm593, %v587
    %605 = vst.msk [vmem:[%s2 + $0x2c] sm:$0xf] %vm593, %v588
    %606 = vst.msk [vmem:[%s2 + $0x30] sm:$0xf] %vm593, %v589
    %607 = vst.msk [vmem:[%s2 + $0x34] sm:$0xf] %vm593, %v590
    %608 = vst.msk [vmem:[%s2 + $0x38] sm:$0xf] %vm593, %v591
    %609 = vst.msk [vmem:[%s2 + $0x3c] sm:$0xf] %vm593, %v592
    %v610 = vld [vmem:[%s3] sm:$0x3]
    %v611 = vsel %vm354, %v561, 0.0
    %v612 = vsel %vm354, %v562, 0.0
    %v613 = vadd.f32 %v611, %v612
    %v614 = vsel %vm354, %v563, 0.0
    %v615 = vadd.f32 %v613, %v614
    %v616 = vsel %vm354, %v564, 0.0
    %v617 = vadd.f32 %v615, %v616
    %v618 = vsel %vm354, %v565, 0.0
    %v619 = vadd.f32 %v617, %v618
    %v620 = vsel %vm354, %v566, 0.0
    %v621 = vadd.f32 %v619, %v620
    %v622 = vsel %vm354, %v567, 0.0
    %v623 = vadd.f32 %v621, %v622
    %v624 = vsel %vm354, %v568, 0.0
    %v625 = vadd.f32 %v623, %v624
    %v626 = vsel %vm354, %v569, 0.0
    %v627 = vadd.f32 %v625, %v626
    %v628 = vsel %vm354, %v570, 0.0
    %v629 = vadd.f32 %v627, %v628
    %v630 = vsel %vm354, %v571, 0.0
    %v631 = vadd.f32 %v629, %v630
    %v632 = vsel %vm354, %v572, 0.0
    %v633 = vadd.f32 %v631, %v632
    %v634 = vsel %vm354, %v573, 0.0
    %v635 = vadd.f32 %v633, %v634
    %v636 = vsel %vm354, %v574, 0.0
    %v637 = vadd.f32 %v635, %v636
    %v638 = vsel %vm354, %v575, 0.0
    %v639 = vadd.f32 %v637, %v638
    %v640 = vsel %vm354, %v576, 0.0
    %v641 = vadd.f32 %v639, %v640
    %v642 = vrot.slane %v641, 4
    %v643 = vadd.f32 %v641, %v642
    %v644 = vrot.slane %v643, 2
    %v645 = vadd.f32 %v643, %v644
    %v646 = vrot.slane %v645, 1
    %v647 = vadd.f32 %v645, %v646
    %v648 = vmul.f32 %v561, %v561
    %v649 = vmul.f32 %v562, %v562
    %v650 = vmul.f32 %v563, %v563
    %v651 = vmul.f32 %v564, %v564
    %v652 = vmul.f32 %v565, %v565
    %v653 = vmul.f32 %v566, %v566
    %v654 = vmul.f32 %v567, %v567
    %v655 = vmul.f32 %v568, %v568
    %v656 = vmul.f32 %v569, %v569
    %v657 = vmul.f32 %v570, %v570
    %v658 = vmul.f32 %v571, %v571
    %v659 = vmul.f32 %v572, %v572
    %v660 = vmul.f32 %v573, %v573
    %v661 = vmul.f32 %v574, %v574
    %v662 = vmul.f32 %v575, %v575
    %v663 = vmul.f32 %v576, %v576
    %v664 = vsel %vm354, %v648, 0.0
    %v665 = vsel %vm354, %v649, 0.0
    %v666 = vadd.f32 %v664, %v665
    %v667 = vsel %vm354, %v650, 0.0
    %v668 = vadd.f32 %v666, %v667
    %v669 = vsel %vm354, %v651, 0.0
    %v670 = vadd.f32 %v668, %v669
    %v671 = vsel %vm354, %v652, 0.0
    %v672 = vadd.f32 %v670, %v671
    %v673 = vsel %vm354, %v653, 0.0
    %v674 = vadd.f32 %v672, %v673
    %v675 = vsel %vm354, %v654, 0.0
    %v676 = vadd.f32 %v674, %v675
    %v677 = vsel %vm354, %v655, 0.0
    %v678 = vadd.f32 %v676, %v677
    %v679 = vsel %vm354, %v656, 0.0
    %v680 = vadd.f32 %v678, %v679
    %v681 = vsel %vm354, %v657, 0.0
    %v682 = vadd.f32 %v680, %v681
    %v683 = vsel %vm354, %v658, 0.0
    %v684 = vadd.f32 %v682, %v683
    %v685 = vsel %vm354, %v659, 0.0
    %v686 = vadd.f32 %v684, %v685
    %v687 = vsel %vm354, %v660, 0.0
    %v688 = vadd.f32 %v686, %v687
    %v689 = vsel %vm354, %v661, 0.0
    %v690 = vadd.f32 %v688, %v689
    %v691 = vsel %vm354, %v662, 0.0
    %v692 = vadd.f32 %v690, %v691
    %v693 = vsel %vm354, %v663, 0.0
    %v694 = vadd.f32 %v692, %v693
    %v695 = vrot.slane %v694, 4
    %v696 = vadd.f32 %v694, %v695
    %v697 = vrot.slane %v696, 2
    %v698 = vadd.f32 %v696, %v697
    %v699 = vrot.slane %v698, 1
    %v700 = vadd.f32 %v698, %v699
    %vm701 = vcmask 1040384
    %v702 = vsel %vm701, %v647, %v700
    %v703 = vadd.f32 %v610, %v702
    %vm704 = vcmask 254976
    %705 = vst.msk [vmem:[%s3] sm:$0x3] %vm704, %v703
  $region21: #{_lambda_.11} parent=0 // pred_fallthru
    _
  // Predicated region
  $region22: #{_lambda_.11} parent=0 // pred_check
    _
  $region23: #{_lambda_.11} parent=0 // pred_check_branch
    %707 = sbr.rel (0) target = $region25
  $region24: #{_lambda_.11} parent=0 // pred_region
    _
  $region25: #{_lambda_.11} parent=0 // pred_fallthru
    _
  // Predicated region
  $region26: #{_lambda_.11} parent=0 // pred_check
    _
  $region27: #{_lambda_.11} parent=0 // pred_check_branch
    %709 = sbr.rel (0) target = $region29
  $region28: #{_lambda_.11} parent=0 // pred_region
    _
  $region29: #{_lambda_.11} parent=0 // pred_fallthru
    _
  // Predicated region
  $region30: #{_lambda_.11} parent=0 // pred_check
    _
  $region31: #{_lambda_.11} parent=0 // pred_check_branch
    %711 = sbr.rel (0) target = $region33
  $region32: #{_lambda_.11} parent=0 // pred_region
    _
  $region33: #{_lambda_.11} parent=0 // pred_fallthru
    _
  // Predicated region
  $region34: #{_lambda_.11} parent=0 // pred_check
    _
  $region35: #{_lambda_.11} parent=0 // pred_check_branch
    %713 = sbr.rel (0) target = $region37
  $region36: #{_lambda_.11} parent=0 // pred_region
    _
  $region37: #{_lambda_.11} parent=0 // pred_fallthru
    _

// kernel: _lambda_.12
$region0: #{_lambda_.12}
  #allocation0 [shape = 'u32[]', space=smem, size = 0x4, offset = 0x4, fixed_abs, tag = 'smem constant byte address 0x4 - core index']
  #allocation1 [shape = 'u32[72,128]{1,0:T(1,128)}', space=vmem, size = 0x9000, scoped, tag = 'internal scratch']
  %s0 = inlined_call_operand.vmem [shape: bf16[512,8], index: 0, kind: input, shape index: {}]
  %s1 = inlined_call_operand.vmem [shape: f32[1,8], index: 1, kind: input, shape index: {}]
  %s2 = inlined_call_operand.vmem [shape: f32[1,8], index: 2, kind: input, shape index: {}]
  %s3 = inlined_call_operand.vmem [shape: bf16[512,8], index: 3, kind: output, shape index: {}]
  %s4 = sld [smem:[#allocation0]]
  $region22: #{_lambda_.12} parent=0
    _
  %s6 = ssub.s32 1, %s4
  %s7 = scalar_select 0, %s6, %s4
  // Predicated region
  $region2: #{_lambda_.12} parent=0 // pred_check
    _
  $region3: #{_lambda_.12} parent=0 // pred_check_branch
    %9 = sbr.rel (0) target = $region5
  $region4: #{_lambda_.12} parent=0 // pred_region
    _
  $region5: #{_lambda_.12} parent=0 // pred_fallthru
    _
  // Predicated region
  $region6: #{_lambda_.12} parent=0 // pred_check
    _
  $region7: #{_lambda_.12} parent=0 // pred_check_branch
    %11 = sbr.rel (0) target = $region9
  $region8: #{_lambda_.12} parent=0 // pred_region
    _
  $region9: #{_lambda_.12} parent=0 // pred_fallthru
    _
  // Predicated region
  $region10: #{_lambda_.12} parent=0 // pred_check
    _
  $region11: #{_lambda_.12} parent=0 // pred_check_branch
    %13 = sbr.rel (0) target = $region13
  $region12: #{_lambda_.12} parent=0 // pred_region
    _
  $region13: #{_lambda_.12} parent=0 // pred_fallthru
    _
  %v14 = vld [vmem:[%s0] sm:$0xf]
  %v15 = vld [vmem:[%s0 + $0x4] sm:$0xf]
  %v16 = vld [vmem:[%s0 + $0x8] sm:$0xf]
  %v17 = vld [vmem:[%s0 + $0xc] sm:$0xf]
  %v18 = vld [vmem:[%s0 + $0x10] sm:$0xf]
  %v19 = vld [vmem:[%s0 + $0x14] sm:$0xf]
  %v20 = vld [vmem:[%s0 + $0x18] sm:$0xf]
  %v21 = vld [vmem:[%s0 + $0x1c] sm:$0xf]
  %v22 = vld [vmem:[%s0 + $0x20] sm:$0xf]
  %v23 = vld [vmem:[%s0 + $0x24] sm:$0xf]
  %v24 = vld [vmem:[%s0 + $0x28] sm:$0xf]
  %v25 = vld [vmem:[%s0 + $0x2c] sm:$0xf]
  %v26 = vld [vmem:[%s0 + $0x30] sm:$0xf]
  %v27 = vld [vmem:[%s0 + $0x34] sm:$0xf]
  %v28 = vld [vmem:[%s0 + $0x38] sm:$0xf]
  %v29 = vld [vmem:[%s0 + $0x3c] sm:$0xf]
  %v30 = vld [vmem:[%s0 + $0x40] sm:$0xf]
  %v31 = vld [vmem:[%s0 + $0x44] sm:$0xf]
  %v32 = vld [vmem:[%s0 + $0x48] sm:$0xf]
  %v33 = vld [vmem:[%s0 + $0x4c] sm:$0xf]
  %v34 = vld [vmem:[%s0 + $0x50] sm:$0xf]
  %v35 = vld [vmem:[%s0 + $0x54] sm:$0xf]
  %v36 = vld [vmem:[%s0 + $0x58] sm:$0xf]
  %v37 = vld [vmem:[%s0 + $0x5c] sm:$0xf]
  %v38 = vld [vmem:[%s0 + $0x60] sm:$0xf]
  %v39 = vld [vmem:[%s0 + $0x64] sm:$0xf]
  %v40 = vld [vmem:[%s0 + $0x68] sm:$0xf]
  %v41 = vld [vmem:[%s0 + $0x6c] sm:$0xf]
  %v42 = vld [vmem:[%s0 + $0x70] sm:$0xf]
  %v43 = vld [vmem:[%s0 + $0x74] sm:$0xf]
  %v44 = vld [vmem:[%s0 + $0x78] sm:$0xf]
  %v45 = vld [vmem:[%s0 + $0x7c] sm:$0xf]
  %v46 = vld [vmem:[%s0 + $0x80] sm:$0xf]
  %v47 = vld [vmem:[%s0 + $0x84] sm:$0xf]
  %v48 = vld [vmem:[%s0 + $0x88] sm:$0xf]
  %v49 = vld [vmem:[%s0 + $0x8c] sm:$0xf]
  %v50 = vld [vmem:[%s0 + $0x90] sm:$0xf]
  %v51 = vld [vmem:[%s0 + $0x94] sm:$0xf]
  %v52 = vld [vmem:[%s0 + $0x98] sm:$0xf]
  %v53 = vld [vmem:[%s0 + $0x9c] sm:$0xf]
  %v54 = vld [vmem:[%s0 + $0xa0] sm:$0xf]
  %v55 = vld [vmem:[%s0 + $0xa4] sm:$0xf]
  %v56 = vld [vmem:[%s0 + $0xa8] sm:$0xf]
  %v57 = vld [vmem:[%s0 + $0xac] sm:$0xf]
  %v58 = vld [vmem:[%s0 + $0xb0] sm:$0xf]
  %v59 = vld [vmem:[%s0 + $0xb4] sm:$0xf]
  %v60 = vld [vmem:[%s0 + $0xb8] sm:$0xf]
  %v61 = vld [vmem:[%s0 + $0xbc] sm:$0xf]
  %v62 = vld [vmem:[%s0 + $0xc0] sm:$0xf]
  %v63 = vld [vmem:[%s0 + $0xc4] sm:$0xf]
  %v64 = vld [vmem:[%s0 + $0xc8] sm:$0xf]
  %v65 = vld [vmem:[%s0 + $0xcc] sm:$0xf]
  %v66 = vld [vmem:[%s0 + $0xd0] sm:$0xf]
  %v67 = vld [vmem:[%s0 + $0xd4] sm:$0xf]
  %v68 = vld [vmem:[%s0 + $0xd8] sm:$0xf]
  %v69 = vld [vmem:[%s0 + $0xdc] sm:$0xf]
  %v70 = vld [vmem:[%s0 + $0xe0] sm:$0xf]
  %v71 = vld [vmem:[%s0 + $0xe4] sm:$0xf]
  %v72 = vld [vmem:[%s0 + $0xe8] sm:$0xf]
  %v73 = vld [vmem:[%s0 + $0xec] sm:$0xf]
  %v74 = vld [vmem:[%s0 + $0xf0] sm:$0xf]
  %v75 = vld [vmem:[%s0 + $0xf4] sm:$0xf]
  %v76 = vld [vmem:[%s0 + $0xf8] sm:$0xf]
  %v77 = vld [vmem:[%s0 + $0xfc] sm:$0xf]
  %v78 = vunpack.c.l.bf16 %v14
  %v79 = vunpack.c.l.bf16 %v15
  %v80 = vunpack.c.l.bf16 %v16
  %v81 = vunpack.c.l.bf16 %v17
  %v82 = vunpack.c.l.bf16 %v18
  %v83 = vunpack.c.l.bf16 %v19
  %v84 = vunpack.c.l.bf16 %v20
  %v85 = vunpack.c.l.bf16 %v21
  %v86 = vunpack.c.l.bf16 %v22
  %v87 = vunpack.c.l.bf16 %v23
  %v88 = vunpack.c.l.bf16 %v24
  %v89 = vunpack.c.l.bf16 %v25
  %v90 = vunpack.c.l.bf16 %v26
  %v91 = vunpack.c.l.bf16 %v27
  %v92 = vunpack.c.l.bf16 %v28
  %v93 = vunpack.c.l.bf16 %v29
  %v94 = vunpack.c.l.bf16 %v30
  %v95 = vunpack.c.l.bf16 %v31
  %v96 = vunpack.c.l.bf16 %v32
  %v97 = vunpack.c.l.bf16 %v33
  %v98 = vunpack.c.l.bf16 %v34
  %v99 = vunpack.c.l.bf16 %v35
  %v100 = vunpack.c.l.bf16 %v36
  %v101 = vunpack.c.l.bf16 %v37
  %v102 = vunpack.c.l.bf16 %v38
  %v103 = vunpack.c.l.bf16 %v39
  %v104 = vunpack.c.l.bf16 %v40
  %v105 = vunpack.c.l.bf16 %v41
  %v106 = vunpack.c.l.bf16 %v42
  %v107 = vunpack.c.l.bf16 %v43
  %v108 = vunpack.c.l.bf16 %v44
  %v109 = vunpack.c.l.bf16 %v45
  %v110 = vunpack.c.l.bf16 %v46
  %v111 = vunpack.c.l.bf16 %v47
  %v112 = vunpack.c.l.bf16 %v48
  %v113 = vunpack.c.l.bf16 %v49
  %v114 = vunpack.c.l.bf16 %v50
  %v115 = vunpack.c.l.bf16 %v51
  %v116 = vunpack.c.l.bf16 %v52
  %v117 = vunpack.c.l.bf16 %v53
  %v118 = vunpack.c.l.bf16 %v54
  %v119 = vunpack.c.l.bf16 %v55
  %v120 = vunpack.c.l.bf16 %v56
  %v121 = vunpack.c.l.bf16 %v57
  %v122 = vunpack.c.l.bf16 %v58
  %v123 = vunpack.c.l.bf16 %v59
  %v124 = vunpack.c.l.bf16 %v60
  %v125 = vunpack.c.l.bf16 %v61
  %v126 = vunpack.c.l.bf16 %v62
  %v127 = vunpack.c.l.bf16 %v63
  %v128 = vunpack.c.l.bf16 %v64
  %v129 = vunpack.c.l.bf16 %v65
  %v130 = vunpack.c.l.bf16 %v66
  %v131 = vunpack.c.l.bf16 %v67
  %v132 = vunpack.c.l.bf16 %v68
  %v133 = vunpack.c.l.bf16 %v69
  %v134 = vunpack.c.l.bf16 %v70
  %v135 = vunpack.c.l.bf16 %v71
  %v136 = vunpack.c.l.bf16 %v72
  %v137 = vunpack.c.l.bf16 %v73
  %v138 = vunpack.c.l.bf16 %v74
  %v139 = vunpack.c.l.bf16 %v75
  %v140 = vunpack.c.l.bf16 %v76
  %v141 = vunpack.c.l.bf16 %v77
  %v142 = vld [vmem:[%s1] sm:$0x1]
  %v144 = vperm.slane %v142, 0
  %v146 = vmul.f32 %v78, %v144
  %v147 = vmul.f32 %v79, %v144
  %v148 = vmul.f32 %v80, %v144
  %v149 = vmul.f32 %v81, %v144
  %v150 = vmul.f32 %v82, %v144
  %v151 = vmul.f32 %v83, %v144
  %v152 = vmul.f32 %v84, %v144
  %v153 = vmul.f32 %v85, %v144
  %v154 = vmul.f32 %v86, %v144
  %v155 = vmul.f32 %v87, %v144
  %v156 = vmul.f32 %v88, %v144
  %v157 = vmul.f32 %v89, %v144
  %v158 = vmul.f32 %v90, %v144
  %v159 = vmul.f32 %v91, %v144
  %v160 = vmul.f32 %v92, %v144
  %v161 = vmul.f32 %v93, %v144
  %v162 = vmul.f32 %v94, %v144
  %v163 = vmul.f32 %v95, %v144
  %v164 = vmul.f32 %v96, %v144
  %v165 = vmul.f32 %v97, %v144
  %v166 = vmul.f32 %v98, %v144
  %v167 = vmul.f32 %v99, %v144
  %v168 = vmul.f32 %v100, %v144
  %v169 = vmul.f32 %v101, %v144
  %v170 = vmul.f32 %v102, %v144
  %v171 = vmul.f32 %v103, %v144
  %v172 = vmul.f32 %v104, %v144
  %v173 = vmul.f32 %v105, %v144
  %v174 = vmul.f32 %v106, %v144
  %v175 = vmul.f32 %v107, %v144
  %v176 = vmul.f32 %v108, %v144
  %v177 = vmul.f32 %v109, %v144
  %v178 = vmul.f32 %v110, %v144
  %v179 = vmul.f32 %v111, %v144
  %v180 = vmul.f32 %v112, %v144
  %v181 = vmul.f32 %v113, %v144
  %v182 = vmul.f32 %v114, %v144
  %v183 = vmul.f32 %v115, %v144
  %v184 = vmul.f32 %v116, %v144
  %v185 = vmul.f32 %v117, %v144
  %v186 = vmul.f32 %v118, %v144
  %v187 = vmul.f32 %v119, %v144
  %v188 = vmul.f32 %v120, %v144
  %v189 = vmul.f32 %v121, %v144
  %v190 = vmul.f32 %v122, %v144
  %v191 = vmul.f32 %v123, %v144
  %v192 = vmul.f32 %v124, %v144
  %v193 = vmul.f32 %v125, %v144
  %v194 = vmul.f32 %v126, %v144
  %v195 = vmul.f32 %v127, %v144
  %v196 = vmul.f32 %v128, %v144
  %v197 = vmul.f32 %v129, %v144
  %v198 = vmul.f32 %v130, %v144
  %v199 = vmul.f32 %v131, %v144
  %v200 = vmul.f32 %v132, %v144
  %v201 = vmul.f32 %v133, %v144
  %v202 = vmul.f32 %v134, %v144
  %v203 = vmul.f32 %v135, %v144
  %v204 = vmul.f32 %v136, %v144
  %v205 = vmul.f32 %v137, %v144
  %v206 = vmul.f32 %v138, %v144
  %v207 = vmul.f32 %v139, %v144
  %v208 = vmul.f32 %v140, %v144
  %v209 = vmul.f32 %v141, %v144
  %v210 = vld [vmem:[%s2] sm:$0x1]
  %v212 = vperm.slane %v210, 0
  %v214 = vadd.f32 %v146, %v212
  %v215 = vadd.f32 %v147, %v212
  %v216 = vadd.f32 %v148, %v212
  %v217 = vadd.f32 %v149, %v212
  %v218 = vadd.f32 %v150, %v212
  %v219 = vadd.f32 %v151, %v212
  %v220 = vadd.f32 %v152, %v212
  %v221 = vadd.f32 %v153, %v212
  %v222 = vadd.f32 %v154, %v212
  %v223 = vadd.f32 %v155, %v212
  %v224 = vadd.f32 %v156, %v212
  %v225 = vadd.f32 %v157, %v212
  %v226 = vadd.f32 %v158, %v212
  %v227 = vadd.f32 %v159, %v212
  %v228 = vadd.f32 %v160, %v212
  %v229 = vadd.f32 %v161, %v212
  %v230 = vadd.f32 %v162, %v212
  %v231 = vadd.f32 %v163, %v212
  %v232 = vadd.f32 %v164, %v212
  %v233 = vadd.f32 %v165, %v212
  %v234 = vadd.f32 %v166, %v212
  %v235 = vadd.f32 %v167, %v212
  %v236 = vadd.f32 %v168, %v212
  %v237 = vadd.f32 %v169, %v212
  %v238 = vadd.f32 %v170, %v212
  %v239 = vadd.f32 %v171, %v212
  %v240 = vadd.f32 %v172, %v212
  %v241 = vadd.f32 %v173, %v212
  %v242 = vadd.f32 %v174, %v212
  %v243 = vadd.f32 %v175, %v212
  %v244 = vadd.f32 %v176, %v212
  %v245 = vadd.f32 %v177, %v212
  %v246 = vadd.f32 %v178, %v212
  %v247 = vadd.f32 %v179, %v212
  %v248 = vadd.f32 %v180, %v212
  %v249 = vadd.f32 %v181, %v212
  %v250 = vadd.f32 %v182, %v212
  %v251 = vadd.f32 %v183, %v212
  %v252 = vadd.f32 %v184, %v212
  %v253 = vadd.f32 %v185, %v212
  %v254 = vadd.f32 %v186, %v212
  %v255 = vadd.f32 %v187, %v212
  %v256 = vadd.f32 %v188, %v212
  %v257 = vadd.f32 %v189, %v212
  %v258 = vadd.f32 %v190, %v212
  %v259 = vadd.f32 %v191, %v212
  %v260 = vadd.f32 %v192, %v212
  %v261 = vadd.f32 %v193, %v212
  %v262 = vadd.f32 %v194, %v212
  %v263 = vadd.f32 %v195, %v212
  %v264 = vadd.f32 %v196, %v212
  %v265 = vadd.f32 %v197, %v212
  %v266 = vadd.f32 %v198, %v212
  %v267 = vadd.f32 %v199, %v212
  %v268 = vadd.f32 %v200, %v212
  %v269 = vadd.f32 %v201, %v212
  %v270 = vadd.f32 %v202, %v212
  %v271 = vadd.f32 %v203, %v212
  %v272 = vadd.f32 %v204, %v212
  %v273 = vadd.f32 %v205, %v212
  %v274 = vadd.f32 %v206, %v212
  %v275 = vadd.f32 %v207, %v212
  %v276 = vadd.f32 %v208, %v212
  %v277 = vadd.f32 %v209, %v212
  %v278 = vpack.c.bf16 %v214, %v214
  %v279 = vpack.c.bf16 %v215, %v215
  %v280 = vpack.c.bf16 %v216, %v216
  %v281 = vpack.c.bf16 %v217, %v217
  %v282 = vpack.c.bf16 %v218, %v218
  %v283 = vpack.c.bf16 %v219, %v219
  %v284 = vpack.c.bf16 %v220, %v220
  %v285 = vpack.c.bf16 %v221, %v221
  %v286 = vpack.c.bf16 %v222, %v222
  %v287 = vpack.c.bf16 %v223, %v223
  %v288 = vpack.c.bf16 %v224, %v224
  %v289 = vpack.c.bf16 %v225, %v225
  %v290 = vpack.c.bf16 %v226, %v226
  %v291 = vpack.c.bf16 %v227, %v227
  %v292 = vpack.c.bf16 %v228, %v228
  %v293 = vpack.c.bf16 %v229, %v229
  %v294 = vpack.c.bf16 %v230, %v230
  %v295 = vpack.c.bf16 %v231, %v231
  %v296 = vpack.c.bf16 %v232, %v232
  %v297 = vpack.c.bf16 %v233, %v233
  %v298 = vpack.c.bf16 %v234, %v234
  %v299 = vpack.c.bf16 %v235, %v235
  %v300 = vpack.c.bf16 %v236, %v236
  %v301 = vpack.c.bf16 %v237, %v237
  %v302 = vpack.c.bf16 %v238, %v238
  %v303 = vpack.c.bf16 %v239, %v239
  %v304 = vpack.c.bf16 %v240, %v240
  %v305 = vpack.c.bf16 %v241, %v241
  %v306 = vpack.c.bf16 %v242, %v242
  %v307 = vpack.c.bf16 %v243, %v243
  %v308 = vpack.c.bf16 %v244, %v244
  %v309 = vpack.c.bf16 %v245, %v245
  %v310 = vpack.c.bf16 %v246, %v246
  %v311 = vpack.c.bf16 %v247, %v247
  %v312 = vpack.c.bf16 %v248, %v248
  %v313 = vpack.c.bf16 %v249, %v249
  %v314 = vpack.c.bf16 %v250, %v250
  %v315 = vpack.c.bf16 %v251, %v251
  %v316 = vpack.c.bf16 %v252, %v252
  %v317 = vpack.c.bf16 %v253, %v253
  %v318 = vpack.c.bf16 %v254, %v254
  %v319 = vpack.c.bf16 %v255, %v255
  %v320 = vpack.c.bf16 %v256, %v256
  %v321 = vpack.c.bf16 %v257, %v257
  %v322 = vpack.c.bf16 %v258, %v258
  %v323 = vpack.c.bf16 %v259, %v259
  %v324 = vpack.c.bf16 %v260, %v260
  %v325 = vpack.c.bf16 %v261, %v261
  %v326 = vpack.c.bf16 %v262, %v262
  %v327 = vpack.c.bf16 %v263, %v263
  %v328 = vpack.c.bf16 %v264, %v264
  %v329 = vpack.c.bf16 %v265, %v265
  %v330 = vpack.c.bf16 %v266, %v266
  %v331 = vpack.c.bf16 %v267, %v267
  %v332 = vpack.c.bf16 %v268, %v268
  %v333 = vpack.c.bf16 %v269, %v269
  %v334 = vpack.c.bf16 %v270, %v270
  %v335 = vpack.c.bf16 %v271, %v271
  %v336 = vpack.c.bf16 %v272, %v272
  %v337 = vpack.c.bf16 %v273, %v273
  %v338 = vpack.c.bf16 %v274, %v274
  %v339 = vpack.c.bf16 %v275, %v275
  %v340 = vpack.c.bf16 %v276, %v276
  %v341 = vpack.c.bf16 %v277, %v277
  %vm342 = vcmask 60416
  %343 = vst.msk [vmem:[%s3] sm:$0xf] %vm342, %v278
  %344 = vst.msk [vmem:[%s3 + $0x4] sm:$0xf] %vm342, %v279
  %345 = vst.msk [vmem:[%s3 + $0x8] sm:$0xf] %vm342, %v280
  %346 = vst.msk [vmem:[%s3 + $0xc] sm:$0xf] %vm342, %v281
  %347 = vst.msk [vmem:[%s3 + $0x10] sm:$0xf] %vm342, %v282
  %348 = vst.msk [vmem:[%s3 + $0x14] sm:$0xf] %vm342, %v283
  %349 = vst.msk [vmem:[%s3 + $0x18] sm:$0xf] %vm342, %v284
  %350 = vst.msk [vmem:[%s3 + $0x1c] sm:$0xf] %vm342, %v285
  %351 = vst.msk [vmem:[%s3 + $0x20] sm:$0xf] %vm342, %v286
  %352 = vst.msk [vmem:[%s3 + $0x24] sm:$0xf] %vm342, %v287
  %353 = vst.msk [vmem:[%s3 + $0x28] sm:$0xf] %vm342, %v288
  %354 = vst.msk [vmem:[%s3 + $0x2c] sm:$0xf] %vm342, %v289
  %355 = vst.msk [vmem:[%s3 + $0x30] sm:$0xf] %vm342, %v290
  %356 = vst.msk [vmem:[%s3 + $0x34] sm:$0xf] %vm342, %v291
  %357 = vst.msk [vmem:[%s3 + $0x38] sm:$0xf] %vm342, %v292
  %358 = vst.msk [vmem:[%s3 + $0x3c] sm:$0xf] %vm342, %v293
  %359 = vst.msk [vmem:[%s3 + $0x40] sm:$0xf] %vm342, %v294
  %360 = vst.msk [vmem:[%s3 + $0x44] sm:$0xf] %vm342, %v295
  %361 = vst.msk [vmem:[%s3 + $0x48] sm:$0xf] %vm342, %v296
  %362 = vst.msk [vmem:[%s3 + $0x4c] sm:$0xf] %vm342, %v297
  %363 = vst.msk [vmem:[%s3 + $0x50] sm:$0xf] %vm342, %v298
  %364 = vst.msk [vmem:[%s3 + $0x54] sm:$0xf] %vm342, %v299
  %365 = vst.msk [vmem:[%s3 + $0x58] sm:$0xf] %vm342, %v300
  %366 = vst.msk [vmem:[%s3 + $0x5c] sm:$0xf] %vm342, %v301
  %367 = vst.msk [vmem:[%s3 + $0x60] sm:$0xf] %vm342, %v302
  %368 = vst.msk [vmem:[%s3 + $0x64] sm:$0xf] %vm342, %v303
  %369 = vst.msk [vmem:[%s3 + $0x68] sm:$0xf] %vm342, %v304
  %370 = vst.msk [vmem:[%s3 + $0x6c] sm:$0xf] %vm342, %v305
  %371 = vst.msk [vmem:[%s3 + $0x70] sm:$0xf] %vm342, %v306
  %372 = vst.msk [vmem:[%s3 + $0x74] sm:$0xf] %vm342, %v307
  %373 = vst.msk [vmem:[%s3 + $0x78] sm:$0xf] %vm342, %v308
  %374 = vst.msk [vmem:[%s3 + $0x7c] sm:$0xf] %vm342, %v309
  %375 = vst.msk [vmem:[%s3 + $0x80] sm:$0xf] %vm342, %v310
  %376 = vst.msk [vmem:[%s3 + $0x84] sm:$0xf] %vm342, %v311
  %377 = vst.msk [vmem:[%s3 + $0x88] sm:$0xf] %vm342, %v312
  %378 = vst.msk [vmem:[%s3 + $0x8c] sm:$0xf] %vm342, %v313
  %379 = vst.msk [vmem:[%s3 + $0x90] sm:$0xf] %vm342, %v314
  %380 = vst.msk [vmem:[%s3 + $0x94] sm:$0xf] %vm342, %v315
  %381 = vst.msk [vmem:[%s3 + $0x98] sm:$0xf] %vm342, %v316
  %382 = vst.msk [vmem:[%s3 + $0x9c] sm:$0xf] %vm342, %v317
  %383 = vst.msk [vmem:[%s3 + $0xa0] sm:$0xf] %vm342, %v318
  %384 = vst.msk [vmem:[%s3 + $0xa4] sm:$0xf] %vm342, %v319
  %385 = vst.msk [vmem:[%s3 + $0xa8] sm:$0xf] %vm342, %v320
  %386 = vst.msk [vmem:[%s3 + $0xac] sm:$0xf] %vm342, %v321
  %387 = vst.msk [vmem:[%s3 + $0xb0] sm:$0xf] %vm342, %v322
  %388 = vst.msk [vmem:[%s3 + $0xb4] sm:$0xf] %vm342, %v323
  %389 = vst.msk [vmem:[%s3 + $0xb8] sm:$0xf] %vm342, %v324
  %390 = vst.msk [vmem:[%s3 + $0xbc] sm:$0xf] %vm342, %v325
  %391 = vst.msk [vmem:[%s3 + $0xc0] sm:$0xf] %vm342, %v326
  %392 = vst.msk [vmem:[%s3 + $0xc4] sm:$0xf] %vm342, %v327
  %393 = vst.msk [vmem:[%s3 + $0xc8] sm:$0xf] %vm342, %v328
  %394 = vst.msk [vmem:[%s3 + $0xcc] sm:$0xf] %vm342, %v329
  %395 = vst.msk [vmem:[%s3 + $0xd0] sm:$0xf] %vm342, %v330
  %396 = vst.msk [vmem:[%s3 + $0xd4] sm:$0xf] %vm342, %v331
  %397 = vst.msk [vmem:[%s3 + $0xd8] sm:$0xf] %vm342, %v332
  %398 = vst.msk [vmem:[%s3 + $0xdc] sm:$0xf] %vm342, %v333
  %399 = vst.msk [vmem:[%s3 + $0xe0] sm:$0xf] %vm342, %v334
  %400 = vst.msk [vmem:[%s3 + $0xe4] sm:$0xf] %vm342, %v335
  %401 = vst.msk [vmem:[%s3 + $0xe8] sm:$0xf] %vm342, %v336
  %402 = vst.msk [vmem:[%s3 + $0xec] sm:$0xf] %vm342, %v337
  %403 = vst.msk [vmem:[%s3 + $0xf0] sm:$0xf] %vm342, %v338
  %404 = vst.msk [vmem:[%s3 + $0xf4] sm:$0xf] %vm342, %v339
  %405 = vst.msk [vmem:[%s3 + $0xf8] sm:$0xf] %vm342, %v340
  %406 = vst.msk [vmem:[%s3 + $0xfc] sm:$0xf] %vm342, %v341
  // Predicated region
  $region14: #{_lambda_.12} parent=0 // pred_check
    _
  $region15: #{_lambda_.12} parent=0 // pred_check_branch
    %408 = sbr.rel (0) target = $region17
  $region16: #{_lambda_.12} parent=0 // pred_region
    _
  $region17: #{_lambda_.12} parent=0 // pred_fallthru
    _
  // Predicated region
  $region18: #{_lambda_.12} parent=0 // pred_check
    _
  $region19: #{_lambda_.12} parent=0 // pred_check_branch
    %410 = sbr.rel (0) target = $region21
  $region20: #{_lambda_.12} parent=0 // pred_region
    _
  $region21: #{_lambda_.12} parent=0 // pred_fallthru
    _

// kernel: _lambda_.13
$region0: #{_lambda_.13}
  #allocation0 [shape = 'u32[]', space=smem, size = 0x4, offset = 0x4, fixed_abs, tag = 'smem constant byte address 0x4 - core index']
  #allocation1 [shape = 'u32[72,128]{1,0:T(1,128)}', space=vmem, size = 0x9000, scoped, tag = 'internal scratch']
  #allocation2 [shape = 'f32[512,12]{1,0:T(8,128)}', space=vmem, size = 0x40000, scoped, tag = 'scratch operand']
  %s0 = inlined_call_operand.vmem [shape: bf16[512,144], index: 0, kind: input, shape index: {}]
  %s1 = inlined_call_operand.vmem [shape: bf16[144,12], index: 1, kind: input, shape index: {}]
  %s2 = inlined_call_operand.vmem [shape: bf16[512,12], index: 2, kind: output, shape index: {}]
  %s3 = sld [smem:[#allocation0]]
  $region26: #{_lambda_.13} parent=0
    _
  %s5 = ssub.s32 1, %s3
  %s6 = scalar_select 0, %s5, %s3
  // Predicated region
  $region2: #{_lambda_.13} parent=0 // pred_check
    _
  $region3: #{_lambda_.13} parent=0 // pred_check_branch
    %8 = sbr.rel (0) target = $region5
  $region4: #{_lambda_.13} parent=0 // pred_region
    _
  $region5: #{_lambda_.13} parent=0 // pred_fallthru
    _
  // Predicated region
  $region6: #{_lambda_.13} parent=0 // pred_check
    _
  $region7: #{_lambda_.13} parent=0 // pred_check_branch
    %10 = sbr.rel (0) target = $region9
  $region8: #{_lambda_.13} parent=0 // pred_region
    _
  $region9: #{_lambda_.13} parent=0 // pred_fallthru
    _
  %p12 = scmp.eq.s32.totalorder 0, 0
  // Predicated region
  $region10: #{_lambda_.13} parent=0 // pred_check
    %p13 = pneg %p12
  $region11: #{_lambda_.13} parent=0 // pred_check_branch
    %15 = sbr.rel (%p13) target = $region13
  $region12: #{_lambda_.13} parent=0 // pred_region
    %vm16 = vcmask 97280
    %17 = vst.msk [vmem:[#allocation2] sm:$0xff] %vm16, 0.0
    %18 = vst.msk [vmem:[#allocation2 + $0x8] sm:$0xff] %vm16, 0.0
    %19 = vst.msk [vmem:[#allocation2 + $0x10] sm:$0xff] %vm16, 0.0
    %20 = vst.msk [vmem:[#allocation2 + $0x18] sm:$0xff] %vm16, 0.0
    %21 = vst.msk [vmem:[#allocation2 + $0x20] sm:$0xff] %vm16, 0.0
    %22 = vst.msk [vmem:[#allocation2 + $0x28] sm:$0xff] %vm16, 0.0
    %23 = vst.msk [vmem:[#allocation2 + $0x30] sm:$0xff] %vm16, 0.0
    %24 = vst.msk [vmem:[#allocation2 + $0x38] sm:$0xff] %vm16, 0.0
    %25 = vst.msk [vmem:[#allocation2 + $0x40] sm:$0xff] %vm16, 0.0
    %26 = vst.msk [vmem:[#allocation2 + $0x48] sm:$0xff] %vm16, 0.0
    %27 = vst.msk [vmem:[#allocation2 + $0x50] sm:$0xff] %vm16, 0.0
    %28 = vst.msk [vmem:[#allocation2 + $0x58] sm:$0xff] %vm16, 0.0
    %29 = vst.msk [vmem:[#allocation2 + $0x60] sm:$0xff] %vm16, 0.0
    %30 = vst.msk [vmem:[#allocation2 + $0x68] sm:$0xff] %vm16, 0.0
    %31 = vst.msk [vmem:[#allocation2 + $0x70] sm:$0xff] %vm16, 0.0
    %32 = vst.msk [vmem:[#allocation2 + $0x78] sm:$0xff] %vm16, 0.0
    %33 = vst.msk [vmem:[#allocation2 + $0x80] sm:$0xff] %vm16, 0.0
    %34 = vst.msk [vmem:[#allocation2 + $0x88] sm:$0xff] %vm16, 0.0
    %35 = vst.msk [vmem:[#allocation2 + $0x90] sm:$0xff] %vm16, 0.0
    %36 = vst.msk [vmem:[#allocation2 + $0x98] sm:$0xff] %vm16, 0.0
    %37 = vst.msk [vmem:[#allocation2 + $0xa0] sm:$0xff] %vm16, 0.0
    %38 = vst.msk [vmem:[#allocation2 + $0xa8] sm:$0xff] %vm16, 0.0
    %39 = vst.msk [vmem:[#allocation2 + $0xb0] sm:$0xff] %vm16, 0.0
    %40 = vst.msk [vmem:[#allocation2 + $0xb8] sm:$0xff] %vm16, 0.0
    %41 = vst.msk [vmem:[#allocation2 + $0xc0] sm:$0xff] %vm16, 0.0
    %42 = vst.msk [vmem:[#allocation2 + $0xc8] sm:$0xff] %vm16, 0.0
    %43 = vst.msk [vmem:[#allocation2 + $0xd0] sm:$0xff] %vm16, 0.0
    %44 = vst.msk [vmem:[#allocation2 + $0xd8] sm:$0xff] %vm16, 0.0
    %45 = vst.msk [vmem:[#allocation2 + $0xe0] sm:$0xff] %vm16, 0.0
    %46 = vst.msk [vmem:[#allocation2 + $0xe8] sm:$0xff] %vm16, 0.0
    %47 = vst.msk [vmem:[#allocation2 + $0xf0] sm:$0xff] %vm16, 0.0
    %48 = vst.msk [vmem:[#allocation2 + $0xf8] sm:$0xff] %vm16, 0.0
    %49 = vst.msk [vmem:[#allocation2 + $0x100] sm:$0xff] %vm16, 0.0
    %50 = vst.msk [vmem:[#allocation2 + $0x108] sm:$0xff] %vm16, 0.0
    %51 = vst.msk [vmem:[#allocation2 + $0x110] sm:$0xff] %vm16, 0.0
    %52 = vst.msk [vmem:[#allocation2 + $0x118] sm:$0xff] %vm16, 0.0
    %53 = vst.msk [vmem:[#allocation2 + $0x120] sm:$0xff] %vm16, 0.0
    %54 = vst.msk [vmem:[#allocation2 + $0x128] sm:$0xff] %vm16, 0.0
    %55 = vst.msk [vmem:[#allocation2 + $0x130] sm:$0xff] %vm16, 0.0
    %56 = vst.msk [vmem:[#allocation2 + $0x138] sm:$0xff] %vm16, 0.0
    %57 = vst.msk [vmem:[#allocation2 + $0x140] sm:$0xff] %vm16, 0.0
    %58 = vst.msk [vmem:[#allocation2 + $0x148] sm:$0xff] %vm16, 0.0
    %59 = vst.msk [vmem:[#allocation2 + $0x150] sm:$0xff] %vm16, 0.0
    %60 = vst.msk [vmem:[#allocation2 + $0x158] sm:$0xff] %vm16, 0.0
    %61 = vst.msk [vmem:[#allocation2 + $0x160] sm:$0xff] %vm16, 0.0
    %62 = vst.msk [vmem:[#allocation2 + $0x168] sm:$0xff] %vm16, 0.0
    %63 = vst.msk [vmem:[#allocation2 + $0x170] sm:$0xff] %vm16, 0.0
    %64 = vst.msk [vmem:[#allocation2 + $0x178] sm:$0xff] %vm16, 0.0
    %65 = vst.msk [vmem:[#allocation2 + $0x180] sm:$0xff] %vm16, 0.0
    %66 = vst.msk [vmem:[#allocation2 + $0x188] sm:$0xff] %vm16, 0.0
    %67 = vst.msk [vmem:[#allocation2 + $0x190] sm:$0xff] %vm16, 0.0
    %68 = vst.msk [vmem:[#allocation2 + $0x198] sm:$0xff] %vm16, 0.0
    %69 = vst.msk [vmem:[#allocation2 + $0x1a0] sm:$0xff] %vm16, 0.0
    %70 = vst.msk [vmem:[#allocation2 + $0x1a8] sm:$0xff] %vm16, 0.0
    %71 = vst.msk [vmem:[#allocation2 + $0x1b0] sm:$0xff] %vm16, 0.0
    %72 = vst.msk [vmem:[#allocation2 + $0x1b8] sm:$0xff] %vm16, 0.0
    %73 = vst.msk [vmem:[#allocation2 + $0x1c0] sm:$0xff] %vm16, 0.0
    %74 = vst.msk [vmem:[#allocation2 + $0x1c8] sm:$0xff] %vm16, 0.0
    %75 = vst.msk [vmem:[#allocation2 + $0x1d0] sm:$0xff] %vm16, 0.0
    %76 = vst.msk [vmem:[#allocation2 + $0x1d8] sm:$0xff] %vm16, 0.0
    %77 = vst.msk [vmem:[#allocation2 + $0x1e0] sm:$0xff] %vm16, 0.0
    %78 = vst.msk [vmem:[#allocation2 + $0x1e8] sm:$0xff] %vm16, 0.0
    %79 = vst.msk [vmem:[#allocation2 + $0x1f0] sm:$0xff] %vm16, 0.0
    %80 = vst.msk [vmem:[#allocation2 + $0x1f8] sm:$0xff] %vm16, 0.0
  $region13: #{_lambda_.13} parent=0 // pred_fallthru
    _
  %v81 = vld [vmem:[%s0] sm:$0xff]
  %v82 = vld [vmem:[%s0 + $0x8] sm:$0xff]
  %v83 = vld [vmem:[%s0 + $0x10] sm:$0xff]
  %v84 = vld [vmem:[%s0 + $0x18] sm:$0xff]
  %v85 = vld [vmem:[%s0 + $0x20] sm:$0xff]
  %v86 = vld [vmem:[%s0 + $0x28] sm:$0xff]
  %v87 = vld [vmem:[%s0 + $0x30] sm:$0xff]
  %v88 = vld [vmem:[%s0 + $0x38] sm:$0xff]
  %v89 = vld [vmem:[%s0 + $0x40] sm:$0xff]
  %v90 = vld [vmem:[%s0 + $0x48] sm:$0xff]
  %v91 = vld [vmem:[%s0 + $0x50] sm:$0xff]
  %v92 = vld [vmem:[%s0 + $0x58] sm:$0xff]
  %v93 = vld [vmem:[%s0 + $0x60] sm:$0xff]
  %v94 = vld [vmem:[%s0 + $0x68] sm:$0xff]
  %v95 = vld [vmem:[%s0 + $0x70] sm:$0xff]
  %v96 = vld [vmem:[%s0 + $0x78] sm:$0xff]
  %v97 = vld [vmem:[%s0 + $0x80] sm:$0xff]
  %v98 = vld [vmem:[%s0 + $0x88] sm:$0xff]
  %v99 = vld [vmem:[%s0 + $0x90] sm:$0xff]
  %v100 = vld [vmem:[%s0 + $0x98] sm:$0xff]
  %v101 = vld [vmem:[%s0 + $0xa0] sm:$0xff]
  %v102 = vld [vmem:[%s0 + $0xa8] sm:$0xff]
  %v103 = vld [vmem:[%s0 + $0xb0] sm:$0xff]
  %v104 = vld [vmem:[%s0 + $0xb8] sm:$0xff]
  %v105 = vld [vmem:[%s0 + $0xc0] sm:$0xff]
  %v106 = vld [vmem:[%s0 + $0xc8] sm:$0xff]
  %v107 = vld [vmem:[%s0 + $0xd0] sm:$0xff]
  %v108 = vld [vmem:[%s0 + $0xd8] sm:$0xff]
  %v109 = vld [vmem:[%s0 + $0xe0] sm:$0xff]
  %v110 = vld [vmem:[%s0 + $0xe8] sm:$0xff]
  %v111 = vld [vmem:[%s0 + $0xf0] sm:$0xff]
  %v112 = vld [vmem:[%s0 + $0xf8] sm:$0xff]
  %v113 = vld [vmem:[%s0 + $0x100] sm:$0xff]
  %v114 = vld [vmem:[%s0 + $0x108] sm:$0xff]
  %v115 = vld [vmem:[%s0 + $0x110] sm:$0xff]
  %v116 = vld [vmem:[%s0 + $0x118] sm:$0xff]
  %v117 = vld [vmem:[%s0 + $0x120] sm:$0xff]
  %v118 = vld [vmem:[%s0 + $0x128] sm:$0xff]
  %v119 = vld [vmem:[%s0 + $0x130] sm:$0xff]
  %v120 = vld [vmem:[%s0 + $0x138] sm:$0xff]
  %v121 = vld [vmem:[%s0 + $0x140] sm:$0xff]
  %v122 = vld [vmem:[%s0 + $0x148] sm:$0xff]
  %v123 = vld [vmem:[%s0 + $0x150] sm:$0xff]
  %v124 = vld [vmem:[%s0 + $0x158] sm:$0xff]
  %v125 = vld [vmem:[%s0 + $0x160] sm:$0xff]
  %v126 = vld [vmem:[%s0 + $0x168] sm:$0xff]
  %v127 = vld [vmem:[%s0 + $0x170] sm:$0xff]
  %v128 = vld [vmem:[%s0 + $0x178] sm:$0xff]
  %v129 = vld [vmem:[%s0 + $0x180] sm:$0xff]
  %v130 = vld [vmem:[%s0 + $0x188] sm:$0xff]
  %v131 = vld [vmem:[%s0 + $0x190] sm:$0xff]
  %v132 = vld [vmem:[%s0 + $0x198] sm:$0xff]
  %v133 = vld [vmem:[%s0 + $0x1a0] sm:$0xff]
  %v134 = vld [vmem:[%s0 + $0x1a8] sm:$0xff]
  %v135 = vld [vmem:[%s0 + $0x1b0] sm:$0xff]
  %v136 = vld [vmem:[%s0 + $0x1b8] sm:$0xff]
  %v137 = vld [vmem:[%s0 + $0x1c0] sm:$0xff]
  %v138 = vld [vmem:[%s0 + $0x1c8] sm:$0xff]
  %v139 = vld [vmem:[%s0 + $0x1d0] sm:$0xff]
  %v140 = vld [vmem:[%s0 + $0x1d8] sm:$0xff]
  %v141 = vld [vmem:[%s0 + $0x1e0] sm:$0xff]
  %v142 = vld [vmem:[%s0 + $0x1e8] sm:$0xff]
  %v143 = vld [vmem:[%s0 + $0x1f0] sm:$0xff]
  %v144 = vld [vmem:[%s0 + $0x1f8] sm:$0xff]
  %v145 = vunpack.c.l.bf16 %v81
  %v146 = vunpack.c.h.bf16 %v81
  %v147 = vunpack.c.l.bf16 %v82
  %v148 = vunpack.c.h.bf16 %v82
  %v149 = vunpack.c.l.bf16 %v83
  %v150 = vunpack.c.h.bf16 %v83
  %v151 = vunpack.c.l.bf16 %v84
  %v152 = vunpack.c.h.bf16 %v84
  %v153 = vunpack.c.l.bf16 %v85
  %v154 = vunpack.c.h.bf16 %v85
  %v155 = vunpack.c.l.bf16 %v86
  %v156 = vunpack.c.h.bf16 %v86
  %v157 = vunpack.c.l.bf16 %v87
  %v158 = vunpack.c.h.bf16 %v87
  %v159 = vunpack.c.l.bf16 %v88
  %v160 = vunpack.c.h.bf16 %v88
  %v161 = vunpack.c.l.bf16 %v89
  %v162 = vunpack.c.h.bf16 %v89
  %v163 = vunpack.c.l.bf16 %v90
  %v164 = vunpack.c.h.bf16 %v90
  %v165 = vunpack.c.l.bf16 %v91
  %v166 = vunpack.c.h.bf16 %v91
  %v167 = vunpack.c.l.bf16 %v92
  %v168 = vunpack.c.h.bf16 %v92
  %v169 = vunpack.c.l.bf16 %v93
  %v170 = vunpack.c.h.bf16 %v93
  %v171 = vunpack.c.l.bf16 %v94
  %v172 = vunpack.c.h.bf16 %v94
  %v173 = vunpack.c.l.bf16 %v95
  %v174 = vunpack.c.h.bf16 %v95
  %v175 = vunpack.c.l.bf16 %v96
  %v176 = vunpack.c.h.bf16 %v96
  %v177 = vunpack.c.l.bf16 %v97
  %v178 = vunpack.c.h.bf16 %v97
  %v179 = vunpack.c.l.bf16 %v98
  %v180 = vunpack.c.h.bf16 %v98
  %v181 = vunpack.c.l.bf16 %v99
  %v182 = vunpack.c.h.bf16 %v99
  %v183 = vunpack.c.l.bf16 %v100
  %v184 = vunpack.c.h.bf16 %v100
  %v185 = vunpack.c.l.bf16 %v101
  %v186 = vunpack.c.h.bf16 %v101
  %v187 = vunpack.c.l.bf16 %v102
  %v188 = vunpack.c.h.bf16 %v102
  %v189 = vunpack.c.l.bf16 %v103
  %v190 = vunpack.c.h.bf16 %v103
  %v191 = vunpack.c.l.bf16 %v104
  %v192 = vunpack.c.h.bf16 %v104
  %v193 = vunpack.c.l.bf16 %v105
  %v194 = vunpack.c.h.bf16 %v105
  %v195 = vunpack.c.l.bf16 %v106
  %v196 = vunpack.c.h.bf16 %v106
  %v197 = vunpack.c.l.bf16 %v107
  %v198 = vunpack.c.h.bf16 %v107
  %v199 = vunpack.c.l.bf16 %v108
  %v200 = vunpack.c.h.bf16 %v108
  %v201 = vunpack.c.l.bf16 %v109
  %v202 = vunpack.c.h.bf16 %v109
  %v203 = vunpack.c.l.bf16 %v110
  %v204 = vunpack.c.h.bf16 %v110
  %v205 = vunpack.c.l.bf16 %v111
  %v206 = vunpack.c.h.bf16 %v111
  %v207 = vunpack.c.l.bf16 %v112
  %v208 = vunpack.c.h.bf16 %v112
  %v209 = vunpack.c.l.bf16 %v113
  %v210 = vunpack.c.h.bf16 %v113
  %v211 = vunpack.c.l.bf16 %v114
  %v212 = vunpack.c.h.bf16 %v114
  %v213 = vunpack.c.l.bf16 %v115
  %v214 = vunpack.c.h.bf16 %v115
  %v215 = vunpack.c.l.bf16 %v116
  %v216 = vunpack.c.h.bf16 %v116
  %v217 = vunpack.c.l.bf16 %v117
  %v218 = vunpack.c.h.bf16 %v117
  %v219 = vunpack.c.l.bf16 %v118
  %v220 = vunpack.c.h.bf16 %v118
  %v221 = vunpack.c.l.bf16 %v119
  %v222 = vunpack.c.h.bf16 %v119
  %v223 = vunpack.c.l.bf16 %v120
  %v224 = vunpack.c.h.bf16 %v120
  %v225 = vunpack.c.l.bf16 %v121
  %v226 = vunpack.c.h.bf16 %v121
  %v227 = vunpack.c.l.bf16 %v122
  %v228 = vunpack.c.h.bf16 %v122
  %v229 = vunpack.c.l.bf16 %v123
  %v230 = vunpack.c.h.bf16 %v123
  %v231 = vunpack.c.l.bf16 %v124
  %v232 = vunpack.c.h.bf16 %v124
  %v233 = vunpack.c.l.bf16 %v125
  %v234 = vunpack.c.h.bf16 %v125
  %v235 = vunpack.c.l.bf16 %v126
  %v236 = vunpack.c.h.bf16 %v126
  %v237 = vunpack.c.l.bf16 %v127
  %v238 = vunpack.c.h.bf16 %v127
  %v239 = vunpack.c.l.bf16 %v128
  %v240 = vunpack.c.h.bf16 %v128
  %v241 = vunpack.c.l.bf16 %v129
  %v242 = vunpack.c.h.bf16 %v129
  %v243 = vunpack.c.l.bf16 %v130
  %v244 = vunpack.c.h.bf16 %v130
  %v245 = vunpack.c.l.bf16 %v131
  %v246 = vunpack.c.h.bf16 %v131
  %v247 = vunpack.c.l.bf16 %v132
  %v248 = vunpack.c.h.bf16 %v132
  %v249 = vunpack.c.l.bf16 %v133
  %v250 = vunpack.c.h.bf16 %v133
  %v251 = vunpack.c.l.bf16 %v134
  %v252 = vunpack.c.h.bf16 %v134
  %v253 = vunpack.c.l.bf16 %v135
  %v254 = vunpack.c.h.bf16 %v135
  %v255 = vunpack.c.l.bf16 %v136
  %v256 = vunpack.c.h.bf16 %v136
  %v257 = vunpack.c.l.bf16 %v137
  %v258 = vunpack.c.h.bf16 %v137
  %v259 = vunpack.c.l.bf16 %v138
  %v260 = vunpack.c.h.bf16 %v138
  %v261 = vunpack.c.l.bf16 %v139
  %v262 = vunpack.c.h.bf16 %v139
  %v263 = vunpack.c.l.bf16 %v140
  %v264 = vunpack.c.h.bf16 %v140
  %v265 = vunpack.c.l.bf16 %v141
  %v266 = vunpack.c.h.bf16 %v141
  %v267 = vunpack.c.l.bf16 %v142
  %v268 = vunpack.c.h.bf16 %v142
  %v269 = vunpack.c.l.bf16 %v143
  %v270 = vunpack.c.h.bf16 %v143
  %v271 = vunpack.c.l.bf16 %v144
  %v272 = vunpack.c.h.bf16 %v144
  %v273 = vmax.f32 %v145, 0.0
  %v274 = vmax.f32 %v146, 0.0
  %v275 = vmax.f32 %v147, 0.0
  %v276 = vmax.f32 %v148, 0.0
  %v277 = vmax.f32 %v149, 0.0
  %v278 = vmax.f32 %v150, 0.0
  %v279 = vmax.f32 %v151, 0.0
  %v280 = vmax.f32 %v152, 0.0
  %v281 = vmax.f32 %v153, 0.0
  %v282 = vmax.f32 %v154, 0.0
  %v283 = vmax.f32 %v155, 0.0
  %v284 = vmax.f32 %v156, 0.0
  %v285 = vmax.f32 %v157, 0.0
  %v286 = vmax.f32 %v158, 0.0
  %v287 = vmax.f32 %v159, 0.0
  %v288 = vmax.f32 %v160, 0.0
  %v289 = vmax.f32 %v161, 0.0
  %v290 = vmax.f32 %v162, 0.0
  %v291 = vmax.f32 %v163, 0.0
  %v292 = vmax.f32 %v164, 0.0
  %v293 = vmax.f32 %v165, 0.0
  %v294 = vmax.f32 %v166, 0.0
  %v295 = vmax.f32 %v167, 0.0
  %v296 = vmax.f32 %v168, 0.0
  %v297 = vmax.f32 %v169, 0.0
  %v298 = vmax.f32 %v170, 0.0
  %v299 = vmax.f32 %v171, 0.0
  %v300 = vmax.f32 %v172, 0.0
  %v301 = vmax.f32 %v173, 0.0
  %v302 = vmax.f32 %v174, 0.0
  %v303 = vmax.f32 %v175, 0.0
  %v304 = vmax.f32 %v176, 0.0
  %v305 = vmax.f32 %v177, 0.0
  %v306 = vmax.f32 %v178, 0.0
  %v307 = vmax.f32 %v179, 0.0
  %v308 = vmax.f32 %v180, 0.0
  %v309 = vmax.f32 %v181, 0.0
  %v310 = vmax.f32 %v182, 0.0
  %v311 = vmax.f32 %v183, 0.0
  %v312 = vmax.f32 %v184, 0.0
  %v313 = vmax.f32 %v185, 0.0
  %v314 = vmax.f32 %v186, 0.0
  %v315 = vmax.f32 %v187, 0.0
  %v316 = vmax.f32 %v188, 0.0
  %v317 = vmax.f32 %v189, 0.0
  %v318 = vmax.f32 %v190, 0.0
  %v319 = vmax.f32 %v191, 0.0
  %v320 = vmax.f32 %v192, 0.0
  %v321 = vmax.f32 %v193, 0.0
  %v322 = vmax.f32 %v194, 0.0
  %v323 = vmax.f32 %v195, 0.0
  %v324 = vmax.f32 %v196, 0.0
  %v325 = vmax.f32 %v197, 0.0
  %v326 = vmax.f32 %v198, 0.0
  %v327 = vmax.f32 %v199, 0.0
  %v328 = vmax.f32 %v200, 0.0
  %v329 = vmax.f32 %v201, 0.0
  %v330 = vmax.f32 %v202, 0.0
  %v331 = vmax.f32 %v203, 0.0
  %v332 = vmax.f32 %v204, 0.0
  %v333 = vmax.f32 %v205, 0.0
  %v334 = vmax.f32 %v206, 0.0
  %v335 = vmax.f32 %v207, 0.0
  %v336 = vmax.f32 %v208, 0.0
  %v337 = vmax.f32 %v209, 0.0
  %v338 = vmax.f32 %v210, 0.0
  %v339 = vmax.f32 %v211, 0.0
  %v340 = vmax.f32 %v212, 0.0
  %v341 = vmax.f32 %v213, 0.0
  %v342 = vmax.f32 %v214, 0.0
  %v343 = vmax.f32 %v215, 0.0
  %v344 = vmax.f32 %v216, 0.0
  %v345 = vmax.f32 %v217, 0.0
  %v346 = vmax.f32 %v218, 0.0
  %v347 = vmax.f32 %v219, 0.0
  %v348 = vmax.f32 %v220, 0.0
  %v349 = vmax.f32 %v221, 0.0
  %v350 = vmax.f32 %v222, 0.0
  %v351 = vmax.f32 %v223, 0.0
  %v352 = vmax.f32 %v224, 0.0
  %v353 = vmax.f32 %v225, 0.0
  %v354 = vmax.f32 %v226, 0.0
  %v355 = vmax.f32 %v227, 0.0
  %v356 = vmax.f32 %v228, 0.0
  %v357 = vmax.f32 %v229, 0.0
  %v358 = vmax.f32 %v230, 0.0
  %v359 = vmax.f32 %v231, 0.0
  %v360 = vmax.f32 %v232, 0.0
  %v361 = vmax.f32 %v233, 0.0
  %v362 = vmax.f32 %v234, 0.0
  %v363 = vmax.f32 %v235, 0.0
  %v364 = vmax.f32 %v236, 0.0
  %v365 = vmax.f32 %v237, 0.0
  %v366 = vmax.f32 %v238, 0.0
  %v367 = vmax.f32 %v239, 0.0
  %v368 = vmax.f32 %v240, 0.0
  %v369 = vmax.f32 %v241, 0.0
  %v370 = vmax.f32 %v242, 0.0
  %v371 = vmax.f32 %v243, 0.0
  %v372 = vmax.f32 %v244, 0.0
  %v373 = vmax.f32 %v245, 0.0
  %v374 = vmax.f32 %v246, 0.0
  %v375 = vmax.f32 %v247, 0.0
  %v376 = vmax.f32 %v248, 0.0
  %v377 = vmax.f32 %v249, 0.0
  %v378 = vmax.f32 %v250, 0.0
  %v379 = vmax.f32 %v251, 0.0
  %v380 = vmax.f32 %v252, 0.0
  %v381 = vmax.f32 %v253, 0.0
  %v382 = vmax.f32 %v254, 0.0
  %v383 = vmax.f32 %v255, 0.0
  %v384 = vmax.f32 %v256, 0.0
  %v385 = vmax.f32 %v257, 0.0
  %v386 = vmax.f32 %v258, 0.0
  %v387 = vmax.f32 %v259, 0.0
  %v388 = vmax.f32 %v260, 0.0
  %v389 = vmax.f32 %v261, 0.0
  %v390 = vmax.f32 %v262, 0.0
  %v391 = vmax.f32 %v263, 0.0
  %v392 = vmax.f32 %v264, 0.0
  %v393 = vmax.f32 %v265, 0.0
  %v394 = vmax.f32 %v266, 0.0
  %v395 = vmax.f32 %v267, 0.0
  %v396 = vmax.f32 %v268, 0.0
  %v397 = vmax.f32 %v269, 0.0
  %v398 = vmax.f32 %v270, 0.0
  %v399 = vmax.f32 %v271, 0.0
  %v400 = vmax.f32 %v272, 0.0
  %v401 = vpack.c.bf16 %v275, %v273
  %v402 = vpack.c.bf16 %v276, %v274
  %v403 = vpack.c.bf16 %v279, %v277
  %v404 = vpack.c.bf16 %v280, %v278
  %v405 = vpack.c.bf16 %v283, %v281
  %v406 = vpack.c.bf16 %v284, %v282
  %v407 = vpack.c.bf16 %v287, %v285
  %v408 = vpack.c.bf16 %v288, %v286
  %v409 = vpack.c.bf16 %v291, %v289
  %v410 = vpack.c.bf16 %v292, %v290
  %v411 = vpack.c.bf16 %v295, %v293
  %v412 = vpack.c.bf16 %v296, %v294
  %v413 = vpack.c.bf16 %v299, %v297
  %v414 = vpack.c.bf16 %v300, %v298
  %v415 = vpack.c.bf16 %v303, %v301
  %v416 = vpack.c.bf16 %v304, %v302
  %v417 = vpack.c.bf16 %v307, %v305
  %v418 = vpack.c.bf16 %v308, %v306
  %v419 = vpack.c.bf16 %v311, %v309
  %v420 = vpack.c.bf16 %v312, %v310
  %v421 = vpack.c.bf16 %v315, %v313
  %v422 = vpack.c.bf16 %v316, %v314
  %v423 = vpack.c.bf16 %v319, %v317
  %v424 = vpack.c.bf16 %v320, %v318
  %v425 = vpack.c.bf16 %v323, %v321
  %v426 = vpack.c.bf16 %v324, %v322
  %v427 = vpack.c.bf16 %v327, %v325
  %v428 = vpack.c.bf16 %v328, %v326
  %v429 = vpack.c.bf16 %v331, %v329
  %v430 = vpack.c.bf16 %v332, %v330
  %v431 = vpack.c.bf16 %v335, %v333
  %v432 = vpack.c.bf16 %v336, %v334
  %v433 = vpack.c.bf16 %v339, %v337
  %v434 = vpack.c.bf16 %v340, %v338
  %v435 = vpack.c.bf16 %v343, %v341
  %v436 = vpack.c.bf16 %v344, %v342
  %v437 = vpack.c.bf16 %v347, %v345
  %v438 = vpack.c.bf16 %v348, %v346
  %v439 = vpack.c.bf16 %v351, %v349
  %v440 = vpack.c.bf16 %v352, %v350
  %v441 = vpack.c.bf16 %v355, %v353
  %v442 = vpack.c.bf16 %v356, %v354
  %v443 = vpack.c.bf16 %v359, %v357
  %v444 = vpack.c.bf16 %v360, %v358
  %v445 = vpack.c.bf16 %v363, %v361
  %v446 = vpack.c.bf16 %v364, %v362
  %v447 = vpack.c.bf16 %v367, %v365
  %v448 = vpack.c.bf16 %v368, %v366
  %v449 = vpack.c.bf16 %v371, %v369
  %v450 = vpack.c.bf16 %v372, %v370
  %v451 = vpack.c.bf16 %v375, %v373
  %v452 = vpack.c.bf16 %v376, %v374
  %v453 = vpack.c.bf16 %v379, %v377
  %v454 = vpack.c.bf16 %v380, %v378
  %v455 = vpack.c.bf16 %v383, %v381
  %v456 = vpack.c.bf16 %v384, %v382
  %v457 = vpack.c.bf16 %v387, %v385
  %v458 = vpack.c.bf16 %v388, %v386
  %v459 = vpack.c.bf16 %v391, %v389
  %v460 = vpack.c.bf16 %v392, %v390
  %v461 = vpack.c.bf16 %v395, %v393
  %v462 = vpack.c.bf16 %v396, %v394
  %v463 = vpack.c.bf16 %v399, %v397
  %v464 = vpack.c.bf16 %v400, %v398
  %v465 = vld [vmem:[#allocation2] sm:$0xff]
  %v466 = vld [vmem:[#allocation2 + $0x8] sm:$0xff]
  %v467 = vld [vmem:[#allocation2 + $0x10] sm:$0xff]
  %v468 = vld [vmem:[#allocation2 + $0x18] sm:$0xff]
  %v469 = vld [vmem:[#allocation2 + $0x20] sm:$0xff]
  %v470 = vld [vmem:[#allocation2 + $0x28] sm:$0xff]
  %v471 = vld [vmem:[#allocation2 + $0x30] sm:$0xff]
  %v472 = vld [vmem:[#allocation2 + $0x38] sm:$0xff]
  %v473 = vld [vmem:[#allocation2 + $0x40] sm:$0xff]
  %v474 = vld [vmem:[#allocation2 + $0x48] sm:$0xff]
  %v475 = vld [vmem:[#allocation2 + $0x50] sm:$0xff]
  %v476 = vld [vmem:[#allocation2 + $0x58] sm:$0xff]
  %v477 = vld [vmem:[#allocation2 + $0x60] sm:$0xff]
  %v478 = vld [vmem:[#allocation2 + $0x68] sm:$0xff]
  %v479 = vld [vmem:[#allocation2 + $0x70] sm:$0xff]
  %v480 = vld [vmem:[#allocation2 + $0x78] sm:$0xff]
  %v481 = vld [vmem:[#allocation2 + $0x80] sm:$0xff]
  %v482 = vld [vmem:[#allocation2 + $0x88] sm:$0xff]
  %v483 = vld [vmem:[#allocation2 + $0x90] sm:$0xff]
  %v484 = vld [vmem:[#allocation2 + $0x98] sm:$0xff]
  %v485 = vld [vmem:[#allocation2 + $0xa0] sm:$0xff]
  %v486 = vld [vmem:[#allocation2 + $0xa8] sm:$0xff]
  %v487 = vld [vmem:[#allocation2 + $0xb0] sm:$0xff]
  %v488 = vld [vmem:[#allocation2 + $0xb8] sm:$0xff]
  %v489 = vld [vmem:[#allocation2 + $0xc0] sm:$0xff]
  %v490 = vld [vmem:[#allocation2 + $0xc8] sm:$0xff]
  %v491 = vld [vmem:[#allocation2 + $0xd0] sm:$0xff]
  %v492 = vld [vmem:[#allocation2 + $0xd8] sm:$0xff]
  %v493 = vld [vmem:[#allocation2 + $0xe0] sm:$0xff]
  %v494 = vld [vmem:[#allocation2 + $0xe8] sm:$0xff]
  %v495 = vld [vmem:[#allocation2 + $0xf0] sm:$0xff]
  %v496 = vld [vmem:[#allocation2 + $0xf8] sm:$0xff]
  %v497 = vld [vmem:[#allocation2 + $0x100] sm:$0xff]
  %v498 = vld [vmem:[#allocation2 + $0x108] sm:$0xff]
  %v499 = vld [vmem:[#allocation2 + $0x110] sm:$0xff]
  %v500 = vld [vmem:[#allocation2 + $0x118] sm:$0xff]
  %v501 = vld [vmem:[#allocation2 + $0x120] sm:$0xff]
  %v502 = vld [vmem:[#allocation2 + $0x128] sm:$0xff]
  %v503 = vld [vmem:[#allocation2 + $0x130] sm:$0xff]
  %v504 = vld [vmem:[#allocation2 + $0x138] sm:$0xff]
  %v505 = vld [vmem:[#allocation2 + $0x140] sm:$0xff]
  %v506 = vld [vmem:[#allocation2 + $0x148] sm:$0xff]
  %v507 = vld [vmem:[#allocation2 + $0x150] sm:$0xff]
  %v508 = vld [vmem:[#allocation2 + $0x158] sm:$0xff]
  %v509 = vld [vmem:[#allocation2 + $0x160] sm:$0xff]
  %v510 = vld [vmem:[#allocation2 + $0x168] sm:$0xff]
  %v511 = vld [vmem:[#allocation2 + $0x170] sm:$0xff]
  %v512 = vld [vmem:[#allocation2 + $0x178] sm:$0xff]
  %v513 = vld [vmem:[#allocation2 + $0x180] sm:$0xff]
  %v514 = vld [vmem:[#allocation2 + $0x188] sm:$0xff]
  %v515 = vld [vmem:[#allocation2 + $0x190] sm:$0xff]
  %v516 = vld [vmem:[#allocation2 + $0x198] sm:$0xff]
  %v517 = vld [vmem:[#allocation2 + $0x1a0] sm:$0xff]
  %v518 = vld [vmem:[#allocation2 + $0x1a8] sm:$0xff]
  %v519 = vld [vmem:[#allocation2 + $0x1b0] sm:$0xff]
  %v520 = vld [vmem:[#allocation2 + $0x1b8] sm:$0xff]
  %v521 = vld [vmem:[#allocation2 + $0x1c0] sm:$0xff]
  %v522 = vld [vmem:[#allocation2 + $0x1c8] sm:$0xff]
  %v523 = vld [vmem:[#allocation2 + $0x1d0] sm:$0xff]
  %v524 = vld [vmem:[#allocation2 + $0x1d8] sm:$0xff]
  %v525 = vld [vmem:[#allocation2 + $0x1e0] sm:$0xff]
  %v526 = vld [vmem:[#allocation2 + $0x1e8] sm:$0xff]
  %v527 = vld [vmem:[#allocation2 + $0x1f0] sm:$0xff]
  %v528 = vld [vmem:[#allocation2 + $0x1f8] sm:$0xff]
  %v529 = vld [vmem:[%s1] sm:$0xf]
  %v530 = vld [vmem:[%s1 + $0x4] sm:$0xf]
  %v531 = vld [vmem:[%s1 + $0x8] sm:$0xf]
  %v532 = vld [vmem:[%s1 + $0xc] sm:$0xf]
  %v533 = vld [vmem:[%s1 + $0x10] sm:$0xf]
  %v534 = vld [vmem:[%s1 + $0x14] sm:$0xf]
  %v535 = vld [vmem:[%s1 + $0x18] sm:$0xf]
  %v536 = vld [vmem:[%s1 + $0x1c] sm:$0xf]
  %v537 = vld [vmem:[%s1 + $0x20] sm:$0xf]
  %v538 = vld [vmem:[%s1 + $0x24] sm:$0xf]
  %v539 = vld [vmem:[%s1 + $0x28] sm:$0xf]
  %v540 = vld [vmem:[%s1 + $0x2c] sm:$0xf]
  %v541 = vld [vmem:[%s1 + $0x30] sm:$0xf]
  %v542 = vld [vmem:[%s1 + $0x34] sm:$0xf]
  %v543 = vld [vmem:[%s1 + $0x38] sm:$0xf]
  %v544 = vld [vmem:[%s1 + $0x3c] sm:$0xf]
  %v545 = vld [vmem:[%s1 + $0x40] sm:$0xf]
  %v546 = vld [vmem:[%s1 + $0x44] sm:$0xf]
  %v565 = vunpack.c.l.b16 %v529
  %v566 = vunpack.c.l.b16 %v530
  %v567 = vunpack.c.l.b16 %v531
  %v568 = vunpack.c.l.b16 %v532
  %v569 = vunpack.c.l.b16 %v533
  %v570 = vunpack.c.l.b16 %v534
  %v571 = vunpack.c.l.b16 %v535
  %v572 = vunpack.c.l.b16 %v536
  %v573 = vunpack.c.l.b16 %v537
  %v574 = vunpack.c.l.b16 %v538
  %v575 = vunpack.c.l.b16 %v539
  %v576 = vunpack.c.l.b16 %v540
  %v577 = vunpack.c.l.b16 %v541
  %v578 = vunpack.c.l.b16 %v542
  %v579 = vunpack.c.l.b16 %v543
  %v580 = vunpack.c.l.b16 %v544
  %v581 = vunpack.c.l.b16 %v545
  %v582 = vunpack.c.l.b16 %v546
  %v583 = vpack.c.b16 %v566, %v565
  %v584 = vpack.c.b16 %v568, %v567
  %v585 = vpack.c.b16 %v570, %v569
  %v586 = vpack.c.b16 %v572, %v571
  %v587 = vpack.c.b16 %v574, %v573
  %v588 = vpack.c.b16 %v576, %v575
  %v589 = vpack.c.b16 %v578, %v577
  %v590 = vpack.c.b16 %v580, %v579
  %v591 = vpack.c.b16 %v582, %v581
  %vm601 = vcmask 130048
  %v603 = vsel %vm601, %v402, 0
  %v606 = vsel %vm601, %v404, 0
  %v609 = vsel %vm601, %v406, 0
  %v612 = vsel %vm601, %v408, 0
  %v615 = vsel %vm601, %v410, 0
  %v618 = vsel %vm601, %v412, 0
  %v621 = vsel %vm601, %v414, 0
  %v624 = vsel %vm601, %v416, 0
  %v627 = vsel %vm601, %v418, 0
  %v630 = vsel %vm601, %v420, 0
  %v633 = vsel %vm601, %v422, 0
  %v636 = vsel %vm601, %v424, 0
  %v639 = vsel %vm601, %v426, 0
  %v642 = vsel %vm601, %v428, 0
  %v645 = vsel %vm601, %v430, 0
  %v648 = vsel %vm601, %v432, 0
  %v651 = vsel %vm601, %v434, 0
  %v654 = vsel %vm601, %v436, 0
  %v657 = vsel %vm601, %v438, 0
  %v660 = vsel %vm601, %v440, 0
  %v663 = vsel %vm601, %v442, 0
  %v666 = vsel %vm601, %v444, 0
  %v669 = vsel %vm601, %v446, 0
  %v672 = vsel %vm601, %v448, 0
  %v675 = vsel %vm601, %v450, 0
  %v678 = vsel %vm601, %v452, 0
  %v681 = vsel %vm601, %v454, 0
  %v684 = vsel %vm601, %v456, 0
  %v687 = vsel %vm601, %v458, 0
  %v690 = vsel %vm601, %v460, 0
  %v693 = vsel %vm601, %v462, 0
  %v696 = vsel %vm601, %v464, 0
  %698 = vmatpush.bf16.msra.mxu0 %v590
  %699 = vmatpush.bf16.msra.mxu0 %v589
  %700 = vmatpush.bf16.msra.mxu0 %v588
  %701 = vmatpush.bf16.msra.mxu0 %v587
  %702 = vmatpush.bf16.msra.mxu0 %v586
  %703 = vmatpush.bf16.msra.mxu0 %v585
  %704 = vmatpush.bf16.msra.mxu0 %v584
  %705 = vmatpush.bf16.msra.mxu0 %v583
  %706 = vmatmul.bf16.gmra.mxu0 %v401
  %v707 = vpop.f32.mrf.mxu0
  %v708 = vadd.f32 0.0, %v707
  %v709 = vpop.f32.mrf.mxu0
  %v710 = vadd.f32 0.0, %v709
  %711 = vmatmul.bf16.gmra.mxu0 %v403
  %v712 = vpop.f32.mrf.mxu0
  %v713 = vadd.f32 0.0, %v712
  %v714 = vpop.f32.mrf.mxu0
  %v715 = vadd.f32 0.0, %v714
  %716 = vmatmul.bf16.gmra.mxu0 %v405
  %v717 = vpop.f32.mrf.mxu0
  %v718 = vadd.f32 0.0, %v717
  %v719 = vpop.f32.mrf.mxu0
  %v720 = vadd.f32 0.0, %v719
  %721 = vmatmul.bf16.gmra.mxu0 %v407
  %v722 = vpop.f32.mrf.mxu0
  %v723 = vadd.f32 0.0, %v722
  %v724 = vpop.f32.mrf.mxu0
  %v725 = vadd.f32 0.0, %v724
  %726 = vmatmul.bf16.gmra.mxu0 %v409
  %v727 = vpop.f32.mrf.mxu0
  %v728 = vadd.f32 0.0, %v727
  %v729 = vpop.f32.mrf.mxu0
  %v730 = vadd.f32 0.0, %v729
  %731 = vmatmul.bf16.gmra.mxu0 %v411
  %v732 = vpop.f32.mrf.mxu0
  %v733 = vadd.f32 0.0, %v732
  %v734 = vpop.f32.mrf.mxu0
  %v735 = vadd.f32 0.0, %v734
  %736 = vmatmul.bf16.gmra.mxu0 %v413
  %v737 = vpop.f32.mrf.mxu0
  %v738 = vadd.f32 0.0, %v737
  %v739 = vpop.f32.mrf.mxu0
  %v740 = vadd.f32 0.0, %v739
  %741 = vmatmul.bf16.gmra.mxu0 %v415
  %v742 = vpop.f32.mrf.mxu0
  %v743 = vadd.f32 0.0, %v742
  %v744 = vpop.f32.mrf.mxu0
  %v745 = vadd.f32 0.0, %v744
  %746 = vmatmul.bf16.gmra.mxu0 %v417
  %v747 = vpop.f32.mrf.mxu0
  %v748 = vadd.f32 0.0, %v747
  %v749 = vpop.f32.mrf.mxu0
  %v750 = vadd.f32 0.0, %v749
  %751 = vmatmul.bf16.gmra.mxu0 %v419
  %v752 = vpop.f32.mrf.mxu0
  %v753 = vadd.f32 0.0, %v752
  %v754 = vpop.f32.mrf.mxu0
  %v755 = vadd.f32 0.0, %v754
  %756 = vmatmul.bf16.gmra.mxu0 %v421
  %v757 = vpop.f32.mrf.mxu0
  %v758 = vadd.f32 0.0, %v757
  %v759 = vpop.f32.mrf.mxu0
  %v760 = vadd.f32 0.0, %v759
  %761 = vmatmul.bf16.gmra.mxu0 %v423
  %v762 = vpop.f32.mrf.mxu0
  %v763 = vadd.f32 0.0, %v762
  %v764 = vpop.f32.mrf.mxu0
  %v765 = vadd.f32 0.0, %v764
  %766 = vmatmul.bf16.gmra.mxu0 %v425
  %v767 = vpop.f32.mrf.mxu0
  %v768 = vadd.f32 0.0, %v767
  %v769 = vpop.f32.mrf.mxu0
  %v770 = vadd.f32 0.0, %v769
  %771 = vmatmul.bf16.gmra.mxu0 %v427
  %v772 = vpop.f32.mrf.mxu0
  %v773 = vadd.f32 0.0, %v772
  %v774 = vpop.f32.mrf.mxu0
  %v775 = vadd.f32 0.0, %v774
  %776 = vmatmul.bf16.gmra.mxu0 %v429
  %v777 = vpop.f32.mrf.mxu0
  %v778 = vadd.f32 0.0, %v777
  %v779 = vpop.f32.mrf.mxu0
  %v780 = vadd.f32 0.0, %v779
  %781 = vmatmul.bf16.gmra.mxu0 %v431
  %v782 = vpop.f32.mrf.mxu0
  %v783 = vadd.f32 0.0, %v782
  %v784 = vpop.f32.mrf.mxu0
  %v785 = vadd.f32 0.0, %v784
  %786 = vmatmul.bf16.gmra.mxu0 %v433
  %v787 = vpop.f32.mrf.mxu0
  %v788 = vadd.f32 0.0, %v787
  %v789 = vpop.f32.mrf.mxu0
  %v790 = vadd.f32 0.0, %v789
  %791 = vmatmul.bf16.gmra.mxu0 %v435
  %v792 = vpop.f32.mrf.mxu0
  %v793 = vadd.f32 0.0, %v792
  %v794 = vpop.f32.mrf.mxu0
  %v795 = vadd.f32 0.0, %v794
  %796 = vmatmul.bf16.gmra.mxu0 %v437
  %v797 = vpop.f32.mrf.mxu0
  %v798 = vadd.f32 0.0, %v797
  %v799 = vpop.f32.mrf.mxu0
  %v800 = vadd.f32 0.0, %v799
  %801 = vmatmul.bf16.gmra.mxu0 %v439
  %v802 = vpop.f32.mrf.mxu0
  %v803 = vadd.f32 0.0, %v802
  %v804 = vpop.f32.mrf.mxu0
  %v805 = vadd.f32 0.0, %v804
  %806 = vmatmul.bf16.gmra.mxu0 %v441
  %v807 = vpop.f32.mrf.mxu0
  %v808 = vadd.f32 0.0, %v807
  %v809 = vpop.f32.mrf.mxu0
  %v810 = vadd.f32 0.0, %v809
  %811 = vmatmul.bf16.gmra.mxu0 %v443
  %v812 = vpop.f32.mrf.mxu0
  %v813 = vadd.f32 0.0, %v812
  %v814 = vpop.f32.mrf.mxu0
  %v815 = vadd.f32 0.0, %v814
  %816 = vmatmul.bf16.gmra.mxu0 %v445
  %v817 = vpop.f32.mrf.mxu0
  %v818 = vadd.f32 0.0, %v817
  %v819 = vpop.f32.mrf.mxu0
  %v820 = vadd.f32 0.0, %v819
  %821 = vmatmul.bf16.gmra.mxu0 %v447
  %v822 = vpop.f32.mrf.mxu0
  %v823 = vadd.f32 0.0, %v822
  %v824 = vpop.f32.mrf.mxu0
  %v825 = vadd.f32 0.0, %v824
  %826 = vmatmul.bf16.gmra.mxu0 %v449
  %v827 = vpop.f32.mrf.mxu0
  %v828 = vadd.f32 0.0, %v827
  %v829 = vpop.f32.mrf.mxu0
  %v830 = vadd.f32 0.0, %v829
  %831 = vmatmul.bf16.gmra.mxu0 %v451
  %v832 = vpop.f32.mrf.mxu0
  %v833 = vadd.f32 0.0, %v832
  %v834 = vpop.f32.mrf.mxu0
  %v835 = vadd.f32 0.0, %v834
  %836 = vmatmul.bf16.gmra.mxu0 %v453
  %v837 = vpop.f32.mrf.mxu0
  %v838 = vadd.f32 0.0, %v837
  %v839 = vpop.f32.mrf.mxu0
  %v840 = vadd.f32 0.0, %v839
  %841 = vmatmul.bf16.gmra.mxu0 %v455
  %v842 = vpop.f32.mrf.mxu0
  %v843 = vadd.f32 0.0, %v842
  %v844 = vpop.f32.mrf.mxu0
  %v845 = vadd.f32 0.0, %v844
  %846 = vmatmul.bf16.gmra.mxu0 %v457
  %v847 = vpop.f32.mrf.mxu0
  %v848 = vadd.f32 0.0, %v847
  %v849 = vpop.f32.mrf.mxu0
  %v850 = vadd.f32 0.0, %v849
  %851 = vmatmul.bf16.gmra.mxu0 %v459
  %v852 = vpop.f32.mrf.mxu0
  %v853 = vadd.f32 0.0, %v852
  %v854 = vpop.f32.mrf.mxu0
  %v855 = vadd.f32 0.0, %v854
  %856 = vmatmul.bf16.gmra.mxu0 %v461
  %v857 = vpop.f32.mrf.mxu0
  %v858 = vadd.f32 0.0, %v857
  %v859 = vpop.f32.mrf.mxu0
  %v860 = vadd.f32 0.0, %v859
  %861 = vmatmul.bf16.gmra.mxu0 %v463
  %v862 = vpop.f32.mrf.mxu0
  %v863 = vadd.f32 0.0, %v862
  %v864 = vpop.f32.mrf.mxu0
  %v865 = vadd.f32 0.0, %v864
  %866 = vdwg.mxu0
  %867 = vmatpush.bf16.msra.mxu0 0
  %868 = vmatpush.bf16.msra.mxu0 0
  %869 = vmatpush.bf16.msra.mxu0 0
  %870 = vmatpush.bf16.msra.mxu0 0
  %871 = vmatpush.bf16.msra.mxu0 0
  %872 = vmatpush.bf16.msra.mxu0 0
  %873 = vmatpush.bf16.msra.mxu0 0
  %874 = vmatpush.bf16.msra.mxu0 %v591
  %875 = vmatmul.bf16.gmra.mxu0 %v603
  %v876 = vpop.f32.mrf.mxu0
  %v877 = vadd.f32 %v708, %v876
  %v878 = vpop.f32.mrf.mxu0
  %v879 = vadd.f32 %v710, %v878
  %880 = vmatmul.bf16.gmra.mxu0 %v606
  %v881 = vpop.f32.mrf.mxu0
  %v882 = vadd.f32 %v713, %v881
  %v883 = vpop.f32.mrf.mxu0
  %v884 = vadd.f32 %v715, %v883
  %885 = vmatmul.bf16.gmra.mxu0 %v609
  %v886 = vpop.f32.mrf.mxu0
  %v887 = vadd.f32 %v718, %v886
  %v888 = vpop.f32.mrf.mxu0
  %v889 = vadd.f32 %v720, %v888
  %890 = vmatmul.bf16.gmra.mxu0 %v612
  %v891 = vpop.f32.mrf.mxu0
  %v892 = vadd.f32 %v723, %v891
  %v893 = vpop.f32.mrf.mxu0
  %v894 = vadd.f32 %v725, %v893
  %895 = vmatmul.bf16.gmra.mxu0 %v615
  %v896 = vpop.f32.mrf.mxu0
  %v897 = vadd.f32 %v728, %v896
  %v898 = vpop.f32.mrf.mxu0
  %v899 = vadd.f32 %v730, %v898
  %900 = vmatmul.bf16.gmra.mxu0 %v618
  %v901 = vpop.f32.mrf.mxu0
  %v902 = vadd.f32 %v733, %v901
  %v903 = vpop.f32.mrf.mxu0
  %v904 = vadd.f32 %v735, %v903
  %905 = vmatmul.bf16.gmra.mxu0 %v621
  %v906 = vpop.f32.mrf.mxu0
  %v907 = vadd.f32 %v738, %v906
  %v908 = vpop.f32.mrf.mxu0
  %v909 = vadd.f32 %v740, %v908
  %910 = vmatmul.bf16.gmra.mxu0 %v624
  %v911 = vpop.f32.mrf.mxu0
  %v912 = vadd.f32 %v743, %v911
  %v913 = vpop.f32.mrf.mxu0
  %v914 = vadd.f32 %v745, %v913
  %915 = vmatmul.bf16.gmra.mxu0 %v627
  %v916 = vpop.f32.mrf.mxu0
  %v917 = vadd.f32 %v748, %v916
  %v918 = vpop.f32.mrf.mxu0
  %v919 = vadd.f32 %v750, %v918
  %920 = vmatmul.bf16.gmra.mxu0 %v630
  %v921 = vpop.f32.mrf.mxu0
  %v922 = vadd.f32 %v753, %v921
  %v923 = vpop.f32.mrf.mxu0
  %v924 = vadd.f32 %v755, %v923
  %925 = vmatmul.bf16.gmra.mxu0 %v633
  %v926 = vpop.f32.mrf.mxu0
  %v927 = vadd.f32 %v758, %v926
  %v928 = vpop.f32.mrf.mxu0
  %v929 = vadd.f32 %v760, %v928
  %930 = vmatmul.bf16.gmra.mxu0 %v636
  %v931 = vpop.f32.mrf.mxu0
  %v932 = vadd.f32 %v763, %v931
  %v933 = vpop.f32.mrf.mxu0
  %v934 = vadd.f32 %v765, %v933
  %935 = vmatmul.bf16.gmra.mxu0 %v639
  %v936 = vpop.f32.mrf.mxu0
  %v937 = vadd.f32 %v768, %v936
  %v938 = vpop.f32.mrf.mxu0
  %v939 = vadd.f32 %v770, %v938
  %940 = vmatmul.bf16.gmra.mxu0 %v642
  %v941 = vpop.f32.mrf.mxu0
  %v942 = vadd.f32 %v773, %v941
  %v943 = vpop.f32.mrf.mxu0
  %v944 = vadd.f32 %v775, %v943
  %945 = vmatmul.bf16.gmra.mxu0 %v645
  %v946 = vpop.f32.mrf.mxu0
  %v947 = vadd.f32 %v778, %v946
  %v948 = vpop.f32.mrf.mxu0
  %v949 = vadd.f32 %v780, %v948
  %950 = vmatmul.bf16.gmra.mxu0 %v648
  %v951 = vpop.f32.mrf.mxu0
  %v952 = vadd.f32 %v783, %v951
  %v953 = vpop.f32.mrf.mxu0
  %v954 = vadd.f32 %v785, %v953
  %955 = vmatmul.bf16.gmra.mxu0 %v651
  %v956 = vpop.f32.mrf.mxu0
  %v957 = vadd.f32 %v788, %v956
  %v958 = vpop.f32.mrf.mxu0
  %v959 = vadd.f32 %v790, %v958
  %960 = vmatmul.bf16.gmra.mxu0 %v654
  %v961 = vpop.f32.mrf.mxu0
  %v962 = vadd.f32 %v793, %v961
  %v963 = vpop.f32.mrf.mxu0
  %v964 = vadd.f32 %v795, %v963
  %965 = vmatmul.bf16.gmra.mxu0 %v657
  %v966 = vpop.f32.mrf.mxu0
  %v967 = vadd.f32 %v798, %v966
  %v968 = vpop.f32.mrf.mxu0
  %v969 = vadd.f32 %v800, %v968
  %970 = vmatmul.bf16.gmra.mxu0 %v660
  %v971 = vpop.f32.mrf.mxu0
  %v972 = vadd.f32 %v803, %v971
  %v973 = vpop.f32.mrf.mxu0
  %v974 = vadd.f32 %v805, %v973
  %975 = vmatmul.bf16.gmra.mxu0 %v663
  %v976 = vpop.f32.mrf.mxu0
  %v977 = vadd.f32 %v808, %v976
  %v978 = vpop.f32.mrf.mxu0
  %v979 = vadd.f32 %v810, %v978
  %980 = vmatmul.bf16.gmra.mxu0 %v666
  %v981 = vpop.f32.mrf.mxu0
  %v982 = vadd.f32 %v813, %v981
  %v983 = vpop.f32.mrf.mxu0
  %v984 = vadd.f32 %v815, %v983
  %985 = vmatmul.bf16.gmra.mxu0 %v669
  %v986 = vpop.f32.mrf.mxu0
  %v987 = vadd.f32 %v818, %v986
  %v988 = vpop.f32.mrf.mxu0
  %v989 = vadd.f32 %v820, %v988
  %990 = vmatmul.bf16.gmra.mxu0 %v672
  %v991 = vpop.f32.mrf.mxu0
  %v992 = vadd.f32 %v823, %v991
  %v993 = vpop.f32.mrf.mxu0
  %v994 = vadd.f32 %v825, %v993
  %995 = vmatmul.bf16.gmra.mxu0 %v675
  %v996 = vpop.f32.mrf.mxu0
  %v997 = vadd.f32 %v828, %v996
  %v998 = vpop.f32.mrf.mxu0
  %v999 = vadd.f32 %v830, %v998
  %1000 = vmatmul.bf16.gmra.mxu0 %v678
  %v1001 = vpop.f32.mrf.mxu0
  %v1002 = vadd.f32 %v833, %v1001
  %v1003 = vpop.f32.mrf.mxu0
  %v1004 = vadd.f32 %v835, %v1003
  %1005 = vmatmul.bf16.gmra.mxu0 %v681
  %v1006 = vpop.f32.mrf.mxu0
  %v1007 = vadd.f32 %v838, %v1006
  %v1008 = vpop.f32.mrf.mxu0
  %v1009 = vadd.f32 %v840, %v1008
  %1010 = vmatmul.bf16.gmra.mxu0 %v684
  %v1011 = vpop.f32.mrf.mxu0
  %v1012 = vadd.f32 %v843, %v1011
  %v1013 = vpop.f32.mrf.mxu0
  %v1014 = vadd.f32 %v845, %v1013
  %1015 = vmatmul.bf16.gmra.mxu0 %v687
  %v1016 = vpop.f32.mrf.mxu0
  %v1017 = vadd.f32 %v848, %v1016
  %v1018 = vpop.f32.mrf.mxu0
  %v1019 = vadd.f32 %v850, %v1018
  %1020 = vmatmul.bf16.gmra.mxu0 %v690
  %v1021 = vpop.f32.mrf.mxu0
  %v1022 = vadd.f32 %v853, %v1021
  %v1023 = vpop.f32.mrf.mxu0
  %v1024 = vadd.f32 %v855, %v1023
  %1025 = vmatmul.bf16.gmra.mxu0 %v693
  %v1026 = vpop.f32.mrf.mxu0
  %v1027 = vadd.f32 %v858, %v1026
  %v1028 = vpop.f32.mrf.mxu0
  %v1029 = vadd.f32 %v860, %v1028
  %1030 = vmatmul.bf16.gmra.mxu0 %v696
  %v1031 = vpop.f32.mrf.mxu0
  %v1032 = vadd.f32 %v863, %v1031
  %v1033 = vpop.f32.mrf.mxu0
  %v1034 = vadd.f32 %v865, %v1033
  %1035 = vdwg.mxu0
  %v1036 = vadd.f32 %v465, %v877
  %v1037 = vadd.f32 %v466, %v879
  %v1038 = vadd.f32 %v467, %v882
  %v1039 = vadd.f32 %v468, %v884
  %v1040 = vadd.f32 %v469, %v887
  %v1041 = vadd.f32 %v470, %v889
  %v1042 = vadd.f32 %v471, %v892
  %v1043 = vadd.f32 %v472, %v894
  %v1044 = vadd.f32 %v473, %v897
  %v1045 = vadd.f32 %v474, %v899
  %v1046 = vadd.f32 %v475, %v902
  %v1047 = vadd.f32 %v476, %v904
  %v1048 = vadd.f32 %v477, %v907
  %v1049 = vadd.f32 %v478, %v909
  %v1050 = vadd.f32 %v479, %v912
  %v1051 = vadd.f32 %v480, %v914
  %v1052 = vadd.f32 %v481, %v917
  %v1053 = vadd.f32 %v482, %v919
  %v1054 = vadd.f32 %v483, %v922
  %v1055 = vadd.f32 %v484, %v924
  %v1056 = vadd.f32 %v485, %v927
  %v1057 = vadd.f32 %v486, %v929
  %v1058 = vadd.f32 %v487, %v932
  %v1059 = vadd.f32 %v488, %v934
  %v1060 = vadd.f32 %v489, %v937
  %v1061 = vadd.f32 %v490, %v939
  %v1062 = vadd.f32 %v491, %v942
  %v1063 = vadd.f32 %v492, %v944
  %v1064 = vadd.f32 %v493, %v947
  %v1065 = vadd.f32 %v494, %v949
  %v1066 = vadd.f32 %v495, %v952
  %v1067 = vadd.f32 %v496, %v954
  %v1068 = vadd.f32 %v497, %v957
  %v1069 = vadd.f32 %v498, %v959
  %v1070 = vadd.f32 %v499, %v962
  %v1071 = vadd.f32 %v500, %v964
  %v1072 = vadd.f32 %v501, %v967
  %v1073 = vadd.f32 %v502, %v969
  %v1074 = vadd.f32 %v503, %v972
  %v1075 = vadd.f32 %v504, %v974
  %v1076 = vadd.f32 %v505, %v977
  %v1077 = vadd.f32 %v506, %v979
  %v1078 = vadd.f32 %v507, %v982
  %v1079 = vadd.f32 %v508, %v984
  %v1080 = vadd.f32 %v509, %v987
  %v1081 = vadd.f32 %v510, %v989
  %v1082 = vadd.f32 %v511, %v992
  %v1083 = vadd.f32 %v512, %v994
  %v1084 = vadd.f32 %v513, %v997
  %v1085 = vadd.f32 %v514, %v999
  %v1086 = vadd.f32 %v515, %v1002
  %v1087 = vadd.f32 %v516, %v1004
  %v1088 = vadd.f32 %v517, %v1007
  %v1089 = vadd.f32 %v518, %v1009
  %v1090 = vadd.f32 %v519, %v1012
  %v1091 = vadd.f32 %v520, %v1014
  %v1092 = vadd.f32 %v521, %v1017
  %v1093 = vadd.f32 %v522, %v1019
  %v1094 = vadd.f32 %v523, %v1022
  %v1095 = vadd.f32 %v524, %v1024
  %v1096 = vadd.f32 %v525, %v1027
  %v1097 = vadd.f32 %v526, %v1029
  %v1098 = vadd.f32 %v527, %v1032
  %v1099 = vadd.f32 %v528, %v1034
  %vm1100 = vcmask 97280
  %1101 = vst.msk [vmem:[#allocation2] sm:$0xff] %vm1100, %v1036
  %1102 = vst.msk [vmem:[#allocation2 + $0x8] sm:$0xff] %vm1100, %v1037
  %1103 = vst.msk [vmem:[#allocation2 + $0x10] sm:$0xff] %vm1100, %v1038
  %1104 = vst.msk [vmem:[#allocation2 + $0x18] sm:$0xff] %vm1100, %v1039
  %1105 = vst.msk [vmem:[#allocation2 + $0x20] sm:$0xff] %vm1100, %v1040
  %1106 = vst.msk [vmem:[#allocation2 + $0x28] sm:$0xff] %vm1100, %v1041
  %1107 = vst.msk [vmem:[#allocation2 + $0x30] sm:$0xff] %vm1100, %v1042
  %1108 = vst.msk [vmem:[#allocation2 + $0x38] sm:$0xff] %vm1100, %v1043
  %1109 = vst.msk [vmem:[#allocation2 + $0x40] sm:$0xff] %vm1100, %v1044
  %1110 = vst.msk [vmem:[#allocation2 + $0x48] sm:$0xff] %vm1100, %v1045
  %1111 = vst.msk [vmem:[#allocation2 + $0x50] sm:$0xff] %vm1100, %v1046
  %1112 = vst.msk [vmem:[#allocation2 + $0x58] sm:$0xff] %vm1100, %v1047
  %1113 = vst.msk [vmem:[#allocation2 + $0x60] sm:$0xff] %vm1100, %v1048
  %1114 = vst.msk [vmem:[#allocation2 + $0x68] sm:$0xff] %vm1100, %v1049
  %1115 = vst.msk [vmem:[#allocation2 + $0x70] sm:$0xff] %vm1100, %v1050
  %1116 = vst.msk [vmem:[#allocation2 + $0x78] sm:$0xff] %vm1100, %v1051
  %1117 = vst.msk [vmem:[#allocation2 + $0x80] sm:$0xff] %vm1100, %v1052
  %1118 = vst.msk [vmem:[#allocation2 + $0x88] sm:$0xff] %vm1100, %v1053
  %1119 = vst.msk [vmem:[#allocation2 + $0x90] sm:$0xff] %vm1100, %v1054
  %1120 = vst.msk [vmem:[#allocation2 + $0x98] sm:$0xff] %vm1100, %v1055
  %1121 = vst.msk [vmem:[#allocation2 + $0xa0] sm:$0xff] %vm1100, %v1056
  %1122 = vst.msk [vmem:[#allocation2 + $0xa8] sm:$0xff] %vm1100, %v1057
  %1123 = vst.msk [vmem:[#allocation2 + $0xb0] sm:$0xff] %vm1100, %v1058
  %1124 = vst.msk [vmem:[#allocation2 + $0xb8] sm:$0xff] %vm1100, %v1059
  %1125 = vst.msk [vmem:[#allocation2 + $0xc0] sm:$0xff] %vm1100, %v1060
  %1126 = vst.msk [vmem:[#allocation2 + $0xc8] sm:$0xff] %vm1100, %v1061
  %1127 = vst.msk [vmem:[#allocation2 + $0xd0] sm:$0xff] %vm1100, %v1062
  %1128 = vst.msk [vmem:[#allocation2 + $0xd8] sm:$0xff] %vm1100, %v1063
  %1129 = vst.msk [vmem:[#allocation2 + $0xe0] sm:$0xff] %vm1100, %v1064
  %1130 = vst.msk [vmem:[#allocation2 + $0xe8] sm:$0xff] %vm1100, %v1065
  %1131 = vst.msk [vmem:[#allocation2 + $0xf0] sm:$0xff] %vm1100, %v1066
  %1132 = vst.msk [vmem:[#allocation2 + $0xf8] sm:$0xff] %vm1100, %v1067
  %1133 = vst.msk [vmem:[#allocation2 + $0x100] sm:$0xff] %vm1100, %v1068
  %1134 = vst.msk [vmem:[#allocation2 + $0x108] sm:$0xff] %vm1100, %v1069
  %1135 = vst.msk [vmem:[#allocation2 + $0x110] sm:$0xff] %vm1100, %v1070
  %1136 = vst.msk [vmem:[#allocation2 + $0x118] sm:$0xff] %vm1100, %v1071
  %1137 = vst.msk [vmem:[#allocation2 + $0x120] sm:$0xff] %vm1100, %v1072
  %1138 = vst.msk [vmem:[#allocation2 + $0x128] sm:$0xff] %vm1100, %v1073
  %1139 = vst.msk [vmem:[#allocation2 + $0x130] sm:$0xff] %vm1100, %v1074
  %1140 = vst.msk [vmem:[#allocation2 + $0x138] sm:$0xff] %vm1100, %v1075
  %1141 = vst.msk [vmem:[#allocation2 + $0x140] sm:$0xff] %vm1100, %v1076
  %1142 = vst.msk [vmem:[#allocation2 + $0x148] sm:$0xff] %vm1100, %v1077
  %1143 = vst.msk [vmem:[#allocation2 + $0x150] sm:$0xff] %vm1100, %v1078
  %1144 = vst.msk [vmem:[#allocation2 + $0x158] sm:$0xff] %vm1100, %v1079
  %1145 = vst.msk [vmem:[#allocation2 + $0x160] sm:$0xff] %vm1100, %v1080
  %1146 = vst.msk [vmem:[#allocation2 + $0x168] sm:$0xff] %vm1100, %v1081
  %1147 = vst.msk [vmem:[#allocation2 + $0x170] sm:$0xff] %vm1100, %v1082
  %1148 = vst.msk [vmem:[#allocation2 + $0x178] sm:$0xff] %vm1100, %v1083
  %1149 = vst.msk [vmem:[#allocation2 + $0x180] sm:$0xff] %vm1100, %v1084
  %1150 = vst.msk [vmem:[#allocation2 + $0x188] sm:$0xff] %vm1100, %v1085
  %1151 = vst.msk [vmem:[#allocation2 + $0x190] sm:$0xff] %vm1100, %v1086
  %1152 = vst.msk [vmem:[#allocation2 + $0x198] sm:$0xff] %vm1100, %v1087
  %1153 = vst.msk [vmem:[#allocation2 + $0x1a0] sm:$0xff] %vm1100, %v1088
  %1154 = vst.msk [vmem:[#allocation2 + $0x1a8] sm:$0xff] %vm1100, %v1089
  %1155 = vst.msk [vmem:[#allocation2 + $0x1b0] sm:$0xff] %vm1100, %v1090
  %1156 = vst.msk [vmem:[#allocation2 + $0x1b8] sm:$0xff] %vm1100, %v1091
  %1157 = vst.msk [vmem:[#allocation2 + $0x1c0] sm:$0xff] %vm1100, %v1092
  %1158 = vst.msk [vmem:[#allocation2 + $0x1c8] sm:$0xff] %vm1100, %v1093
  %1159 = vst.msk [vmem:[#allocation2 + $0x1d0] sm:$0xff] %vm1100, %v1094
  %1160 = vst.msk [vmem:[#allocation2 + $0x1d8] sm:$0xff] %vm1100, %v1095
  %1161 = vst.msk [vmem:[#allocation2 + $0x1e0] sm:$0xff] %vm1100, %v1096
  %1162 = vst.msk [vmem:[#allocation2 + $0x1e8] sm:$0xff] %vm1100, %v1097
  %1163 = vst.msk [vmem:[#allocation2 + $0x1f0] sm:$0xff] %vm1100, %v1098
  %1164 = vst.msk [vmem:[#allocation2 + $0x1f8] sm:$0xff] %vm1100, %v1099
  // Predicated region
  $region14: #{_lambda_.13} parent=0 // pred_check
    %p1165 = pneg %p12
  $region15: #{_lambda_.13} parent=0 // pred_check_branch
    %1167 = sbr.rel (%p1165) target = $region17
  $region16: #{_lambda_.13} parent=0 // pred_region
    %v1168 = vld [vmem:[#allocation2] sm:$0xff]
    %v1169 = vld [vmem:[#allocation2 + $0x8] sm:$0xff]
    %v1170 = vld [vmem:[#allocation2 + $0x10] sm:$0xff]
    %v1171 = vld [vmem:[#allocation2 + $0x18] sm:$0xff]
    %v1172 = vld [vmem:[#allocation2 + $0x20] sm:$0xff]
    %v1173 = vld [vmem:[#allocation2 + $0x28] sm:$0xff]
    %v1174 = vld [vmem:[#allocation2 + $0x30] sm:$0xff]
    %v1175 = vld [vmem:[#allocation2 + $0x38] sm:$0xff]
    %v1176 = vld [vmem:[#allocation2 + $0x40] sm:$0xff]
    %v1177 = vld [vmem:[#allocation2 + $0x48] sm:$0xff]
    %v1178 = vld [vmem:[#allocation2 + $0x50] sm:$0xff]
    %v1179 = vld [vmem:[#allocation2 + $0x58] sm:$0xff]
    %v1180 = vld [vmem:[#allocation2 + $0x60] sm:$0xff]
    %v1181 = vld [vmem:[#allocation2 + $0x68] sm:$0xff]
    %v1182 = vld [vmem:[#allocation2 + $0x70] sm:$0xff]
    %v1183 = vld [vmem:[#allocation2 + $0x78] sm:$0xff]
    %v1184 = vld [vmem:[#allocation2 + $0x80] sm:$0xff]
    %v1185 = vld [vmem:[#allocation2 + $0x88] sm:$0xff]
    %v1186 = vld [vmem:[#allocation2 + $0x90] sm:$0xff]
    %v1187 = vld [vmem:[#allocation2 + $0x98] sm:$0xff]
    %v1188 = vld [vmem:[#allocation2 + $0xa0] sm:$0xff]
    %v1189 = vld [vmem:[#allocation2 + $0xa8] sm:$0xff]
    %v1190 = vld [vmem:[#allocation2 + $0xb0] sm:$0xff]
    %v1191 = vld [vmem:[#allocation2 + $0xb8] sm:$0xff]
    %v1192 = vld [vmem:[#allocation2 + $0xc0] sm:$0xff]
    %v1193 = vld [vmem:[#allocation2 + $0xc8] sm:$0xff]
    %v1194 = vld [vmem:[#allocation2 + $0xd0] sm:$0xff]
    %v1195 = vld [vmem:[#allocation2 + $0xd8] sm:$0xff]
    %v1196 = vld [vmem:[#allocation2 + $0xe0] sm:$0xff]
    %v1197 = vld [vmem:[#allocation2 + $0xe8] sm:$0xff]
    %v1198 = vld [vmem:[#allocation2 + $0xf0] sm:$0xff]
    %v1199 = vld [vmem:[#allocation2 + $0xf8] sm:$0xff]
    %v1200 = vld [vmem:[#allocation2 + $0x100] sm:$0xff]
    %v1201 = vld [vmem:[#allocation2 + $0x108] sm:$0xff]
    %v1202 = vld [vmem:[#allocation2 + $0x110] sm:$0xff]
    %v1203 = vld [vmem:[#allocation2 + $0x118] sm:$0xff]
    %v1204 = vld [vmem:[#allocation2 + $0x120] sm:$0xff]
    %v1205 = vld [vmem:[#allocation2 + $0x128] sm:$0xff]
    %v1206 = vld [vmem:[#allocation2 + $0x130] sm:$0xff]
    %v1207 = vld [vmem:[#allocation2 + $0x138] sm:$0xff]
    %v1208 = vld [vmem:[#allocation2 + $0x140] sm:$0xff]
    %v1209 = vld [vmem:[#allocation2 + $0x148] sm:$0xff]
    %v1210 = vld [vmem:[#allocation2 + $0x150] sm:$0xff]
    %v1211 = vld [vmem:[#allocation2 + $0x158] sm:$0xff]
    %v1212 = vld [vmem:[#allocation2 + $0x160] sm:$0xff]
    %v1213 = vld [vmem:[#allocation2 + $0x168] sm:$0xff]
    %v1214 = vld [vmem:[#allocation2 + $0x170] sm:$0xff]
    %v1215 = vld [vmem:[#allocation2 + $0x178] sm:$0xff]
    %v1216 = vld [vmem:[#allocation2 + $0x180] sm:$0xff]
    %v1217 = vld [vmem:[#allocation2 + $0x188] sm:$0xff]
    %v1218 = vld [vmem:[#allocation2 + $0x190] sm:$0xff]
    %v1219 = vld [vmem:[#allocation2 + $0x198] sm:$0xff]
    %v1220 = vld [vmem:[#allocation2 + $0x1a0] sm:$0xff]
    %v1221 = vld [vmem:[#allocation2 + $0x1a8] sm:$0xff]
    %v1222 = vld [vmem:[#allocation2 + $0x1b0] sm:$0xff]
    %v1223 = vld [vmem:[#allocation2 + $0x1b8] sm:$0xff]
    %v1224 = vld [vmem:[#allocation2 + $0x1c0] sm:$0xff]
    %v1225 = vld [vmem:[#allocation2 + $0x1c8] sm:$0xff]
    %v1226 = vld [vmem:[#allocation2 + $0x1d0] sm:$0xff]
    %v1227 = vld [vmem:[#allocation2 + $0x1d8] sm:$0xff]
    %v1228 = vld [vmem:[#allocation2 + $0x1e0] sm:$0xff]
    %v1229 = vld [vmem:[#allocation2 + $0x1e8] sm:$0xff]
    %v1230 = vld [vmem:[#allocation2 + $0x1f0] sm:$0xff]
    %v1231 = vld [vmem:[#allocation2 + $0x1f8] sm:$0xff]
    %v1232 = vpack.c.bf16 %v1168, %v1168
    %v1233 = vpack.c.bf16 %v1169, %v1169
    %v1234 = vpack.c.bf16 %v1170, %v1170
    %v1235 = vpack.c.bf16 %v1171, %v1171
    %v1236 = vpack.c.bf16 %v1172, %v1172
    %v1237 = vpack.c.bf16 %v1173, %v1173
    %v1238 = vpack.c.bf16 %v1174, %v1174
    %v1239 = vpack.c.bf16 %v1175, %v1175
    %v1240 = vpack.c.bf16 %v1176, %v1176
    %v1241 = vpack.c.bf16 %v1177, %v1177
    %v1242 = vpack.c.bf16 %v1178, %v1178
    %v1243 = vpack.c.bf16 %v1179, %v1179
    %v1244 = vpack.c.bf16 %v1180, %v1180
    %v1245 = vpack.c.bf16 %v1181, %v1181
    %v1246 = vpack.c.bf16 %v1182, %v1182
    %v1247 = vpack.c.bf16 %v1183, %v1183
    %v1248 = vpack.c.bf16 %v1184, %v1184
    %v1249 = vpack.c.bf16 %v1185, %v1185
    %v1250 = vpack.c.bf16 %v1186, %v1186
    %v1251 = vpack.c.bf16 %v1187, %v1187
    %v1252 = vpack.c.bf16 %v1188, %v1188
    %v1253 = vpack.c.bf16 %v1189, %v1189
    %v1254 = vpack.c.bf16 %v1190, %v1190
    %v1255 = vpack.c.bf16 %v1191, %v1191
    %v1256 = vpack.c.bf16 %v1192, %v1192
    %v1257 = vpack.c.bf16 %v1193, %v1193
    %v1258 = vpack.c.bf16 %v1194, %v1194
    %v1259 = vpack.c.bf16 %v1195, %v1195
    %v1260 = vpack.c.bf16 %v1196, %v1196
    %v1261 = vpack.c.bf16 %v1197, %v1197
    %v1262 = vpack.c.bf16 %v1198, %v1198
    %v1263 = vpack.c.bf16 %v1199, %v1199
    %v1264 = vpack.c.bf16 %v1200, %v1200
    %v1265 = vpack.c.bf16 %v1201, %v1201
    %v1266 = vpack.c.bf16 %v1202, %v1202
    %v1267 = vpack.c.bf16 %v1203, %v1203
    %v1268 = vpack.c.bf16 %v1204, %v1204
    %v1269 = vpack.c.bf16 %v1205, %v1205
    %v1270 = vpack.c.bf16 %v1206, %v1206
    %v1271 = vpack.c.bf16 %v1207, %v1207
    %v1272 = vpack.c.bf16 %v1208, %v1208
    %v1273 = vpack.c.bf16 %v1209, %v1209
    %v1274 = vpack.c.bf16 %v1210, %v1210
    %v1275 = vpack.c.bf16 %v1211, %v1211
    %v1276 = vpack.c.bf16 %v1212, %v1212
    %v1277 = vpack.c.bf16 %v1213, %v1213
    %v1278 = vpack.c.bf16 %v1214, %v1214
    %v1279 = vpack.c.bf16 %v1215, %v1215
    %v1280 = vpack.c.bf16 %v1216, %v1216
    %v1281 = vpack.c.bf16 %v1217, %v1217
    %v1282 = vpack.c.bf16 %v1218, %v1218
    %v1283 = vpack.c.bf16 %v1219, %v1219
    %v1284 = vpack.c.bf16 %v1220, %v1220
    %v1285 = vpack.c.bf16 %v1221, %v1221
    %v1286 = vpack.c.bf16 %v1222, %v1222
    %v1287 = vpack.c.bf16 %v1223, %v1223
    %v1288 = vpack.c.bf16 %v1224, %v1224
    %v1289 = vpack.c.bf16 %v1225, %v1225
    %v1290 = vpack.c.bf16 %v1226, %v1226
    %v1291 = vpack.c.bf16 %v1227, %v1227
    %v1292 = vpack.c.bf16 %v1228, %v1228
    %v1293 = vpack.c.bf16 %v1229, %v1229
    %v1294 = vpack.c.bf16 %v1230, %v1230
    %v1295 = vpack.c.bf16 %v1231, %v1231
    %vm1296 = vcmask 93184
    %1297 = vst.msk [vmem:[%s2] sm:$0xf] %vm1296, %v1232
    %1298 = vst.msk [vmem:[%s2 + $0x4] sm:$0xf] %vm1296, %v1233
    %1299 = vst.msk [vmem:[%s2 + $0x8] sm:$0xf] %vm1296, %v1234
    %1300 = vst.msk [vmem:[%s2 + $0xc] sm:$0xf] %vm1296, %v1235
    %1301 = vst.msk [vmem:[%s2 + $0x10] sm:$0xf] %vm1296, %v1236
    %1302 = vst.msk [vmem:[%s2 + $0x14] sm:$0xf] %vm1296, %v1237
    %1303 = vst.msk [vmem:[%s2 + $0x18] sm:$0xf] %vm1296, %v1238
    %1304 = vst.msk [vmem:[%s2 + $0x1c] sm:$0xf] %vm1296, %v1239
    %1305 = vst.msk [vmem:[%s2 + $0x20] sm:$0xf] %vm1296, %v1240
    %1306 = vst.msk [vmem:[%s2 + $0x24] sm:$0xf] %vm1296, %v1241
    %1307 = vst.msk [vmem:[%s2 + $0x28] sm:$0xf] %vm1296, %v1242
    %1308 = vst.msk [vmem:[%s2 + $0x2c] sm:$0xf] %vm1296, %v1243
    %1309 = vst.msk [vmem:[%s2 + $0x30] sm:$0xf] %vm1296, %v1244
    %1310 = vst.msk [vmem:[%s2 + $0x34] sm:$0xf] %vm1296, %v1245
    %1311 = vst.msk [vmem:[%s2 + $0x38] sm:$0xf] %vm1296, %v1246
    %1312 = vst.msk [vmem:[%s2 + $0x3c] sm:$0xf] %vm1296, %v1247
    %1313 = vst.msk [vmem:[%s2 + $0x40] sm:$0xf] %vm1296, %v1248
    %1314 = vst.msk [vmem:[%s2 + $0x44] sm:$0xf] %vm1296, %v1249
    %1315 = vst.msk [vmem:[%s2 + $0x48] sm:$0xf] %vm1296, %v1250
    %1316 = vst.msk [vmem:[%s2 + $0x4c] sm:$0xf] %vm1296, %v1251
    %1317 = vst.msk [vmem:[%s2 + $0x50] sm:$0xf] %vm1296, %v1252
    %1318 = vst.msk [vmem:[%s2 + $0x54] sm:$0xf] %vm1296, %v1253
    %1319 = vst.msk [vmem:[%s2 + $0x58] sm:$0xf] %vm1296, %v1254
    %1320 = vst.msk [vmem:[%s2 + $0x5c] sm:$0xf] %vm1296, %v1255
    %1321 = vst.msk [vmem:[%s2 + $0x60] sm:$0xf] %vm1296, %v1256
    %1322 = vst.msk [vmem:[%s2 + $0x64] sm:$0xf] %vm1296, %v1257
    %1323 = vst.msk [vmem:[%s2 + $0x68] sm:$0xf] %vm1296, %v1258
    %1324 = vst.msk [vmem:[%s2 + $0x6c] sm:$0xf] %vm1296, %v1259
    %1325 = vst.msk [vmem:[%s2 + $0x70] sm:$0xf] %vm1296, %v1260
    %1326 = vst.msk [vmem:[%s2 + $0x74] sm:$0xf] %vm1296, %v1261
    %1327 = vst.msk [vmem:[%s2 + $0x78] sm:$0xf] %vm1296, %v1262
    %1328 = vst.msk [vmem:[%s2 + $0x7c] sm:$0xf] %vm1296, %v1263
    %1329 = vst.msk [vmem:[%s2 + $0x80] sm:$0xf] %vm1296, %v1264
    %1330 = vst.msk [vmem:[%s2 + $0x84] sm:$0xf] %vm1296, %v1265
    %1331 = vst.msk [vmem:[%s2 + $0x88] sm:$0xf] %vm1296, %v1266
    %1332 = vst.msk [vmem:[%s2 + $0x8c] sm:$0xf] %vm1296, %v1267
    %1333 = vst.msk [vmem:[%s2 + $0x90] sm:$0xf] %vm1296, %v1268
    %1334 = vst.msk [vmem:[%s2 + $0x94] sm:$0xf] %vm1296, %v1269
    %1335 = vst.msk [vmem:[%s2 + $0x98] sm:$0xf] %vm1296, %v1270
    %1336 = vst.msk [vmem:[%s2 + $0x9c] sm:$0xf] %vm1296, %v1271
    %1337 = vst.msk [vmem:[%s2 + $0xa0] sm:$0xf] %vm1296, %v1272
    %1338 = vst.msk [vmem:[%s2 + $0xa4] sm:$0xf] %vm1296, %v1273
    %1339 = vst.msk [vmem:[%s2 + $0xa8] sm:$0xf] %vm1296, %v1274
    %1340 = vst.msk [vmem:[%s2 + $0xac] sm:$0xf] %vm1296, %v1275
    %1341 = vst.msk [vmem:[%s2 + $0xb0] sm:$0xf] %vm1296, %v1276
    %1342 = vst.msk [vmem:[%s2 + $0xb4] sm:$0xf] %vm1296, %v1277
    %1343 = vst.msk [vmem:[%s2 + $0xb8] sm:$0xf] %vm1296, %v1278
    %1344 = vst.msk [vmem:[%s2 + $0xbc] sm:$0xf] %vm1296, %v1279
    %1345 = vst.msk [vmem:[%s2 + $0xc0] sm:$0xf] %vm1296, %v1280
    %1346 = vst.msk [vmem:[%s2 + $0xc4] sm:$0xf] %vm1296, %v1281
    %1347 = vst.msk [vmem:[%s2 + $0xc8] sm:$0xf] %vm1296, %v1282
    %1348 = vst.msk [vmem:[%s2 + $0xcc] sm:$0xf] %vm1296, %v1283
    %1349 = vst.msk [vmem:[%s2 + $0xd0] sm:$0xf] %vm1296, %v1284
    %1350 = vst.msk [vmem:[%s2 + $0xd4] sm:$0xf] %vm1296, %v1285
    %1351 = vst.msk [vmem:[%s2 + $0xd8] sm:$0xf] %vm1296, %v1286
    %1352 = vst.msk [vmem:[%s2 + $0xdc] sm:$0xf] %vm1296, %v1287
    %1353 = vst.msk [vmem:[%s2 + $0xe0] sm:$0xf] %vm1296, %v1288
    %1354 = vst.msk [vmem:[%s2 + $0xe4] sm:$0xf] %vm1296, %v1289
    %1355 = vst.msk [vmem:[%s2 + $0xe8] sm:$0xf] %vm1296, %v1290
    %1356 = vst.msk [vmem:[%s2 + $0xec] sm:$0xf] %vm1296, %v1291
    %1357 = vst.msk [vmem:[%s2 + $0xf0] sm:$0xf] %vm1296, %v1292
    %1358 = vst.msk [vmem:[%s2 + $0xf4] sm:$0xf] %vm1296, %v1293
    %1359 = vst.msk [vmem:[%s2 + $0xf8] sm:$0xf] %vm1296, %v1294
    %1360 = vst.msk [vmem:[%s2 + $0xfc] sm:$0xf] %vm1296, %v1295
  $region17: #{_lambda_.13} parent=0 // pred_fallthru
    _
  // Predicated region
  $region18: #{_lambda_.13} parent=0 // pred_check
    _
  $region19: #{_lambda_.13} parent=0 // pred_check_branch
    %1362 = sbr.rel (0) target = $region21
  $region20: #{_lambda_.13} parent=0 // pred_region
    _
  $region21: #{_lambda_.13} parent=0 // pred_fallthru
    _
  // Predicated region
  $region22: #{_lambda_.13} parent=0 // pred_check
    _
  $region23: #{_lambda_.13} parent=0 // pred_check_branch
    %1364 = sbr.rel (0) target = $region25
  $region24: #{_lambda_.13} parent=0 // pred_region
    _
  $region25: #{_lambda_.13} parent=0 // pred_fallthru
    _

</llo_original>
